<compile_context>
chip_gen: v7x
topology: tpu7x:2x2x1
jax: 0.10.0
libtpu: 0.0.40
codegen_flags: <defaults>
</compile_context>

<pallas_src>
import functools

import jax
import jax.numpy as jnp
from jax.experimental import pallas as pl
from jax.experimental.pallas import tpu as pltpu


_VMEM_SPEC = pl.BlockSpec(memory_space=pltpu.MemorySpace.VMEM)


def _round_up(x, m):
    return (x + m - 1) // m * m


# ----------------------------------------------------------------------------
# Fused single-block Pallas kernels (whole operands resident in VMEM)
# ----------------------------------------------------------------------------
def _conv_matmul_kernel(a_ref, b_ref, bias_ref, o_ref, *, relu_out):
    """o = maybe_relu(a @ b + bias)."""
    acc = jnp.dot(a_ref[...], b_ref[...], preferred_element_type=jnp.float32)
    acc = acc + bias_ref[...]
    if relu_out:
        acc = jnp.maximum(acc, 0.0)
    o_ref[...] = acc


def _residual_block_kernel(p_ref, w1_ref, w2_ref, x_ref, o_ref, *, final_relu):
    """One residual block: x + conv1x1(relu(conv3x3(relu(x)))).

    p_ref holds im2col patches of x for the 3x3 conv; the leading ReLU is
    applied inside (ReLU commutes with the gather and with zero padding)."""
    h = jnp.maximum(p_ref[...], 0.0)
    h = jnp.dot(h, w1_ref[...], preferred_element_type=jnp.float32)
    h = jnp.maximum(h, 0.0)
    h = jnp.dot(h, w2_ref[...], preferred_element_type=jnp.float32)
    out = x_ref[...] + h
    if final_relu:
        out = jnp.maximum(out, 0.0)
    o_ref[...] = out


def _vq_kernel(x_ref, w_ref, q_ref, enc_ref):
    x = x_ref[...]                               # (Nf, D)
    w = w_ref[...]                               # (Ke, D)
    Ke = w_ref.shape[0]

    x2 = jnp.sum(x * x, axis=1, keepdims=True)   # (Nf, 1)
    w2 = jnp.sum(w * w, axis=1)                  # (Ke,)
    xw = jax.lax.dot_general(x, w, (((1,), (1,)), ((), ())),
                             preferred_element_type=jnp.float32)  # (Nf, Ke)
    dist = x2 + w2[None, :] - 2.0 * xw

    dmin = jnp.min(dist, axis=1, keepdims=True)
    idx = jax.lax.broadcasted_iota(jnp.int32, dist.shape, 1)
    masked = jnp.where(dist <= dmin, idx, Ke)    # first-index tie-break
    amin = jnp.min(masked, axis=1, keepdims=True)
    enc = (idx == amin).astype(jnp.float32)      # one-hot encodings (Nf, Ke)

    enc_ref[...] = enc
    q_ref[...] = jnp.dot(enc, w, preferred_element_type=jnp.float32)


# ----------------------------------------------------------------------------
# Wrappers around the Pallas kernels
# ----------------------------------------------------------------------------
def fused_matmul(a, b, bias=None, relu_out=False):
    """(M,K) @ (K,N) + bias (+ReLU) in one single-block Pallas call."""
    M, K = a.shape
    K2, N = b.shape
    assert K == K2
    Mp = _round_up(M, 8)
    Kp = _round_up(K, 128)
    a_p = jnp.pad(a.astype(jnp.float32), ((0, Mp - M), (0, Kp - K)))
    b_p = jnp.pad(b.astype(jnp.float32), ((0, Kp - K), (0, 0)))
    bias2 = (jnp.zeros((1, N), jnp.float32) if bias is None
             else bias.reshape(1, N).astype(jnp.float32))
    out = pl.pallas_call(
        functools.partial(_conv_matmul_kernel, relu_out=relu_out),
        out_shape=jax.ShapeDtypeStruct((Mp, N), jnp.float32),
        in_specs=[_VMEM_SPEC, _VMEM_SPEC, _VMEM_SPEC],
        out_specs=_VMEM_SPEC,
    )(a_p, b_p, bias2)
    return out[:M]


def _im2col(x, kh, kw, sh, sw, ph, pw):
    N, C, H, W = x.shape
    xpad = jnp.pad(x, ((0, 0), (0, 0), (ph, ph), (pw, pw)))
    Ho = (H + 2 * ph - kh) // sh + 1
    Wo = (W + 2 * pw - kw) // sw + 1
    rows = jnp.arange(Ho)[:, None] * sh + jnp.arange(kh)[None, :]   # (Ho, kh)
    cols = jnp.arange(Wo)[:, None] * sw + jnp.arange(kw)[None, :]   # (Wo, kw)
    p = xpad[:, :, rows, :]                   # (N, C, Ho, kh, Wp)
    p = p[:, :, :, :, cols]                   # (N, C, Ho, kh, Wo, kw)
    p = jnp.transpose(p, (0, 2, 4, 1, 3, 5))  # (N, Ho, Wo, C, kh, kw)
    return p.reshape(N * Ho * Wo, C * kh * kw), Ho, Wo


def conv2d(x, w, b, stride, padding, relu_out=False):
    """x: NCHW, w: (Cout, Cin, kh, kw)."""
    Cout, Cin, kh, kw = w.shape
    sh, sw = stride
    ph, pw = padding
    patches, Ho, Wo = _im2col(x, kh, kw, sh, sw, ph, pw)
    out = fused_matmul(patches, w.reshape(Cout, -1).T, b, relu_out=relu_out)
    N = x.shape[0]
    return out.reshape(N, Ho, Wo, Cout).transpose(0, 3, 1, 2)


def _col2im_overlap_add(cols, sh, sw, kh, kw, ph, pw):
    """Scatter-free col2im: overlap-add of ceil(k/s)^2 pixel-shuffle blocks."""
    N, H, W, Cout, _, _ = cols.shape
    qh = -(-kh // sh)
    qw = -(-kw // sw)
    cols = jnp.pad(cols, ((0, 0), (0, 0), (0, 0), (0, 0),
                          (0, qh * sh - kh), (0, qw * sw - kw)))
    cols = cols.reshape(N, H, W, Cout, qh, sh, qw, sw)
    Hf = (H - 1) * sh + kh
    Wf = (W - 1) * sw + kw
    Hp = (H + qh - 1) * sh
    Wp = (W + qw - 1) * sw
    out = jnp.zeros((N, Cout, Hp, Wp), jnp.float32)
    for qu in range(qh):
        for qv in range(qw):
            blk = cols[:, :, :, :, qu, :, qv, :]          # (N, H, W, Cout, sh, sw)
            blk = jnp.transpose(blk, (0, 3, 1, 4, 2, 5))  # (N, Cout, H, sh, W, sw)
            blk = blk.reshape(N, Cout, H * sh, W * sw)
            blk = jnp.pad(blk, ((0, 0), (0, 0),
                                (qu * sh, Hp - qu * sh - H * sh),
                                (qv * sw, Wp - qv * sw - W * sw)))
            out = out + blk
    return out[:, :, ph:Hf - ph, pw:Wf - pw]


def conv_transpose2d(x, w, b, stride, padding, relu_out=False):
    """x: NCHW, w: (Cin, Cout, kh, kw) (PyTorch ConvTranspose2d layout).

    Sub-pixel decomposition: dense (N*H*W, Cin) @ (Cin, Cout*kh*kw) on the MXU
    followed by an overlap-add col2im — no zero-dilated input, no huge im2col.
    """
    Cin, Cout, kh, kw = w.shape
    sh, sw = stride
    ph, pw = padding
    N, C, H, W = x.shape
    x_flat = jnp.transpose(x, (0, 2, 3, 1)).reshape(N * H * W, Cin)
    cols = fused_matmul(x_flat, w.reshape(Cin, Cout * kh * kw))
    cols = cols.reshape(N, H, W, Cout, kh, kw)
    out = _col2im_overlap_add(cols, sh, sw, kh, kw, ph, pw)
    if b is not None:
        out = out + b[None, :, None, None]
    if relu_out:
        out = jnp.maximum(out, 0.0)
    return out


# ----------------------------------------------------------------------------
# Vector quantizer
# ----------------------------------------------------------------------------
def vector_quantize(z, emb_w, commitment_cost):
    """z: (N, D, H, W) NCHW; emb_w: (Ke, D)."""
    N, D, H, W = z.shape
    inputs = jnp.transpose(z, (0, 2, 3, 1))           # NHWC, like PyTorch permute
    flat = inputs.reshape(-1, D)
    Nf = flat.shape[0]
    Ke = emb_w.shape[0]
    Np = _round_up(Nf, 8)
    flat_p = jnp.pad(flat.astype(jnp.float32), ((0, Np - Nf), (0, 0)))

    q_flat, enc = pl.pallas_call(
        _vq_kernel,
        out_shape=(jax.ShapeDtypeStruct((Np, D), jnp.float32),
                   jax.ShapeDtypeStruct((Np, Ke), jnp.float32)),
        in_specs=[_VMEM_SPEC, _VMEM_SPEC],
        out_specs=(_VMEM_SPEC, _VMEM_SPEC),
    )(flat_p, emb_w.astype(jnp.float32))
    q_flat = q_flat[:Nf]
    enc = enc[:Nf]

    quantized = q_flat.reshape(inputs.shape)
    e_latent_loss = jnp.mean((quantized - inputs) ** 2)
    loss = commitment_cost * e_latent_loss
    # straight-through estimator (numerically equal to `quantized` in forward)
    quantized_st = inputs + (quantized - inputs)
    avg_probs = jnp.mean(enc, axis=0)
    perplexity = jnp.exp(-jnp.sum(avg_probs * jnp.log(avg_probs + 1e-10)))
    # TODO(synk): EMA cluster-size / codebook buffer updates and the detach()
    # (stop_gradient) semantics are training-mode side effects that do not
    # change this forward pass's returned values; not reproduced.
    return loss, jnp.transpose(quantized_st, (0, 3, 1, 2)), perplexity, enc


# ----------------------------------------------------------------------------
# Model pieces
# ----------------------------------------------------------------------------
def residual_block(x, p, final_relu):
    N, C, H, W = x.shape
    patches, _, _ = _im2col(x, 3, 3, 1, 1, 1, 1)
    M, K = patches.shape
    Mp = _round_up(M, 8)
    Kp = _round_up(K, 128)
    patches = jnp.pad(patches.astype(jnp.float32), ((0, Mp - M), (0, Kp - K)))
    x_flat = jnp.transpose(x, (0, 2, 3, 1)).reshape(M, C).astype(jnp.float32)
    x_flat = jnp.pad(x_flat, ((0, Mp - M), (0, 0)))
    w1 = jnp.pad(p["w1"].reshape(p["w1"].shape[0], -1).T.astype(jnp.float32),
                 ((0, Kp - K), (0, 0)))                                  # (Kp, nrh)
    w2 = p["w2"].reshape(p["w2"].shape[0], -1).T.astype(jnp.float32)     # (nrh, C)

    out = pl.pallas_call(
        functools.partial(_residual_block_kernel, final_relu=final_relu),
        out_shape=jax.ShapeDtypeStruct((Mp, C), jnp.float32),
        in_specs=[_VMEM_SPEC, _VMEM_SPEC, _VMEM_SPEC, _VMEM_SPEC],
        out_specs=_VMEM_SPEC,
    )(patches, w1, w2, x_flat)
    return out[:M].reshape(N, H, W, C).transpose(0, 3, 1, 2)


def residual_stack(x, layers):
    if not layers:
        return jnp.maximum(x, 0.0)
    n = len(layers)
    for i, p in enumerate(layers):
        x = residual_block(x, p, final_relu=(i == n - 1))
    return x


def encoder(x, p):
    x = conv2d(x, p["c1_w"], p["c1_b"], (8, 9), (1, 1), relu_out=True)
    x = conv2d(x, p["c2_w"], p["c2_b"], (10, 10), (1, 1), relu_out=True)
    x = conv2d(x, p["c3_w"], p["c3_b"], (1, 1), (1, 1))
    return residual_stack(x, p["res"])


def decoder(x, p):
    x = conv2d(x, p["c1_w"], p["c1_b"], (1, 1), (1, 1))
    x = residual_stack(x, p["res"])
    x = conv_transpose2d(x, p["t1_w"], p["t1_b"], (10, 10), (1, 1), relu_out=True)
    return conv_transpose2d(x, p["t2_w"], p["t2_b"], (8, 9), (1, 1))


def model_forward(params, x, K, quantizer_sizes, commitment_cost):
    z = encoder(x, params["encoder"])
    z = conv2d(z, params["pre_vq_w"], params["pre_vq_b"], (1, 1), (0, 0))
    index = quantizer_sizes.index(K)
    loss, quantized, perplexity, _ = vector_quantize(
        z, params["codebooks"][index], commitment_cost)
    x_recon = decoder(quantized, params["decoder"])
    return loss, x_recon, perplexity


# ----------------------------------------------------------------------------
# Deterministic parameter construction
# ----------------------------------------------------------------------------
def init_params(key, num_hiddens, num_residual_layers, num_residual_hiddens,
                embedding_dim, quantizer_sizes):
    keys = iter(jax.random.split(key, 128))

    def W(shape, s=0.05):
        return jax.random.normal(next(keys), shape, jnp.float32) * s

    def B(n):
        return jax.random.normal(next(keys), (n,), jnp.float32) * 0.01

    def res_layers():
        return [{"w1": W((num_residual_hiddens, num_hiddens, 3, 3)),
                 "w2": W((num_hiddens, num_residual_hiddens, 1, 1))}
                for _ in range(num_residual_layers)]

    nh2 = num_hiddens // 2
    enc = {
        "c1_w": W((nh2, 2, 10, 11)), "c1_b": B(nh2),
        "c2_w": W((num_hiddens, nh2, 12, 12)), "c2_b": B(num_hiddens),
        "c3_w": W((num_hiddens, num_hiddens, 3, 3)), "c3_b": B(num_hiddens),
        "res": res_layers(),
    }
    dec = {
        "c1_w": W((num_hiddens, embedding_dim, 3, 3)), "c1_b": B(num_hiddens),
        "res": res_layers(),
        "t1_w": W((num_hiddens, nh2, 12, 12)), "t1_b": B(nh2),
        "t2_w": W((nh2, 2, 10, 11)), "t2_b": B(2),
    }
    codebooks = [jax.random.normal(next(keys), (k, embedding_dim), jnp.float32)
                 for k in quantizer_sizes]
    return {
        "encoder": enc,
        "pre_vq_w": W((embedding_dim, num_hiddens, 1, 1)),
        "pre_vq_b": B(embedding_dim),
        "codebooks": codebooks,
        "decoder": dec,
    }


# ----------------------------------------------------------------------------
if __name__ == "__main__":
    num_hiddens = 32
    num_residual_layers = 2
    num_residual_hiddens = 8
    embedding_dim = 16
    commitment_cost = 0.25
    quantizer_sizes = [8, 16]
    K = 16

    key = jax.random.PRNGKey(0)
    pkey, xkey = jax.random.split(key)
    params = init_params(pkey, num_hiddens, num_residual_layers,
                         num_residual_hiddens, embedding_dim, quantizer_sizes)

    # Smallest spatial size admitted by the strided encoder kernels:
    # conv1 k=(10,11) s=(8,9) p=1 then conv2 k=12 s=10 p=1  =>  H>=80, W>=90.
    x = jax.random.normal(xkey, (2, 2, 80, 90), jnp.float32)

    fwd = jax.jit(functools.partial(
        model_forward, K=K, quantizer_sizes=tuple(quantizer_sizes),
        commitment_cost=commitment_cost))
    loss, x_recon, perplexity = fwd(params, x)
    (loss, x_recon, perplexity) = jax.block_until_ready(
        (loss, x_recon, perplexity))

    assert x_recon.shape == (2, 2, 80, 90), x_recon.shape
    assert loss.shape == () and perplexity.shape == ()
    assert jnp.isfinite(loss) and jnp.isfinite(perplexity)
    assert bool(jnp.all(jnp.isfinite(x_recon)))
    print("KERNEL_OK")
</pallas_src>

<mosaic_0001>
module attributes {stable_mosaic.version = 11 : i64} {
  func.func @_conv_matmul_kernel(%arg0: memref<200x256xf32, #tpu.memory_space<vmem>>, %arg1: memref<256x16xf32, #tpu.memory_space<vmem>>, %arg2: memref<1x16xf32, #tpu.memory_space<vmem>>, %arg3: memref<200x16xf32, #tpu.memory_space<vmem>>) attributes {dimension_semantics = [], scalar_prefetch = 0 : i64, scratch_operands = 0 : i64, tpu.core_type = #tpu.core_type<tc>} {
    %c0 = arith.constant 0 : index
    %c0_0 = arith.constant 0 : index
    %0 = vector.load %arg0[%c0, %c0_0] : memref<200x256xf32, #tpu.memory_space<vmem>>, vector<200x256xf32>
    %c0_1 = arith.constant 0 : index
    %c0_2 = arith.constant 0 : index
    %1 = vector.load %arg1[%c0_1, %c0_2] : memref<256x16xf32, #tpu.memory_space<vmem>>, vector<256x16xf32>
    %cst = arith.constant dense<0.000000e+00> : vector<200x16xf32>
    %2 = tpu.matmul %0, %1, %cst {dimension_numbers = #tpu.dot_dimension_numbers<[1], [0], [0], [1], [0, 0, 1, 1], [], []>} : vector<200x256xf32>, vector<256x16xf32>, vector<200x16xf32> -> vector<200x16xf32>
    %c0_3 = arith.constant 0 : index
    %c0_4 = arith.constant 0 : index
    %3 = vector.load %arg2[%c0_3, %c0_4] : memref<1x16xf32, #tpu.memory_space<vmem>>, vector<1x16xf32>
    %4 = vector.broadcast %3 : vector<1x16xf32> to vector<200x16xf32>
    %5 = arith.addf %2, %4 : vector<200x16xf32>
    %cst_5 = arith.constant 0.000000e+00 : f32
    %6 = vector.broadcast %cst_5 : f32 to vector<200x16xf32>
    %7 = arith.maximumf %5, %6 : vector<200x16xf32>
    %c0_6 = arith.constant 0 : index
    %c0_7 = arith.constant 0 : index
    %8 = vector.load %arg3[%c0_6, %c0_7] : memref<200x16xf32, #tpu.memory_space<vmem>>, vector<200x16xf32>
    tpu.vector_store %arg3[%c0_6, %c0_7], %7 {strides = array<i32>} : memref<200x16xf32, #tpu.memory_space<vmem>>, vector<200x16xf32>,
    return
  }
}

module attributes {stable_mosaic.version = 11 : i64} {
  func.func @_conv_matmul_kernel(%arg0: memref<8x2304xf32, #tpu.memory_space<vmem>>, %arg1: memref<2304x32xf32, #tpu.memory_space<vmem>>, %arg2: memref<1x32xf32, #tpu.memory_space<vmem>>, %arg3: memref<8x32xf32, #tpu.memory_space<vmem>>) attributes {dimension_semantics = [], scalar_prefetch = 0 : i64, scratch_operands = 0 : i64, tpu.core_type = #tpu.core_type<tc>} {
    %c0 = arith.constant 0 : index
    %c0_0 = arith.constant 0 : index
    %0 = vector.load %arg0[%c0, %c0_0] : memref<8x2304xf32, #tpu.memory_space<vmem>>, vector<8x2304xf32>
    %c0_1 = arith.constant 0 : index
    %c0_2 = arith.constant 0 : index
    %1 = vector.load %arg1[%c0_1, %c0_2] : memref<2304x32xf32, #tpu.memory_space<vmem>>, vector<2304x32xf32>
    %cst = arith.constant dense<0.000000e+00> : vector<8x32xf32>
    %2 = tpu.matmul %0, %1, %cst {dimension_numbers = #tpu.dot_dimension_numbers<[1], [0], [0], [1], [0, 0, 1, 1], [], []>} : vector<8x2304xf32>, vector<2304x32xf32>, vector<8x32xf32> -> vector<8x32xf32>
    %c0_3 = arith.constant 0 : index
    %c0_4 = arith.constant 0 : index
    %3 = vector.load %arg2[%c0_3, %c0_4] : memref<1x32xf32, #tpu.memory_space<vmem>>, vector<1x32xf32>
    %4 = vector.broadcast %3 : vector<1x32xf32> to vector<8x32xf32>
    %5 = arith.addf %2, %4 : vector<8x32xf32>
    %cst_5 = arith.constant 0.000000e+00 : f32
    %6 = vector.broadcast %cst_5 : f32 to vector<8x32xf32>
    %7 = arith.maximumf %5, %6 : vector<8x32xf32>
    %c0_6 = arith.constant 0 : index
    %c0_7 = arith.constant 0 : index
    %8 = vector.load %arg3[%c0_6, %c0_7] : memref<8x32xf32, #tpu.memory_space<vmem>>, vector<8x32xf32>
    tpu.vector_store %arg3[%c0_6, %c0_7], %7 {strides = array<i32>} : memref<8x32xf32, #tpu.memory_space<vmem>>, vector<8x32xf32>,
    return
  }
}

module attributes {stable_mosaic.version = 11 : i64} {
  func.func @_conv_matmul_kernel(%arg0: memref<8x384xf32, #tpu.memory_space<vmem>>, %arg1: memref<384x32xf32, #tpu.memory_space<vmem>>, %arg2: memref<1x32xf32, #tpu.memory_space<vmem>>, %arg3: memref<8x32xf32, #tpu.memory_space<vmem>>) attributes {dimension_semantics = [], scalar_prefetch = 0 : i64, scratch_operands = 0 : i64, tpu.core_type = #tpu.core_type<tc>} {
    %c0 = arith.constant 0 : index
    %c0_0 = arith.constant 0 : index
    %0 = vector.load %arg0[%c0, %c0_0] : memref<8x384xf32, #tpu.memory_space<vmem>>, vector<8x384xf32>
    %c0_1 = arith.constant 0 : index
    %c0_2 = arith.constant 0 : index
    %1 = vector.load %arg1[%c0_1, %c0_2] : memref<384x32xf32, #tpu.memory_space<vmem>>, vector<384x32xf32>
    %cst = arith.constant dense<0.000000e+00> : vector<8x32xf32>
    %2 = tpu.matmul %0, %1, %cst {dimension_numbers = #tpu.dot_dimension_numbers<[1], [0], [0], [1], [0, 0, 1, 1], [], []>} : vector<8x384xf32>, vector<384x32xf32>, vector<8x32xf32> -> vector<8x32xf32>
    %c0_3 = arith.constant 0 : index
    %c0_4 = arith.constant 0 : index
    %3 = vector.load %arg2[%c0_3, %c0_4] : memref<1x32xf32, #tpu.memory_space<vmem>>, vector<1x32xf32>
    %4 = vector.broadcast %3 : vector<1x32xf32> to vector<8x32xf32>
    %5 = arith.addf %2, %4 : vector<8x32xf32>
    %c0_5 = arith.constant 0 : index
    %c0_6 = arith.constant 0 : index
    %6 = vector.load %arg3[%c0_5, %c0_6] : memref<8x32xf32, #tpu.memory_space<vmem>>, vector<8x32xf32>
    tpu.vector_store %arg3[%c0_5, %c0_6], %5 {strides = array<i32>} : memref<8x32xf32, #tpu.memory_space<vmem>>, vector<8x32xf32>,
    return
  }
}

module attributes {stable_mosaic.version = 11 : i64} {
  func.func @_residual_block_kernel(%arg0: memref<8x384xf32, #tpu.memory_space<vmem>>, %arg1: memref<384x8xf32, #tpu.memory_space<vmem>>, %arg2: memref<8x32xf32, #tpu.memory_space<vmem>>, %arg3: memref<8x32xf32, #tpu.memory_space<vmem>>, %arg4: memref<8x32xf32, #tpu.memory_space<vmem>>) attributes {dimension_semantics = [], scalar_prefetch = 0 : i64, scratch_operands = 0 : i64, tpu.core_type = #tpu.core_type<tc>} {
    %c0 = arith.constant 0 : index
    %c0_0 = arith.constant 0 : index
    %0 = vector.load %arg0[%c0, %c0_0] : memref<8x384xf32, #tpu.memory_space<vmem>>, vector<8x384xf32>
    %cst = arith.constant 0.000000e+00 : f32
    %1 = vector.broadcast %cst : f32 to vector<8x384xf32>
    %2 = arith.maximumf %0, %1 : vector<8x384xf32>
    %c0_1 = arith.constant 0 : index
    %c0_2 = arith.constant 0 : index
    %3 = vector.load %arg1[%c0_1, %c0_2] : memref<384x8xf32, #tpu.memory_space<vmem>>, vector<384x8xf32>
    %cst_3 = arith.constant dense<0.000000e+00> : vector<8x8xf32>
    %4 = tpu.matmul %2, %3, %cst_3 {dimension_numbers = #tpu.dot_dimension_numbers<[1], [0], [0], [1], [0, 0, 1, 1], [], []>} : vector<8x384xf32>, vector<384x8xf32>, vector<8x8xf32> -> vector<8x8xf32>
    %cst_4 = arith.constant 0.000000e+00 : f32
    %5 = vector.broadcast %cst_4 : f32 to vector<8x8xf32>
    %6 = arith.maximumf %4, %5 : vector<8x8xf32>
    %c0_5 = arith.constant 0 : index
    %c0_6 = arith.constant 0 : index
    %7 = vector.load %arg2[%c0_5, %c0_6] : memref<8x32xf32, #tpu.memory_space<vmem>>, vector<8x32xf32>
    %cst_7 = arith.constant dense<0.000000e+00> : vector<8x32xf32>
    %8 = tpu.matmul %6, %7, %cst_7 {dimension_numbers = #tpu.dot_dimension_numbers<[1], [0], [0], [1], [0, 0, 1, 1], [], []>} : vector<8x8xf32>, vector<8x32xf32>, vector<8x32xf32> -> vector<8x32xf32>
    %c0_8 = arith.constant 0 : index
    %c0_9 = arith.constant 0 : index
    %9 = vector.load %arg3[%c0_8, %c0_9] : memref<8x32xf32, #tpu.memory_space<vmem>>, vector<8x32xf32>
    %10 = arith.addf %9, %8 : vector<8x32xf32>
    %c0_10 = arith.constant 0 : index
    %c0_11 = arith.constant 0 : index
    %11 = vector.load %arg4[%c0_10, %c0_11] : memref<8x32xf32, #tpu.memory_space<vmem>>, vector<8x32xf32>
    tpu.vector_store %arg4[%c0_10, %c0_11], %10 {strides = array<i32>} : memref<8x32xf32, #tpu.memory_space<vmem>>, vector<8x32xf32>,
    return
  }
}

module attributes {stable_mosaic.version = 11 : i64} {
  func.func @_residual_block_kernel(%arg0: memref<8x384xf32, #tpu.memory_space<vmem>>, %arg1: memref<384x8xf32, #tpu.memory_space<vmem>>, %arg2: memref<8x32xf32, #tpu.memory_space<vmem>>, %arg3: memref<8x32xf32, #tpu.memory_space<vmem>>, %arg4: memref<8x32xf32, #tpu.memory_space<vmem>>) attributes {dimension_semantics = [], scalar_prefetch = 0 : i64, scratch_operands = 0 : i64, tpu.core_type = #tpu.core_type<tc>} {
    %c0 = arith.constant 0 : index
    %c0_0 = arith.constant 0 : index
    %0 = vector.load %arg0[%c0, %c0_0] : memref<8x384xf32, #tpu.memory_space<vmem>>, vector<8x384xf32>
    %cst = arith.constant 0.000000e+00 : f32
    %1 = vector.broadcast %cst : f32 to vector<8x384xf32>
    %2 = arith.maximumf %0, %1 : vector<8x384xf32>
    %c0_1 = arith.constant 0 : index
    %c0_2 = arith.constant 0 : index
    %3 = vector.load %arg1[%c0_1, %c0_2] : memref<384x8xf32, #tpu.memory_space<vmem>>, vector<384x8xf32>
    %cst_3 = arith.constant dense<0.000000e+00> : vector<8x8xf32>
    %4 = tpu.matmul %2, %3, %cst_3 {dimension_numbers = #tpu.dot_dimension_numbers<[1], [0], [0], [1], [0, 0, 1, 1], [], []>} : vector<8x384xf32>, vector<384x8xf32>, vector<8x8xf32> -> vector<8x8xf32>
    %cst_4 = arith.constant 0.000000e+00 : f32
    %5 = vector.broadcast %cst_4 : f32 to vector<8x8xf32>
    %6 = arith.maximumf %4, %5 : vector<8x8xf32>
    %c0_5 = arith.constant 0 : index
    %c0_6 = arith.constant 0 : index
    %7 = vector.load %arg2[%c0_5, %c0_6] : memref<8x32xf32, #tpu.memory_space<vmem>>, vector<8x32xf32>
    %cst_7 = arith.constant dense<0.000000e+00> : vector<8x32xf32>
    %8 = tpu.matmul %6, %7, %cst_7 {dimension_numbers = #tpu.dot_dimension_numbers<[1], [0], [0], [1], [0, 0, 1, 1], [], []>} : vector<8x8xf32>, vector<8x32xf32>, vector<8x32xf32> -> vector<8x32xf32>
    %c0_8 = arith.constant 0 : index
    %c0_9 = arith.constant 0 : index
    %9 = vector.load %arg3[%c0_8, %c0_9] : memref<8x32xf32, #tpu.memory_space<vmem>>, vector<8x32xf32>
    %10 = arith.addf %9, %8 : vector<8x32xf32>
    %cst_10 = arith.constant 0.000000e+00 : f32
    %11 = vector.broadcast %cst_10 : f32 to vector<8x32xf32>
    %12 = arith.maximumf %10, %11 : vector<8x32xf32>
    %c0_11 = arith.constant 0 : index
    %c0_12 = arith.constant 0 : index
    %13 = vector.load %arg4[%c0_11, %c0_12] : memref<8x32xf32, #tpu.memory_space<vmem>>, vector<8x32xf32>
    tpu.vector_store %arg4[%c0_11, %c0_12], %12 {strides = array<i32>} : memref<8x32xf32, #tpu.memory_space<vmem>>, vector<8x32xf32>,
    return
  }
}

module attributes {stable_mosaic.version = 11 : i64} {
  func.func @_conv_matmul_kernel(%arg0: memref<8x128xf32, #tpu.memory_space<vmem>>, %arg1: memref<128x16xf32, #tpu.memory_space<vmem>>, %arg2: memref<1x16xf32, #tpu.memory_space<vmem>>, %arg3: memref<8x16xf32, #tpu.memory_space<vmem>>) attributes {dimension_semantics = [], scalar_prefetch = 0 : i64, scratch_operands = 0 : i64, tpu.core_type = #tpu.core_type<tc>} {
    %c0 = arith.constant 0 : index
    %c0_0 = arith.constant 0 : index
    %0 = vector.load %arg0[%c0, %c0_0] : memref<8x128xf32, #tpu.memory_space<vmem>>, vector<8x128xf32>
    %c0_1 = arith.constant 0 : index
    %c0_2 = arith.constant 0 : index
    %1 = vector.load %arg1[%c0_1, %c0_2] : memref<128x16xf32, #tpu.memory_space<vmem>>, vector<128x16xf32>
    %cst = arith.constant dense<0.000000e+00> : vector<8x16xf32>
    %2 = tpu.matmul %0, %1, %cst {dimension_numbers = #tpu.dot_dimension_numbers<[1], [0], [0], [1], [0, 0, 1, 1], [], []>} : vector<8x128xf32>, vector<128x16xf32>, vector<8x16xf32> -> vector<8x16xf32>
    %c0_3 = arith.constant 0 : index
    %c0_4 = arith.constant 0 : index
    %3 = vector.load %arg2[%c0_3, %c0_4] : memref<1x16xf32, #tpu.memory_space<vmem>>, vector<1x16xf32>
    %4 = vector.broadcast %3 : vector<1x16xf32> to vector<8x16xf32>
    %5 = arith.addf %2, %4 : vector<8x16xf32>
    %c0_5 = arith.constant 0 : index
    %c0_6 = arith.constant 0 : index
    %6 = vector.load %arg3[%c0_5, %c0_6] : memref<8x16xf32, #tpu.memory_space<vmem>>, vector<8x16xf32>
    tpu.vector_store %arg3[%c0_5, %c0_6], %5 {strides = array<i32>} : memref<8x16xf32, #tpu.memory_space<vmem>>, vector<8x16xf32>,
    return
  }
}

module attributes {stable_mosaic.version = 11 : i64} {
  func.func @_vq_kernel(%arg0: memref<8x16xf32, #tpu.memory_space<vmem>>, %arg1: memref<16x16xf32, #tpu.memory_space<vmem>>, %arg2: memref<8x16xf32, #tpu.memory_space<vmem>>, %arg3: memref<8x16xf32, #tpu.memory_space<vmem>>) attributes {dimension_semantics = [], scalar_prefetch = 0 : i64, scratch_operands = 0 : i64, tpu.core_type = #tpu.core_type<tc>} {
    %c0 = arith.constant 0 : index
    %c0_0 = arith.constant 0 : index
    %0 = vector.load %arg0[%c0, %c0_0] : memref<8x16xf32, #tpu.memory_space<vmem>>, vector<8x16xf32>
    %c0_1 = arith.constant 0 : index
    %c0_2 = arith.constant 0 : index
    %1 = vector.load %arg1[%c0_1, %c0_2] : memref<16x16xf32, #tpu.memory_space<vmem>>, vector<16x16xf32>
    %2 = arith.mulf %0, %0 : vector<8x16xf32>
    %cst = arith.constant dense<0.000000e+00> : vector<8xf32>
    %3 = vector.multi_reduction <add>, %2, %cst [1] : vector<8x16xf32> to vector<8xf32>
    %4 = vector.shape_cast %3 : vector<8xf32> to vector<8x1xf32>
    %5 = arith.mulf %1, %1 : vector<16x16xf32>
    %cst_3 = arith.constant dense<0.000000e+00> : vector<16xf32>
    %6 = vector.multi_reduction <add>, %5, %cst_3 [1] : vector<16x16xf32> to vector<16xf32>
    %cst_4 = arith.constant dense<0.000000e+00> : vector<8x16xf32>
    %7 = tpu.matmul %0, %1, %cst_4 {dimension_numbers = #tpu.dot_dimension_numbers<[1], [1], [0], [0], [0, 0, 1, 0], [], []>} : vector<8x16xf32>, vector<16x16xf32>, vector<8x16xf32> -> vector<8x16xf32>
    %8 = vector.shape_cast %6 : vector<16xf32> to vector<1x16xf32>
    %9 = vector.broadcast %4 : vector<8x1xf32> to vector<8x16xf32>
    %10 = vector.broadcast %8 : vector<1x16xf32> to vector<8x16xf32>
    %11 = arith.addf %9, %10 : vector<8x16xf32>
    %cst_5 = arith.constant 2.000000e+00 : f32
    %12 = vector.broadcast %cst_5 : f32 to vector<8x16xf32>
    %13 = arith.mulf %12, %7 : vector<8x16xf32>
    %14 = arith.subf %11, %13 : vector<8x16xf32>
    %cst_6 = arith.constant dense<0x7F800000> : vector<8xf32>
    %15 = vector.multi_reduction <minimumf>, %14, %cst_6 [1] : vector<8x16xf32> to vector<8xf32>
    %16 = vector.shape_cast %15 : vector<8xf32> to vector<8x1xf32>
    %17 = tpu.iota {dimensions = array<i32: 1>} : vector<8x16xi32>
    %18 = vector.broadcast %16 : vector<8x1xf32> to vector<8x16xf32>
    %19 = arith.cmpf ole, %14, %18 : vector<8x16xf32>
    %c16_i32 = arith.constant 16 : i32
    %20 = vector.broadcast %c16_i32 : i32 to vector<8x16xi32>
    %21 = arith.select %19, %17, %20 : vector<8x16xi1>, vector<8x16xi32>
    %cst_7 = arith.constant dense<2147483647> : vector<8xi32>
    %22 = vector.multi_reduction <minsi>, %21, %cst_7 [1] : vector<8x16xi32> to vector<8xi32>
    %23 = vector.shape_cast %22 : vector<8xi32> to vector<8x1xi32>
    %24 = vector.broadcast %23 : vector<8x1xi32> to vector<8x16xi32>
    %25 = arith.cmpi eq, %17, %24 : vector<8x16xi32>
    %26 = arith.extui %25 : vector<8x16xi1> to vector<8x16xi32>
    %27 = arith.sitofp %26 : vector<8x16xi32> to vector<8x16xf32>
    %c0_8 = arith.constant 0 : index
    %c0_9 = arith.constant 0 : index
    %28 = vector.load %arg3[%c0_8, %c0_9] : memref<8x16xf32, #tpu.memory_space<vmem>>, vector<8x16xf32>
    tpu.vector_store %arg3[%c0_8, %c0_9], %27 {strides = array<i32>} : memref<8x16xf32, #tpu.memory_space<vmem>>, vector<8x16xf32>,
    %cst_10 = arith.constant dense<0.000000e+00> : vector<8x16xf32>
    %29 = tpu.matmul %27, %1, %cst_10 {dimension_numbers = #tpu.dot_dimension_numbers<[1], [0], [0], [1], [0, 0, 1, 1], [], []>} : vector<8x16xf32>, vector<16x16xf32>, vector<8x16xf32> -> vector<8x16xf32>
    %c0_11 = arith.constant 0 : index
    %c0_12 = arith.constant 0 : index
    %30 = vector.load %arg2[%c0_11, %c0_12] : memref<8x16xf32, #tpu.memory_space<vmem>>, vector<8x16xf32>
    tpu.vector_store %arg2[%c0_11, %c0_12], %29 {strides = array<i32>} : memref<8x16xf32, #tpu.memory_space<vmem>>, vector<8x16xf32>,
    return
  }
}

module attributes {stable_mosaic.version = 11 : i64} {
  func.func @_conv_matmul_kernel(%arg0: memref<8x256xf32, #tpu.memory_space<vmem>>, %arg1: memref<256x32xf32, #tpu.memory_space<vmem>>, %arg2: memref<1x32xf32, #tpu.memory_space<vmem>>, %arg3: memref<8x32xf32, #tpu.memory_space<vmem>>) attributes {dimension_semantics = [], scalar_prefetch = 0 : i64, scratch_operands = 0 : i64, tpu.core_type = #tpu.core_type<tc>} {
    %c0 = arith.constant 0 : index
    %c0_0 = arith.constant 0 : index
    %0 = vector.load %arg0[%c0, %c0_0] : memref<8x256xf32, #tpu.memory_space<vmem>>, vector<8x256xf32>
    %c0_1 = arith.constant 0 : index
    %c0_2 = arith.constant 0 : index
    %1 = vector.load %arg1[%c0_1, %c0_2] : memref<256x32xf32, #tpu.memory_space<vmem>>, vector<256x32xf32>
    %cst = arith.constant dense<0.000000e+00> : vector<8x32xf32>
    %2 = tpu.matmul %0, %1, %cst {dimension_numbers = #tpu.dot_dimension_numbers<[1], [0], [0], [1], [0, 0, 1, 1], [], []>} : vector<8x256xf32>, vector<256x32xf32>, vector<8x32xf32> -> vector<8x32xf32>
    %c0_3 = arith.constant 0 : index
    %c0_4 = arith.constant 0 : index
    %3 = vector.load %arg2[%c0_3, %c0_4] : memref<1x32xf32, #tpu.memory_space<vmem>>, vector<1x32xf32>
    %4 = vector.broadcast %3 : vector<1x32xf32> to vector<8x32xf32>
    %5 = arith.addf %2, %4 : vector<8x32xf32>
    %c0_5 = arith.constant 0 : index
    %c0_6 = arith.constant 0 : index
    %6 = vector.load %arg3[%c0_5, %c0_6] : memref<8x32xf32, #tpu.memory_space<vmem>>, vector<8x32xf32>
    tpu.vector_store %arg3[%c0_5, %c0_6], %5 {strides = array<i32>} : memref<8x32xf32, #tpu.memory_space<vmem>>, vector<8x32xf32>,
    return
  }
}

module attributes {stable_mosaic.version = 11 : i64} {
  func.func @_conv_matmul_kernel(%arg0: memref<8x128xf32, #tpu.memory_space<vmem>>, %arg1: memref<128x2304xf32, #tpu.memory_space<vmem>>, %arg2: memref<1x2304xf32, #tpu.memory_space<vmem>>, %arg3: memref<8x2304xf32, #tpu.memory_space<vmem>>) attributes {dimension_semantics = [], scalar_prefetch = 0 : i64, scratch_operands = 0 : i64, tpu.core_type = #tpu.core_type<tc>} {
    %c0 = arith.constant 0 : index
    %c0_0 = arith.constant 0 : index
    %0 = vector.load %arg0[%c0, %c0_0] : memref<8x128xf32, #tpu.memory_space<vmem>>, vector<8x128xf32>
    %c0_1 = arith.constant 0 : index
    %c0_2 = arith.constant 0 : index
    %1 = vector.load %arg1[%c0_1, %c0_2] : memref<128x2304xf32, #tpu.memory_space<vmem>>, vector<128x2304xf32>
    %cst = arith.constant dense<0.000000e+00> : vector<8x2304xf32>
    %2 = tpu.matmul %0, %1, %cst {dimension_numbers = #tpu.dot_dimension_numbers<[1], [0], [0], [1], [0, 0, 1, 1], [], []>} : vector<8x128xf32>, vector<128x2304xf32>, vector<8x2304xf32> -> vector<8x2304xf32>
    %c0_3 = arith.constant 0 : index
    %c0_4 = arith.constant 0 : index
    %3 = vector.load %arg2[%c0_3, %c0_4] : memref<1x2304xf32, #tpu.memory_space<vmem>>, vector<1x2304xf32>
    %4 = vector.broadcast %3 : vector<1x2304xf32> to vector<8x2304xf32>
    %5 = arith.addf %2, %4 : vector<8x2304xf32>
    %c0_5 = arith.constant 0 : index
    %c0_6 = arith.constant 0 : index
    %6 = vector.load %arg3[%c0_5, %c0_6] : memref<8x2304xf32, #tpu.memory_space<vmem>>, vector<8x2304xf32>
    tpu.vector_store %arg3[%c0_5, %c0_6], %5 {strides = array<i32>} : memref<8x2304xf32, #tpu.memory_space<vmem>>, vector<8x2304xf32>,
    return
  }
}

module attributes {stable_mosaic.version = 11 : i64} {
  func.func @_conv_matmul_kernel(%arg0: memref<200x128xf32, #tpu.memory_space<vmem>>, %arg1: memref<128x220xf32, #tpu.memory_space<vmem>>, %arg2: memref<1x220xf32, #tpu.memory_space<vmem>>, %arg3: memref<200x220xf32, #tpu.memory_space<vmem>>) attributes {dimension_semantics = [], scalar_prefetch = 0 : i64, scratch_operands = 0 : i64, tpu.core_type = #tpu.core_type<tc>} {
    %c0 = arith.constant 0 : index
    %c0_0 = arith.constant 0 : index
    %0 = vector.load %arg0[%c0, %c0_0] : memref<200x128xf32, #tpu.memory_space<vmem>>, vector<200x128xf32>
    %c0_1 = arith.constant 0 : index
    %c0_2 = arith.constant 0 : index
    %1 = vector.load %arg1[%c0_1, %c0_2] : memref<128x220xf32, #tpu.memory_space<vmem>>, vector<128x220xf32>
    %cst = arith.constant dense<0.000000e+00> : vector<200x220xf32>
    %2 = tpu.matmul %0, %1, %cst {dimension_numbers = #tpu.dot_dimension_numbers<[1], [0], [0], [1], [0, 0, 1, 1], [], []>} : vector<200x128xf32>, vector<128x220xf32>, vector<200x220xf32> -> vector<200x220xf32>
    %c0_3 = arith.constant 0 : index
    %c0_4 = arith.constant 0 : index
    %3 = vector.load %arg2[%c0_3, %c0_4] : memref<1x220xf32, #tpu.memory_space<vmem>>, vector<1x220xf32>
    %4 = vector.broadcast %3 : vector<1x220xf32> to vector<200x220xf32>
    %5 = arith.addf %2, %4 : vector<200x220xf32>
    %c0_5 = arith.constant 0 : index
    %c0_6 = arith.constant 0 : index
    %6 = vector.load %arg3[%c0_5, %c0_6] : memref<200x220xf32, #tpu.memory_space<vmem>>, vector<200x220xf32>
    tpu.vector_store %arg3[%c0_5, %c0_6], %5 {strides = array<i32>} : memref<200x220xf32, #tpu.memory_space<vmem>>, vector<200x220xf32>,
    return
  }
}

</mosaic_0001>

<llo_original>
// kernel: model_forward.12
$region0: #{model_forward.12}
  #allocation0 [shape = 'u32[]', space=smem, size = 0x4, offset = 0x4, fixed_abs, tag = 'smem constant byte address 0x4 - core index']
  #allocation1 [shape = 'u32[144,128]{1,0:T(1,128)}', space=vmem, size = 0x12000, scoped, tag = 'internal scratch']
  %s0 = inlined_call_operand.vmem [shape: f32[200,256], index: 0, kind: input, shape index: {}]
  %s1 = inlined_call_operand.vmem [shape: f32[256,16], index: 1, kind: input, shape index: {}]
  %s2 = inlined_call_operand.vmem [shape: f32[1,16], index: 2, kind: input, shape index: {}]
  %s3 = inlined_call_operand.vmem [shape: f32[200,16], index: 3, kind: output, shape index: {}]
  %s4 = sld [smem:[#allocation0]]
  $region22: #{model_forward.12} parent=0
    _
  %s6 = ssub.s32 1, %s4
  %s7 = scalar_select 0, %s6, %s4
  // Predicated region
  $region2: #{model_forward.12} parent=0 // pred_check
    _
  $region3: #{model_forward.12} parent=0 // pred_check_branch
    %9 = sbr.rel (0) target = $region5
  $region4: #{model_forward.12} parent=0 // pred_region
    _
  $region5: #{model_forward.12} parent=0 // pred_fallthru
    _
  // Predicated region
  $region6: #{model_forward.12} parent=0 // pred_check
    _
  $region7: #{model_forward.12} parent=0 // pred_check_branch
    %11 = sbr.rel (0) target = $region9
  $region8: #{model_forward.12} parent=0 // pred_region
    _
  $region9: #{model_forward.12} parent=0 // pred_fallthru
    _
  // Predicated region
  $region10: #{model_forward.12} parent=0 // pred_check
    _
  $region11: #{model_forward.12} parent=0 // pred_check_branch
    %13 = sbr.rel (0) target = $region13
  $region12: #{model_forward.12} parent=0 // pred_region
    _
  $region13: #{model_forward.12} parent=0 // pred_fallthru
    _
  %v14 = vld [vmem:[%s0] sm:$0xff]
  %v15 = vld [vmem:[%s0 + $0x8] sm:$0xff]
  %v16 = vld [vmem:[%s0 + $0x10] sm:$0xff]
  %v17 = vld [vmem:[%s0 + $0x18] sm:$0xff]
  %v18 = vld [vmem:[%s0 + $0x20] sm:$0xff]
  %v19 = vld [vmem:[%s0 + $0x28] sm:$0xff]
  %v20 = vld [vmem:[%s0 + $0x30] sm:$0xff]
  %v21 = vld [vmem:[%s0 + $0x38] sm:$0xff]
  %v22 = vld [vmem:[%s0 + $0x40] sm:$0xff]
  %v23 = vld [vmem:[%s0 + $0x48] sm:$0xff]
  %v24 = vld [vmem:[%s0 + $0x50] sm:$0xff]
  %v25 = vld [vmem:[%s0 + $0x58] sm:$0xff]
  %v26 = vld [vmem:[%s0 + $0x60] sm:$0xff]
  %v27 = vld [vmem:[%s0 + $0x68] sm:$0xff]
  %v28 = vld [vmem:[%s0 + $0x70] sm:$0xff]
  %v29 = vld [vmem:[%s0 + $0x78] sm:$0xff]
  %v30 = vld [vmem:[%s0 + $0x80] sm:$0xff]
  %v31 = vld [vmem:[%s0 + $0x88] sm:$0xff]
  %v32 = vld [vmem:[%s0 + $0x90] sm:$0xff]
  %v33 = vld [vmem:[%s0 + $0x98] sm:$0xff]
  %v34 = vld [vmem:[%s0 + $0xa0] sm:$0xff]
  %v35 = vld [vmem:[%s0 + $0xa8] sm:$0xff]
  %v36 = vld [vmem:[%s0 + $0xb0] sm:$0xff]
  %v37 = vld [vmem:[%s0 + $0xb8] sm:$0xff]
  %v38 = vld [vmem:[%s0 + $0xc0] sm:$0xff]
  %v39 = vld [vmem:[%s0 + $0xc8] sm:$0xff]
  %v40 = vld [vmem:[%s0 + $0xd0] sm:$0xff]
  %v41 = vld [vmem:[%s0 + $0xd8] sm:$0xff]
  %v42 = vld [vmem:[%s0 + $0xe0] sm:$0xff]
  %v43 = vld [vmem:[%s0 + $0xe8] sm:$0xff]
  %v44 = vld [vmem:[%s0 + $0xf0] sm:$0xff]
  %v45 = vld [vmem:[%s0 + $0xf8] sm:$0xff]
  %v46 = vld [vmem:[%s0 + $0x100] sm:$0xff]
  %v47 = vld [vmem:[%s0 + $0x108] sm:$0xff]
  %v48 = vld [vmem:[%s0 + $0x110] sm:$0xff]
  %v49 = vld [vmem:[%s0 + $0x118] sm:$0xff]
  %v50 = vld [vmem:[%s0 + $0x120] sm:$0xff]
  %v51 = vld [vmem:[%s0 + $0x128] sm:$0xff]
  %v52 = vld [vmem:[%s0 + $0x130] sm:$0xff]
  %v53 = vld [vmem:[%s0 + $0x138] sm:$0xff]
  %v54 = vld [vmem:[%s0 + $0x140] sm:$0xff]
  %v55 = vld [vmem:[%s0 + $0x148] sm:$0xff]
  %v56 = vld [vmem:[%s0 + $0x150] sm:$0xff]
  %v57 = vld [vmem:[%s0 + $0x158] sm:$0xff]
  %v58 = vld [vmem:[%s0 + $0x160] sm:$0xff]
  %v59 = vld [vmem:[%s0 + $0x168] sm:$0xff]
  %v60 = vld [vmem:[%s0 + $0x170] sm:$0xff]
  %v61 = vld [vmem:[%s0 + $0x178] sm:$0xff]
  %v62 = vld [vmem:[%s0 + $0x180] sm:$0xff]
  %v63 = vld [vmem:[%s0 + $0x188] sm:$0xff]
  %v64 = vld [vmem:[%s1] sm:$0xff]
  %v65 = vld [vmem:[%s1 + $0x8] sm:$0xff]
  %v66 = vld [vmem:[%s1 + $0x10] sm:$0xff]
  %v67 = vld [vmem:[%s1 + $0x18] sm:$0xff]
  %v68 = vld [vmem:[%s1 + $0x20] sm:$0xff]
  %v69 = vld [vmem:[%s1 + $0x28] sm:$0xff]
  %v70 = vld [vmem:[%s1 + $0x30] sm:$0xff]
  %v71 = vld [vmem:[%s1 + $0x38] sm:$0xff]
  %v72 = vld [vmem:[%s1 + $0x40] sm:$0xff]
  %v73 = vld [vmem:[%s1 + $0x48] sm:$0xff]
  %v74 = vld [vmem:[%s1 + $0x50] sm:$0xff]
  %v75 = vld [vmem:[%s1 + $0x58] sm:$0xff]
  %v76 = vld [vmem:[%s1 + $0x60] sm:$0xff]
  %v77 = vld [vmem:[%s1 + $0x68] sm:$0xff]
  %v78 = vld [vmem:[%s1 + $0x70] sm:$0xff]
  %v79 = vld [vmem:[%s1 + $0x78] sm:$0xff]
  %v80 = vld [vmem:[%s1 + $0x80] sm:$0xff]
  %v81 = vld [vmem:[%s1 + $0x88] sm:$0xff]
  %v82 = vld [vmem:[%s1 + $0x90] sm:$0xff]
  %v83 = vld [vmem:[%s1 + $0x98] sm:$0xff]
  %v84 = vld [vmem:[%s1 + $0xa0] sm:$0xff]
  %v85 = vld [vmem:[%s1 + $0xa8] sm:$0xff]
  %v86 = vld [vmem:[%s1 + $0xb0] sm:$0xff]
  %v87 = vld [vmem:[%s1 + $0xb8] sm:$0xff]
  %v88 = vld [vmem:[%s1 + $0xc0] sm:$0xff]
  %v89 = vld [vmem:[%s1 + $0xc8] sm:$0xff]
  %v90 = vld [vmem:[%s1 + $0xd0] sm:$0xff]
  %v91 = vld [vmem:[%s1 + $0xd8] sm:$0xff]
  %v92 = vld [vmem:[%s1 + $0xe0] sm:$0xff]
  %v93 = vld [vmem:[%s1 + $0xe8] sm:$0xff]
  %v94 = vld [vmem:[%s1 + $0xf0] sm:$0xff]
  %v95 = vld [vmem:[%s1 + $0xf8] sm:$0xff]
  %v96 = vld [vmem:[%s2] sm:$0x1]
  %v98 = vlaneseq
  %v99 = vshrl.u32 %v98, 7
  %v100 = vsub.s32 0, %v99
  %v101 = vrot.slane %v96, %v100
  %103 = vmatprep.subr.mxu0 0.0
  %104 = vmatpush1.msra.mxu0 %v64
  %105 = vmatprep.subr.mxu0 0.0
  %106 = vmatpush1.msra.mxu0 %v65
  %107 = vmatprep.subr.mxu0 0.0
  %108 = vmatpush1.msra.mxu0 %v66
  %109 = vmatprep.subr.mxu0 0.0
  %110 = vmatpush1.msra.mxu0 %v67
  %111 = vmatprep.subr.mxu0 0.0
  %112 = vmatpush1.msra.mxu0 %v68
  %113 = vmatprep.subr.mxu0 0.0
  %114 = vmatpush1.msra.mxu0 %v69
  %115 = vmatprep.subr.mxu0 0.0
  %116 = vmatpush1.msra.mxu0 %v70
  %117 = vmatprep.subr.mxu0 0.0
  %118 = vmatpush1.msra.mxu0 %v71
  %119 = vmatprep.subr.mxu0 0.0
  %120 = vmatpush1.msra.mxu0 %v72
  %121 = vmatprep.subr.mxu0 0.0
  %122 = vmatpush1.msra.mxu0 %v73
  %123 = vmatprep.subr.mxu0 0.0
  %124 = vmatpush1.msra.mxu0 %v74
  %125 = vmatprep.subr.mxu0 0.0
  %126 = vmatpush1.msra.mxu0 %v75
  %127 = vmatprep.subr.mxu0 0.0
  %128 = vmatpush1.msra.mxu0 %v76
  %129 = vmatprep.subr.mxu0 0.0
  %130 = vmatpush1.msra.mxu0 %v77
  %131 = vmatprep.subr.mxu0 0.0
  %132 = vmatpush1.msra.mxu0 %v78
  %133 = vmatprep.subr.mxu0 0.0
  %134 = vmatpush1.msra.mxu0 %v79
  %135 = vmatprep.subr.mxu0 0.0
  %136 = vmatpush1.msra.mxu0 %v80
  %137 = vmatprep.subr.mxu0 0.0
  %138 = vmatpush1.msra.mxu0 %v81
  %139 = vmatprep.subr.mxu0 0.0
  %140 = vmatpush1.msra.mxu0 %v82
  %141 = vmatprep.subr.mxu0 0.0
  %142 = vmatpush1.msra.mxu0 %v83
  %143 = vmatprep.subr.mxu0 0.0
  %144 = vmatpush1.msra.mxu0 %v84
  %145 = vmatprep.subr.mxu0 0.0
  %146 = vmatpush1.msra.mxu0 %v85
  %147 = vmatprep.subr.mxu0 0.0
  %148 = vmatpush1.msra.mxu0 %v86
  %149 = vmatprep.subr.mxu0 0.0
  %150 = vmatpush1.msra.mxu0 %v87
  %151 = vmatprep.subr.mxu0 0.0
  %152 = vmatpush1.msra.mxu0 %v88
  %153 = vmatprep.subr.mxu0 0.0
  %154 = vmatpush1.msra.mxu0 %v89
  %155 = vmatprep.subr.mxu0 0.0
  %156 = vmatpush1.msra.mxu0 %v90
  %157 = vmatprep.subr.mxu0 0.0
  %158 = vmatpush1.msra.mxu0 %v91
  %159 = vmatprep.subr.mxu0 0.0
  %160 = vmatpush1.msra.mxu0 %v92
  %161 = vmatprep.subr.mxu0 0.0
  %162 = vmatpush1.msra.mxu0 %v93
  %163 = vmatprep.subr.mxu0 0.0
  %164 = vmatpush1.msra.mxu0 %v94
  %165 = vmatprep.subr.mxu0 0.0
  %166 = vmatpush1.msra.mxu0 %v95
  %167 = vmatprep.mubr.f32.mxu0 %v15
  %168 = vmatmul.mubr.f32.gmra.mrb[0].mxu0 %v14
  %v169 = vpop.f32.mrb[0].mxu0
  %v170 = vadd.f32 %v101, %v169
  %v171 = vpop.f32.mrb[0].mxu0
  %172 = vmatprep.mubr.f32.mxu0 %v17
  %173 = vmatmul.mubr.f32.gmra.mrb[0].mxu0 %v16
  %v174 = vpop.f32.mrb[0].mxu0
  %v175 = vadd.f32 %v101, %v174
  %v176 = vpop.f32.mrb[0].mxu0
  %177 = vmatprep.mubr.f32.mxu0 %v19
  %178 = vmatmul.mubr.f32.gmra.mrb[0].mxu0 %v18
  %v179 = vpop.f32.mrb[0].mxu0
  %v180 = vadd.f32 %v101, %v179
  %v181 = vpop.f32.mrb[0].mxu0
  %182 = vmatprep.mubr.f32.mxu0 %v21
  %183 = vmatmul.mubr.f32.gmra.mrb[0].mxu0 %v20
  %v184 = vpop.f32.mrb[0].mxu0
  %v185 = vadd.f32 %v101, %v184
  %v186 = vpop.f32.mrb[0].mxu0
  %187 = vmatprep.mubr.f32.mxu0 %v23
  %188 = vmatmul.mubr.f32.gmra.mrb[0].mxu0 %v22
  %v189 = vpop.f32.mrb[0].mxu0
  %v190 = vadd.f32 %v101, %v189
  %v191 = vpop.f32.mrb[0].mxu0
  %192 = vmatprep.mubr.f32.mxu0 %v25
  %193 = vmatmul.mubr.f32.gmra.mrb[0].mxu0 %v24
  %v194 = vpop.f32.mrb[0].mxu0
  %v195 = vadd.f32 %v101, %v194
  %v196 = vpop.f32.mrb[0].mxu0
  %197 = vmatprep.mubr.f32.mxu0 %v27
  %198 = vmatmul.mubr.f32.gmra.mrb[0].mxu0 %v26
  %v199 = vpop.f32.mrb[0].mxu0
  %v200 = vadd.f32 %v101, %v199
  %v201 = vpop.f32.mrb[0].mxu0
  %202 = vmatprep.mubr.f32.mxu0 %v29
  %203 = vmatmul.mubr.f32.gmra.mrb[0].mxu0 %v28
  %v204 = vpop.f32.mrb[0].mxu0
  %v205 = vadd.f32 %v101, %v204
  %v206 = vpop.f32.mrb[0].mxu0
  %207 = vmatprep.mubr.f32.mxu0 %v31
  %208 = vmatmul.mubr.f32.gmra.mrb[0].mxu0 %v30
  %v209 = vpop.f32.mrb[0].mxu0
  %v210 = vadd.f32 %v101, %v209
  %v211 = vpop.f32.mrb[0].mxu0
  %212 = vmatprep.mubr.f32.mxu0 %v33
  %213 = vmatmul.mubr.f32.gmra.mrb[0].mxu0 %v32
  %v214 = vpop.f32.mrb[0].mxu0
  %v215 = vadd.f32 %v101, %v214
  %v216 = vpop.f32.mrb[0].mxu0
  %217 = vmatprep.mubr.f32.mxu0 %v35
  %218 = vmatmul.mubr.f32.gmra.mrb[0].mxu0 %v34
  %v219 = vpop.f32.mrb[0].mxu0
  %v220 = vadd.f32 %v101, %v219
  %v221 = vpop.f32.mrb[0].mxu0
  %222 = vmatprep.mubr.f32.mxu0 %v37
  %223 = vmatmul.mubr.f32.gmra.mrb[0].mxu0 %v36
  %v224 = vpop.f32.mrb[0].mxu0
  %v225 = vadd.f32 %v101, %v224
  %v226 = vpop.f32.mrb[0].mxu0
  %227 = vmatprep.mubr.f32.mxu0 %v39
  %228 = vmatmul.mubr.f32.gmra.mrb[0].mxu0 %v38
  %v229 = vpop.f32.mrb[0].mxu0
  %v230 = vadd.f32 %v101, %v229
  %v231 = vpop.f32.mrb[0].mxu0
  %232 = vmatprep.mubr.f32.mxu0 %v41
  %233 = vmatmul.mubr.f32.gmra.mrb[0].mxu0 %v40
  %v234 = vpop.f32.mrb[0].mxu0
  %v235 = vadd.f32 %v101, %v234
  %v236 = vpop.f32.mrb[0].mxu0
  %237 = vmatprep.mubr.f32.mxu0 %v43
  %238 = vmatmul.mubr.f32.gmra.mrb[0].mxu0 %v42
  %v239 = vpop.f32.mrb[0].mxu0
  %v240 = vadd.f32 %v101, %v239
  %v241 = vpop.f32.mrb[0].mxu0
  %242 = vmatprep.mubr.f32.mxu0 %v45
  %243 = vmatmul.mubr.f32.gmra.mrb[0].mxu0 %v44
  %v244 = vpop.f32.mrb[0].mxu0
  %v245 = vadd.f32 %v101, %v244
  %v246 = vpop.f32.mrb[0].mxu0
  %247 = vmatprep.mubr.f32.mxu0 %v47
  %248 = vmatmul.mubr.f32.gmra.mrb[0].mxu0 %v46
  %v249 = vpop.f32.mrb[0].mxu0
  %v250 = vadd.f32 %v101, %v249
  %v251 = vpop.f32.mrb[0].mxu0
  %252 = vmatprep.mubr.f32.mxu0 %v49
  %253 = vmatmul.mubr.f32.gmra.mrb[0].mxu0 %v48
  %v254 = vpop.f32.mrb[0].mxu0
  %v255 = vadd.f32 %v101, %v254
  %v256 = vpop.f32.mrb[0].mxu0
  %257 = vmatprep.mubr.f32.mxu0 %v51
  %258 = vmatmul.mubr.f32.gmra.mrb[0].mxu0 %v50
  %v259 = vpop.f32.mrb[0].mxu0
  %v260 = vadd.f32 %v101, %v259
  %v261 = vpop.f32.mrb[0].mxu0
  %262 = vmatprep.mubr.f32.mxu0 %v53
  %263 = vmatmul.mubr.f32.gmra.mrb[0].mxu0 %v52
  %v264 = vpop.f32.mrb[0].mxu0
  %v265 = vadd.f32 %v101, %v264
  %v266 = vpop.f32.mrb[0].mxu0
  %267 = vmatprep.mubr.f32.mxu0 %v55
  %268 = vmatmul.mubr.f32.gmra.mrb[0].mxu0 %v54
  %v269 = vpop.f32.mrb[0].mxu0
  %v270 = vadd.f32 %v101, %v269
  %v271 = vpop.f32.mrb[0].mxu0
  %272 = vmatprep.mubr.f32.mxu0 %v57
  %273 = vmatmul.mubr.f32.gmra.mrb[0].mxu0 %v56
  %v274 = vpop.f32.mrb[0].mxu0
  %v275 = vadd.f32 %v101, %v274
  %v276 = vpop.f32.mrb[0].mxu0
  %277 = vmatprep.mubr.f32.mxu0 %v59
  %278 = vmatmul.mubr.f32.gmra.mrb[0].mxu0 %v58
  %v279 = vpop.f32.mrb[0].mxu0
  %v280 = vadd.f32 %v101, %v279
  %v281 = vpop.f32.mrb[0].mxu0
  %282 = vmatprep.mubr.f32.mxu0 %v61
  %283 = vmatmul.mubr.f32.gmra.mrb[0].mxu0 %v60
  %v284 = vpop.f32.mrb[0].mxu0
  %v285 = vadd.f32 %v101, %v284
  %v286 = vpop.f32.mrb[0].mxu0
  %287 = vmatprep.mubr.f32.mxu0 %v63
  %288 = vmatmul.mubr.f32.gmra.mrb[0].mxu0 %v62
  %v289 = vpop.f32.mrb[0].mxu0
  %v290 = vadd.f32 %v101, %v289
  %v291 = vpop.f32.mrb[0].mxu0
  %292 = vdwg.mxu0
  %v293 = vmax.f32 %v170, 0.0
  %v294 = vmax.f32 %v175, 0.0
  %v295 = vmax.f32 %v180, 0.0
  %v296 = vmax.f32 %v185, 0.0
  %v297 = vmax.f32 %v190, 0.0
  %v298 = vmax.f32 %v195, 0.0
  %v299 = vmax.f32 %v200, 0.0
  %v300 = vmax.f32 %v205, 0.0
  %v301 = vmax.f32 %v210, 0.0
  %v302 = vmax.f32 %v215, 0.0
  %v303 = vmax.f32 %v220, 0.0
  %v304 = vmax.f32 %v225, 0.0
  %v305 = vmax.f32 %v230, 0.0
  %v306 = vmax.f32 %v235, 0.0
  %v307 = vmax.f32 %v240, 0.0
  %v308 = vmax.f32 %v245, 0.0
  %v309 = vmax.f32 %v250, 0.0
  %v310 = vmax.f32 %v255, 0.0
  %v311 = vmax.f32 %v260, 0.0
  %v312 = vmax.f32 %v265, 0.0
  %v313 = vmax.f32 %v270, 0.0
  %v314 = vmax.f32 %v275, 0.0
  %v315 = vmax.f32 %v280, 0.0
  %v316 = vmax.f32 %v285, 0.0
  %v317 = vmax.f32 %v290, 0.0
  %vm318 = vcmask 130048
  %319 = vst.msk [vmem:[%s3] sm:$0xff] %vm318, %v293
  %320 = vst.msk [vmem:[%s3 + $0x8] sm:$0xff] %vm318, %v294
  %321 = vst.msk [vmem:[%s3 + $0x10] sm:$0xff] %vm318, %v295
  %322 = vst.msk [vmem:[%s3 + $0x18] sm:$0xff] %vm318, %v296
  %323 = vst.msk [vmem:[%s3 + $0x20] sm:$0xff] %vm318, %v297
  %324 = vst.msk [vmem:[%s3 + $0x28] sm:$0xff] %vm318, %v298
  %325 = vst.msk [vmem:[%s3 + $0x30] sm:$0xff] %vm318, %v299
  %326 = vst.msk [vmem:[%s3 + $0x38] sm:$0xff] %vm318, %v300
  %327 = vst.msk [vmem:[%s3 + $0x40] sm:$0xff] %vm318, %v301
  %328 = vst.msk [vmem:[%s3 + $0x48] sm:$0xff] %vm318, %v302
  %329 = vst.msk [vmem:[%s3 + $0x50] sm:$0xff] %vm318, %v303
  %330 = vst.msk [vmem:[%s3 + $0x58] sm:$0xff] %vm318, %v304
  %331 = vst.msk [vmem:[%s3 + $0x60] sm:$0xff] %vm318, %v305
  %332 = vst.msk [vmem:[%s3 + $0x68] sm:$0xff] %vm318, %v306
  %333 = vst.msk [vmem:[%s3 + $0x70] sm:$0xff] %vm318, %v307
  %334 = vst.msk [vmem:[%s3 + $0x78] sm:$0xff] %vm318, %v308
  %335 = vst.msk [vmem:[%s3 + $0x80] sm:$0xff] %vm318, %v309
  %336 = vst.msk [vmem:[%s3 + $0x88] sm:$0xff] %vm318, %v310
  %337 = vst.msk [vmem:[%s3 + $0x90] sm:$0xff] %vm318, %v311
  %338 = vst.msk [vmem:[%s3 + $0x98] sm:$0xff] %vm318, %v312
  %339 = vst.msk [vmem:[%s3 + $0xa0] sm:$0xff] %vm318, %v313
  %340 = vst.msk [vmem:[%s3 + $0xa8] sm:$0xff] %vm318, %v314
  %341 = vst.msk [vmem:[%s3 + $0xb0] sm:$0xff] %vm318, %v315
  %342 = vst.msk [vmem:[%s3 + $0xb8] sm:$0xff] %vm318, %v316
  %343 = vst.msk [vmem:[%s3 + $0xc0] sm:$0xff] %vm318, %v317
  // Predicated region
  $region14: #{model_forward.12} parent=0 // pred_check
    _
  $region15: #{model_forward.12} parent=0 // pred_check_branch
    %345 = sbr.rel (0) target = $region17
  $region16: #{model_forward.12} parent=0 // pred_region
    _
  $region17: #{model_forward.12} parent=0 // pred_fallthru
    _
  // Predicated region
  $region18: #{model_forward.12} parent=0 // pred_check
    _
  $region19: #{model_forward.12} parent=0 // pred_check_branch
    %347 = sbr.rel (0) target = $region21
  $region20: #{model_forward.12} parent=0 // pred_region
    _
  $region21: #{model_forward.12} parent=0 // pred_fallthru
    _

// kernel: model_forward.13
$region0: #{model_forward.13}
  #allocation0 [shape = 'u32[]', space=smem, size = 0x4, offset = 0x4, fixed_abs, tag = 'smem constant byte address 0x4 - core index']
  #allocation1 [shape = 'u32[144,128]{1,0:T(1,128)}', space=vmem, size = 0x12000, scoped, tag = 'internal scratch']
  %s0 = inlined_call_operand.vmem [shape: f32[8,2304], index: 0, kind: input, shape index: {}]
  %s1 = inlined_call_operand.vmem [shape: f32[2304,32], index: 1, kind: input, shape index: {}]
  %s2 = inlined_call_operand.vmem [shape: f32[1,32], index: 2, kind: input, shape index: {}]
  %s3 = inlined_call_operand.vmem [shape: f32[8,32], index: 3, kind: output, shape index: {}]
  %s4 = sld [smem:[#allocation0]]
  $region22: #{model_forward.13} parent=0
    _
  %s6 = ssub.s32 1, %s4
  %s7 = scalar_select 0, %s6, %s4
  // Predicated region
  $region2: #{model_forward.13} parent=0 // pred_check
    _
  $region3: #{model_forward.13} parent=0 // pred_check_branch
    %9 = sbr.rel (0) target = $region5
  $region4: #{model_forward.13} parent=0 // pred_region
    _
  $region5: #{model_forward.13} parent=0 // pred_fallthru
    _
  // Predicated region
  $region6: #{model_forward.13} parent=0 // pred_check
    _
  $region7: #{model_forward.13} parent=0 // pred_check_branch
    %11 = sbr.rel (0) target = $region9
  $region8: #{model_forward.13} parent=0 // pred_region
    _
  $region9: #{model_forward.13} parent=0 // pred_fallthru
    _
  // Predicated region
  $region10: #{model_forward.13} parent=0 // pred_check
    _
  $region11: #{model_forward.13} parent=0 // pred_check_branch
    %13 = sbr.rel (0) target = $region13
  $region12: #{model_forward.13} parent=0 // pred_region
    _
  $region13: #{model_forward.13} parent=0 // pred_fallthru
    _
  %v14 = vld [vmem:[%s0] sm:$0xff]
  %v15 = vld [vmem:[%s0 + $0x8] sm:$0xff]
  %v16 = vld [vmem:[%s0 + $0x10] sm:$0xff]
  %v17 = vld [vmem:[%s0 + $0x18] sm:$0xff]
  %v18 = vld [vmem:[%s0 + $0x20] sm:$0xff]
  %v19 = vld [vmem:[%s0 + $0x28] sm:$0xff]
  %v20 = vld [vmem:[%s0 + $0x30] sm:$0xff]
  %v21 = vld [vmem:[%s0 + $0x38] sm:$0xff]
  %v22 = vld [vmem:[%s0 + $0x40] sm:$0xff]
  %v23 = vld [vmem:[%s0 + $0x48] sm:$0xff]
  %v24 = vld [vmem:[%s0 + $0x50] sm:$0xff]
  %v25 = vld [vmem:[%s0 + $0x58] sm:$0xff]
  %v26 = vld [vmem:[%s0 + $0x60] sm:$0xff]
  %v27 = vld [vmem:[%s0 + $0x68] sm:$0xff]
  %v28 = vld [vmem:[%s0 + $0x70] sm:$0xff]
  %v29 = vld [vmem:[%s0 + $0x78] sm:$0xff]
  %v30 = vld [vmem:[%s0 + $0x80] sm:$0xff]
  %v31 = vld [vmem:[%s0 + $0x88] sm:$0xff]
  %v32 = vld [vmem:[%s1] sm:$0xff]
  %v33 = vld [vmem:[%s1 + $0x8] sm:$0xff]
  %v34 = vld [vmem:[%s1 + $0x10] sm:$0xff]
  %v35 = vld [vmem:[%s1 + $0x18] sm:$0xff]
  %v36 = vld [vmem:[%s1 + $0x20] sm:$0xff]
  %v37 = vld [vmem:[%s1 + $0x28] sm:$0xff]
  %v38 = vld [vmem:[%s1 + $0x30] sm:$0xff]
  %v39 = vld [vmem:[%s1 + $0x38] sm:$0xff]
  %v40 = vld [vmem:[%s1 + $0x40] sm:$0xff]
  %v41 = vld [vmem:[%s1 + $0x48] sm:$0xff]
  %v42 = vld [vmem:[%s1 + $0x50] sm:$0xff]
  %v43 = vld [vmem:[%s1 + $0x58] sm:$0xff]
  %v44 = vld [vmem:[%s1 + $0x60] sm:$0xff]
  %v45 = vld [vmem:[%s1 + $0x68] sm:$0xff]
  %v46 = vld [vmem:[%s1 + $0x70] sm:$0xff]
  %v47 = vld [vmem:[%s1 + $0x78] sm:$0xff]
  %v48 = vld [vmem:[%s1 + $0x80] sm:$0xff]
  %v49 = vld [vmem:[%s1 + $0x88] sm:$0xff]
  %v50 = vld [vmem:[%s1 + $0x90] sm:$0xff]
  %v51 = vld [vmem:[%s1 + $0x98] sm:$0xff]
  %v52 = vld [vmem:[%s1 + $0xa0] sm:$0xff]
  %v53 = vld [vmem:[%s1 + $0xa8] sm:$0xff]
  %v54 = vld [vmem:[%s1 + $0xb0] sm:$0xff]
  %v55 = vld [vmem:[%s1 + $0xb8] sm:$0xff]
  %v56 = vld [vmem:[%s1 + $0xc0] sm:$0xff]
  %v57 = vld [vmem:[%s1 + $0xc8] sm:$0xff]
  %v58 = vld [vmem:[%s1 + $0xd0] sm:$0xff]
  %v59 = vld [vmem:[%s1 + $0xd8] sm:$0xff]
  %v60 = vld [vmem:[%s1 + $0xe0] sm:$0xff]
  %v61 = vld [vmem:[%s1 + $0xe8] sm:$0xff]
  %v62 = vld [vmem:[%s1 + $0xf0] sm:$0xff]
  %v63 = vld [vmem:[%s1 + $0xf8] sm:$0xff]
  %v64 = vld [vmem:[%s1 + $0x100] sm:$0xff]
  %v65 = vld [vmem:[%s1 + $0x108] sm:$0xff]
  %v66 = vld [vmem:[%s1 + $0x110] sm:$0xff]
  %v67 = vld [vmem:[%s1 + $0x118] sm:$0xff]
  %v68 = vld [vmem:[%s1 + $0x120] sm:$0xff]
  %v69 = vld [vmem:[%s1 + $0x128] sm:$0xff]
  %v70 = vld [vmem:[%s1 + $0x130] sm:$0xff]
  %v71 = vld [vmem:[%s1 + $0x138] sm:$0xff]
  %v72 = vld [vmem:[%s1 + $0x140] sm:$0xff]
  %v73 = vld [vmem:[%s1 + $0x148] sm:$0xff]
  %v74 = vld [vmem:[%s1 + $0x150] sm:$0xff]
  %v75 = vld [vmem:[%s1 + $0x158] sm:$0xff]
  %v76 = vld [vmem:[%s1 + $0x160] sm:$0xff]
  %v77 = vld [vmem:[%s1 + $0x168] sm:$0xff]
  %v78 = vld [vmem:[%s1 + $0x170] sm:$0xff]
  %v79 = vld [vmem:[%s1 + $0x178] sm:$0xff]
  %v80 = vld [vmem:[%s1 + $0x180] sm:$0xff]
  %v81 = vld [vmem:[%s1 + $0x188] sm:$0xff]
  %v82 = vld [vmem:[%s1 + $0x190] sm:$0xff]
  %v83 = vld [vmem:[%s1 + $0x198] sm:$0xff]
  %v84 = vld [vmem:[%s1 + $0x1a0] sm:$0xff]
  %v85 = vld [vmem:[%s1 + $0x1a8] sm:$0xff]
  %v86 = vld [vmem:[%s1 + $0x1b0] sm:$0xff]
  %v87 = vld [vmem:[%s1 + $0x1b8] sm:$0xff]
  %v88 = vld [vmem:[%s1 + $0x1c0] sm:$0xff]
  %v89 = vld [vmem:[%s1 + $0x1c8] sm:$0xff]
  %v90 = vld [vmem:[%s1 + $0x1d0] sm:$0xff]
  %v91 = vld [vmem:[%s1 + $0x1d8] sm:$0xff]
  %v92 = vld [vmem:[%s1 + $0x1e0] sm:$0xff]
  %v93 = vld [vmem:[%s1 + $0x1e8] sm:$0xff]
  %v94 = vld [vmem:[%s1 + $0x1f0] sm:$0xff]
  %v95 = vld [vmem:[%s1 + $0x1f8] sm:$0xff]
  %v96 = vld [vmem:[%s1 + $0x200] sm:$0xff]
  %v97 = vld [vmem:[%s1 + $0x208] sm:$0xff]
  %v98 = vld [vmem:[%s1 + $0x210] sm:$0xff]
  %v99 = vld [vmem:[%s1 + $0x218] sm:$0xff]
  %v100 = vld [vmem:[%s1 + $0x220] sm:$0xff]
  %v101 = vld [vmem:[%s1 + $0x228] sm:$0xff]
  %v102 = vld [vmem:[%s1 + $0x230] sm:$0xff]
  %v103 = vld [vmem:[%s1 + $0x238] sm:$0xff]
  %v104 = vld [vmem:[%s1 + $0x240] sm:$0xff]
  %v105 = vld [vmem:[%s1 + $0x248] sm:$0xff]
  %v106 = vld [vmem:[%s1 + $0x250] sm:$0xff]
  %v107 = vld [vmem:[%s1 + $0x258] sm:$0xff]
  %v108 = vld [vmem:[%s1 + $0x260] sm:$0xff]
  %v109 = vld [vmem:[%s1 + $0x268] sm:$0xff]
  %v110 = vld [vmem:[%s1 + $0x270] sm:$0xff]
  %v111 = vld [vmem:[%s1 + $0x278] sm:$0xff]
  %v112 = vld [vmem:[%s1 + $0x280] sm:$0xff]
  %v113 = vld [vmem:[%s1 + $0x288] sm:$0xff]
  %v114 = vld [vmem:[%s1 + $0x290] sm:$0xff]
  %v115 = vld [vmem:[%s1 + $0x298] sm:$0xff]
  %v116 = vld [vmem:[%s1 + $0x2a0] sm:$0xff]
  %v117 = vld [vmem:[%s1 + $0x2a8] sm:$0xff]
  %v118 = vld [vmem:[%s1 + $0x2b0] sm:$0xff]
  %v119 = vld [vmem:[%s1 + $0x2b8] sm:$0xff]
  %v120 = vld [vmem:[%s1 + $0x2c0] sm:$0xff]
  %v121 = vld [vmem:[%s1 + $0x2c8] sm:$0xff]
  %v122 = vld [vmem:[%s1 + $0x2d0] sm:$0xff]
  %v123 = vld [vmem:[%s1 + $0x2d8] sm:$0xff]
  %v124 = vld [vmem:[%s1 + $0x2e0] sm:$0xff]
  %v125 = vld [vmem:[%s1 + $0x2e8] sm:$0xff]
  %v126 = vld [vmem:[%s1 + $0x2f0] sm:$0xff]
  %v127 = vld [vmem:[%s1 + $0x2f8] sm:$0xff]
  %v128 = vld [vmem:[%s1 + $0x300] sm:$0xff]
  %v129 = vld [vmem:[%s1 + $0x308] sm:$0xff]
  %v130 = vld [vmem:[%s1 + $0x310] sm:$0xff]
  %v131 = vld [vmem:[%s1 + $0x318] sm:$0xff]
  %v132 = vld [vmem:[%s1 + $0x320] sm:$0xff]
  %v133 = vld [vmem:[%s1 + $0x328] sm:$0xff]
  %v134 = vld [vmem:[%s1 + $0x330] sm:$0xff]
  %v135 = vld [vmem:[%s1 + $0x338] sm:$0xff]
  %v136 = vld [vmem:[%s1 + $0x340] sm:$0xff]
  %v137 = vld [vmem:[%s1 + $0x348] sm:$0xff]
  %v138 = vld [vmem:[%s1 + $0x350] sm:$0xff]
  %v139 = vld [vmem:[%s1 + $0x358] sm:$0xff]
  %v140 = vld [vmem:[%s1 + $0x360] sm:$0xff]
  %v141 = vld [vmem:[%s1 + $0x368] sm:$0xff]
  %v142 = vld [vmem:[%s1 + $0x370] sm:$0xff]
  %v143 = vld [vmem:[%s1 + $0x378] sm:$0xff]
  %v144 = vld [vmem:[%s1 + $0x380] sm:$0xff]
  %v145 = vld [vmem:[%s1 + $0x388] sm:$0xff]
  %v146 = vld [vmem:[%s1 + $0x390] sm:$0xff]
  %v147 = vld [vmem:[%s1 + $0x398] sm:$0xff]
  %v148 = vld [vmem:[%s1 + $0x3a0] sm:$0xff]
  %v149 = vld [vmem:[%s1 + $0x3a8] sm:$0xff]
  %v150 = vld [vmem:[%s1 + $0x3b0] sm:$0xff]
  %v151 = vld [vmem:[%s1 + $0x3b8] sm:$0xff]
  %v152 = vld [vmem:[%s1 + $0x3c0] sm:$0xff]
  %v153 = vld [vmem:[%s1 + $0x3c8] sm:$0xff]
  %v154 = vld [vmem:[%s1 + $0x3d0] sm:$0xff]
  %v155 = vld [vmem:[%s1 + $0x3d8] sm:$0xff]
  %v156 = vld [vmem:[%s1 + $0x3e0] sm:$0xff]
  %v157 = vld [vmem:[%s1 + $0x3e8] sm:$0xff]
  %v158 = vld [vmem:[%s1 + $0x3f0] sm:$0xff]
  %v159 = vld [vmem:[%s1 + $0x3f8] sm:$0xff]
  %v160 = vld [vmem:[%s1 + $0x400] sm:$0xff]
  %v161 = vld [vmem:[%s1 + $0x408] sm:$0xff]
  %v162 = vld [vmem:[%s1 + $0x410] sm:$0xff]
  %v163 = vld [vmem:[%s1 + $0x418] sm:$0xff]
  %v164 = vld [vmem:[%s1 + $0x420] sm:$0xff]
  %v165 = vld [vmem:[%s1 + $0x428] sm:$0xff]
  %v166 = vld [vmem:[%s1 + $0x430] sm:$0xff]
  %v167 = vld [vmem:[%s1 + $0x438] sm:$0xff]
  %v168 = vld [vmem:[%s1 + $0x440] sm:$0xff]
  %v169 = vld [vmem:[%s1 + $0x448] sm:$0xff]
  %v170 = vld [vmem:[%s1 + $0x450] sm:$0xff]
  %v171 = vld [vmem:[%s1 + $0x458] sm:$0xff]
  %v172 = vld [vmem:[%s1 + $0x460] sm:$0xff]
  %v173 = vld [vmem:[%s1 + $0x468] sm:$0xff]
  %v174 = vld [vmem:[%s1 + $0x470] sm:$0xff]
  %v175 = vld [vmem:[%s1 + $0x478] sm:$0xff]
  %v176 = vld [vmem:[%s1 + $0x480] sm:$0xff]
  %v177 = vld [vmem:[%s1 + $0x488] sm:$0xff]
  %v178 = vld [vmem:[%s1 + $0x490] sm:$0xff]
  %v179 = vld [vmem:[%s1 + $0x498] sm:$0xff]
  %v180 = vld [vmem:[%s1 + $0x4a0] sm:$0xff]
  %v181 = vld [vmem:[%s1 + $0x4a8] sm:$0xff]
  %v182 = vld [vmem:[%s1 + $0x4b0] sm:$0xff]
  %v183 = vld [vmem:[%s1 + $0x4b8] sm:$0xff]
  %v184 = vld [vmem:[%s1 + $0x4c0] sm:$0xff]
  %v185 = vld [vmem:[%s1 + $0x4c8] sm:$0xff]
  %v186 = vld [vmem:[%s1 + $0x4d0] sm:$0xff]
  %v187 = vld [vmem:[%s1 + $0x4d8] sm:$0xff]
  %v188 = vld [vmem:[%s1 + $0x4e0] sm:$0xff]
  %v189 = vld [vmem:[%s1 + $0x4e8] sm:$0xff]
  %v190 = vld [vmem:[%s1 + $0x4f0] sm:$0xff]
  %v191 = vld [vmem:[%s1 + $0x4f8] sm:$0xff]
  %v192 = vld [vmem:[%s1 + $0x500] sm:$0xff]
  %v193 = vld [vmem:[%s1 + $0x508] sm:$0xff]
  %v194 = vld [vmem:[%s1 + $0x510] sm:$0xff]
  %v195 = vld [vmem:[%s1 + $0x518] sm:$0xff]
  %v196 = vld [vmem:[%s1 + $0x520] sm:$0xff]
  %v197 = vld [vmem:[%s1 + $0x528] sm:$0xff]
  %v198 = vld [vmem:[%s1 + $0x530] sm:$0xff]
  %v199 = vld [vmem:[%s1 + $0x538] sm:$0xff]
  %v200 = vld [vmem:[%s1 + $0x540] sm:$0xff]
  %v201 = vld [vmem:[%s1 + $0x548] sm:$0xff]
  %v202 = vld [vmem:[%s1 + $0x550] sm:$0xff]
  %v203 = vld [vmem:[%s1 + $0x558] sm:$0xff]
  %v204 = vld [vmem:[%s1 + $0x560] sm:$0xff]
  %v205 = vld [vmem:[%s1 + $0x568] sm:$0xff]
  %v206 = vld [vmem:[%s1 + $0x570] sm:$0xff]
  %v207 = vld [vmem:[%s1 + $0x578] sm:$0xff]
  %v208 = vld [vmem:[%s1 + $0x580] sm:$0xff]
  %v209 = vld [vmem:[%s1 + $0x588] sm:$0xff]
  %v210 = vld [vmem:[%s1 + $0x590] sm:$0xff]
  %v211 = vld [vmem:[%s1 + $0x598] sm:$0xff]
  %v212 = vld [vmem:[%s1 + $0x5a0] sm:$0xff]
  %v213 = vld [vmem:[%s1 + $0x5a8] sm:$0xff]
  %v214 = vld [vmem:[%s1 + $0x5b0] sm:$0xff]
  %v215 = vld [vmem:[%s1 + $0x5b8] sm:$0xff]
  %v216 = vld [vmem:[%s1 + $0x5c0] sm:$0xff]
  %v217 = vld [vmem:[%s1 + $0x5c8] sm:$0xff]
  %v218 = vld [vmem:[%s1 + $0x5d0] sm:$0xff]
  %v219 = vld [vmem:[%s1 + $0x5d8] sm:$0xff]
  %v220 = vld [vmem:[%s1 + $0x5e0] sm:$0xff]
  %v221 = vld [vmem:[%s1 + $0x5e8] sm:$0xff]
  %v222 = vld [vmem:[%s1 + $0x5f0] sm:$0xff]
  %v223 = vld [vmem:[%s1 + $0x5f8] sm:$0xff]
  %v224 = vld [vmem:[%s1 + $0x600] sm:$0xff]
  %v225 = vld [vmem:[%s1 + $0x608] sm:$0xff]
  %v226 = vld [vmem:[%s1 + $0x610] sm:$0xff]
  %v227 = vld [vmem:[%s1 + $0x618] sm:$0xff]
  %v228 = vld [vmem:[%s1 + $0x620] sm:$0xff]
  %v229 = vld [vmem:[%s1 + $0x628] sm:$0xff]
  %v230 = vld [vmem:[%s1 + $0x630] sm:$0xff]
  %v231 = vld [vmem:[%s1 + $0x638] sm:$0xff]
  %v232 = vld [vmem:[%s1 + $0x640] sm:$0xff]
  %v233 = vld [vmem:[%s1 + $0x648] sm:$0xff]
  %v234 = vld [vmem:[%s1 + $0x650] sm:$0xff]
  %v235 = vld [vmem:[%s1 + $0x658] sm:$0xff]
  %v236 = vld [vmem:[%s1 + $0x660] sm:$0xff]
  %v237 = vld [vmem:[%s1 + $0x668] sm:$0xff]
  %v238 = vld [vmem:[%s1 + $0x670] sm:$0xff]
  %v239 = vld [vmem:[%s1 + $0x678] sm:$0xff]
  %v240 = vld [vmem:[%s1 + $0x680] sm:$0xff]
  %v241 = vld [vmem:[%s1 + $0x688] sm:$0xff]
  %v242 = vld [vmem:[%s1 + $0x690] sm:$0xff]
  %v243 = vld [vmem:[%s1 + $0x698] sm:$0xff]
  %v244 = vld [vmem:[%s1 + $0x6a0] sm:$0xff]
  %v245 = vld [vmem:[%s1 + $0x6a8] sm:$0xff]
  %v246 = vld [vmem:[%s1 + $0x6b0] sm:$0xff]
  %v247 = vld [vmem:[%s1 + $0x6b8] sm:$0xff]
  %v248 = vld [vmem:[%s1 + $0x6c0] sm:$0xff]
  %v249 = vld [vmem:[%s1 + $0x6c8] sm:$0xff]
  %v250 = vld [vmem:[%s1 + $0x6d0] sm:$0xff]
  %v251 = vld [vmem:[%s1 + $0x6d8] sm:$0xff]
  %v252 = vld [vmem:[%s1 + $0x6e0] sm:$0xff]
  %v253 = vld [vmem:[%s1 + $0x6e8] sm:$0xff]
  %v254 = vld [vmem:[%s1 + $0x6f0] sm:$0xff]
  %v255 = vld [vmem:[%s1 + $0x6f8] sm:$0xff]
  %v256 = vld [vmem:[%s1 + $0x700] sm:$0xff]
  %v257 = vld [vmem:[%s1 + $0x708] sm:$0xff]
  %v258 = vld [vmem:[%s1 + $0x710] sm:$0xff]
  %v259 = vld [vmem:[%s1 + $0x718] sm:$0xff]
  %v260 = vld [vmem:[%s1 + $0x720] sm:$0xff]
  %v261 = vld [vmem:[%s1 + $0x728] sm:$0xff]
  %v262 = vld [vmem:[%s1 + $0x730] sm:$0xff]
  %v263 = vld [vmem:[%s1 + $0x738] sm:$0xff]
  %v264 = vld [vmem:[%s1 + $0x740] sm:$0xff]
  %v265 = vld [vmem:[%s1 + $0x748] sm:$0xff]
  %v266 = vld [vmem:[%s1 + $0x750] sm:$0xff]
  %v267 = vld [vmem:[%s1 + $0x758] sm:$0xff]
  %v268 = vld [vmem:[%s1 + $0x760] sm:$0xff]
  %v269 = vld [vmem:[%s1 + $0x768] sm:$0xff]
  %v270 = vld [vmem:[%s1 + $0x770] sm:$0xff]
  %v271 = vld [vmem:[%s1 + $0x778] sm:$0xff]
  %v272 = vld [vmem:[%s1 + $0x780] sm:$0xff]
  %v273 = vld [vmem:[%s1 + $0x788] sm:$0xff]
  %v274 = vld [vmem:[%s1 + $0x790] sm:$0xff]
  %v275 = vld [vmem:[%s1 + $0x798] sm:$0xff]
  %v276 = vld [vmem:[%s1 + $0x7a0] sm:$0xff]
  %v277 = vld [vmem:[%s1 + $0x7a8] sm:$0xff]
  %v278 = vld [vmem:[%s1 + $0x7b0] sm:$0xff]
  %v279 = vld [vmem:[%s1 + $0x7b8] sm:$0xff]
  %v280 = vld [vmem:[%s1 + $0x7c0] sm:$0xff]
  %v281 = vld [vmem:[%s1 + $0x7c8] sm:$0xff]
  %v282 = vld [vmem:[%s1 + $0x7d0] sm:$0xff]
  %v283 = vld [vmem:[%s1 + $0x7d8] sm:$0xff]
  %v284 = vld [vmem:[%s1 + $0x7e0] sm:$0xff]
  %v285 = vld [vmem:[%s1 + $0x7e8] sm:$0xff]
  %v286 = vld [vmem:[%s1 + $0x7f0] sm:$0xff]
  %v287 = vld [vmem:[%s1 + $0x7f8] sm:$0xff]
  %v288 = vld [vmem:[%s1 + $0x800] sm:$0xff]
  %v289 = vld [vmem:[%s1 + $0x808] sm:$0xff]
  %v290 = vld [vmem:[%s1 + $0x810] sm:$0xff]
  %v291 = vld [vmem:[%s1 + $0x818] sm:$0xff]
  %v292 = vld [vmem:[%s1 + $0x820] sm:$0xff]
  %v293 = vld [vmem:[%s1 + $0x828] sm:$0xff]
  %v294 = vld [vmem:[%s1 + $0x830] sm:$0xff]
  %v295 = vld [vmem:[%s1 + $0x838] sm:$0xff]
  %v296 = vld [vmem:[%s1 + $0x840] sm:$0xff]
  %v297 = vld [vmem:[%s1 + $0x848] sm:$0xff]
  %v298 = vld [vmem:[%s1 + $0x850] sm:$0xff]
  %v299 = vld [vmem:[%s1 + $0x858] sm:$0xff]
  %v300 = vld [vmem:[%s1 + $0x860] sm:$0xff]
  %v301 = vld [vmem:[%s1 + $0x868] sm:$0xff]
  %v302 = vld [vmem:[%s1 + $0x870] sm:$0xff]
  %v303 = vld [vmem:[%s1 + $0x878] sm:$0xff]
  %v304 = vld [vmem:[%s1 + $0x880] sm:$0xff]
  %v305 = vld [vmem:[%s1 + $0x888] sm:$0xff]
  %v306 = vld [vmem:[%s1 + $0x890] sm:$0xff]
  %v307 = vld [vmem:[%s1 + $0x898] sm:$0xff]
  %v308 = vld [vmem:[%s1 + $0x8a0] sm:$0xff]
  %v309 = vld [vmem:[%s1 + $0x8a8] sm:$0xff]
  %v310 = vld [vmem:[%s1 + $0x8b0] sm:$0xff]
  %v311 = vld [vmem:[%s1 + $0x8b8] sm:$0xff]
  %v312 = vld [vmem:[%s1 + $0x8c0] sm:$0xff]
  %v313 = vld [vmem:[%s1 + $0x8c8] sm:$0xff]
  %v314 = vld [vmem:[%s1 + $0x8d0] sm:$0xff]
  %v315 = vld [vmem:[%s1 + $0x8d8] sm:$0xff]
  %v316 = vld [vmem:[%s1 + $0x8e0] sm:$0xff]
  %v317 = vld [vmem:[%s1 + $0x8e8] sm:$0xff]
  %v318 = vld [vmem:[%s1 + $0x8f0] sm:$0xff]
  %v319 = vld [vmem:[%s1 + $0x8f8] sm:$0xff]
  %v320 = vld [vmem:[%s2] sm:$0x1]
  %v322 = vlaneseq
  %v323 = vshrl.u32 %v322, 7
  %v324 = vsub.s32 0, %v323
  %v325 = vrot.slane %v320, %v324
  %327 = vmatprep.subr.mxu0 0.0
  %328 = vmatpush1.msra.mxu0 %v32
  %329 = vmatprep.subr.mxu0 0.0
  %330 = vmatpush1.msra.mxu0 %v33
  %331 = vmatprep.subr.mxu0 0.0
  %332 = vmatpush1.msra.mxu0 %v34
  %333 = vmatprep.subr.mxu0 0.0
  %334 = vmatpush1.msra.mxu0 %v35
  %335 = vmatprep.subr.mxu0 0.0
  %336 = vmatpush1.msra.mxu0 %v36
  %337 = vmatprep.subr.mxu0 0.0
  %338 = vmatpush1.msra.mxu0 %v37
  %339 = vmatprep.subr.mxu0 0.0
  %340 = vmatpush1.msra.mxu0 %v38
  %341 = vmatprep.subr.mxu0 0.0
  %342 = vmatpush1.msra.mxu0 %v39
  %343 = vmatprep.subr.mxu0 0.0
  %344 = vmatpush1.msra.mxu0 %v40
  %345 = vmatprep.subr.mxu0 0.0
  %346 = vmatpush1.msra.mxu0 %v41
  %347 = vmatprep.subr.mxu0 0.0
  %348 = vmatpush1.msra.mxu0 %v42
  %349 = vmatprep.subr.mxu0 0.0
  %350 = vmatpush1.msra.mxu0 %v43
  %351 = vmatprep.subr.mxu0 0.0
  %352 = vmatpush1.msra.mxu0 %v44
  %353 = vmatprep.subr.mxu0 0.0
  %354 = vmatpush1.msra.mxu0 %v45
  %355 = vmatprep.subr.mxu0 0.0
  %356 = vmatpush1.msra.mxu0 %v46
  %357 = vmatprep.subr.mxu0 0.0
  %358 = vmatpush1.msra.mxu0 %v47
  %359 = vmatprep.subr.mxu0 0.0
  %360 = vmatpush1.msra.mxu0 %v48
  %361 = vmatprep.subr.mxu0 0.0
  %362 = vmatpush1.msra.mxu0 %v49
  %363 = vmatprep.subr.mxu0 0.0
  %364 = vmatpush1.msra.mxu0 %v50
  %365 = vmatprep.subr.mxu0 0.0
  %366 = vmatpush1.msra.mxu0 %v51
  %367 = vmatprep.subr.mxu0 0.0
  %368 = vmatpush1.msra.mxu0 %v52
  %369 = vmatprep.subr.mxu0 0.0
  %370 = vmatpush1.msra.mxu0 %v53
  %371 = vmatprep.subr.mxu0 0.0
  %372 = vmatpush1.msra.mxu0 %v54
  %373 = vmatprep.subr.mxu0 0.0
  %374 = vmatpush1.msra.mxu0 %v55
  %375 = vmatprep.subr.mxu0 0.0
  %376 = vmatpush1.msra.mxu0 %v56
  %377 = vmatprep.subr.mxu0 0.0
  %378 = vmatpush1.msra.mxu0 %v57
  %379 = vmatprep.subr.mxu0 0.0
  %380 = vmatpush1.msra.mxu0 %v58
  %381 = vmatprep.subr.mxu0 0.0
  %382 = vmatpush1.msra.mxu0 %v59
  %383 = vmatprep.subr.mxu0 0.0
  %384 = vmatpush1.msra.mxu0 %v60
  %385 = vmatprep.subr.mxu0 0.0
  %386 = vmatpush1.msra.mxu0 %v61
  %387 = vmatprep.subr.mxu0 0.0
  %388 = vmatpush1.msra.mxu0 %v62
  %389 = vmatprep.subr.mxu0 0.0
  %390 = vmatpush1.msra.mxu0 %v63
  %391 = vmatprep.mubr.f32.mxu0 %v15
  %392 = vmatmul.mubr.f32.gmra.mrb[0].mxu0 %v14
  %v393 = vpop.f32.mrb[0].mxu0
  %v394 = vadd.f32 %v325, %v393
  %v395 = vpop.f32.mrb[0].mxu0
  %396 = vdwg.mxu0
  %397 = vmatprep.subr.mxu0 0.0
  %398 = vmatpush1.msra.mxu0 %v64
  %399 = vmatprep.subr.mxu0 0.0
  %400 = vmatpush1.msra.mxu0 %v65
  %401 = vmatprep.subr.mxu0 0.0
  %402 = vmatpush1.msra.mxu0 %v66
  %403 = vmatprep.subr.mxu0 0.0
  %404 = vmatpush1.msra.mxu0 %v67
  %405 = vmatprep.subr.mxu0 0.0
  %406 = vmatpush1.msra.mxu0 %v68
  %407 = vmatprep.subr.mxu0 0.0
  %408 = vmatpush1.msra.mxu0 %v69
  %409 = vmatprep.subr.mxu0 0.0
  %410 = vmatpush1.msra.mxu0 %v70
  %411 = vmatprep.subr.mxu0 0.0
  %412 = vmatpush1.msra.mxu0 %v71
  %413 = vmatprep.subr.mxu0 0.0
  %414 = vmatpush1.msra.mxu0 %v72
  %415 = vmatprep.subr.mxu0 0.0
  %416 = vmatpush1.msra.mxu0 %v73
  %417 = vmatprep.subr.mxu0 0.0
  %418 = vmatpush1.msra.mxu0 %v74
  %419 = vmatprep.subr.mxu0 0.0
  %420 = vmatpush1.msra.mxu0 %v75
  %421 = vmatprep.subr.mxu0 0.0
  %422 = vmatpush1.msra.mxu0 %v76
  %423 = vmatprep.subr.mxu0 0.0
  %424 = vmatpush1.msra.mxu0 %v77
  %425 = vmatprep.subr.mxu0 0.0
  %426 = vmatpush1.msra.mxu0 %v78
  %427 = vmatprep.subr.mxu0 0.0
  %428 = vmatpush1.msra.mxu0 %v79
  %429 = vmatprep.subr.mxu0 0.0
  %430 = vmatpush1.msra.mxu0 %v80
  %431 = vmatprep.subr.mxu0 0.0
  %432 = vmatpush1.msra.mxu0 %v81
  %433 = vmatprep.subr.mxu0 0.0
  %434 = vmatpush1.msra.mxu0 %v82
  %435 = vmatprep.subr.mxu0 0.0
  %436 = vmatpush1.msra.mxu0 %v83
  %437 = vmatprep.subr.mxu0 0.0
  %438 = vmatpush1.msra.mxu0 %v84
  %439 = vmatprep.subr.mxu0 0.0
  %440 = vmatpush1.msra.mxu0 %v85
  %441 = vmatprep.subr.mxu0 0.0
  %442 = vmatpush1.msra.mxu0 %v86
  %443 = vmatprep.subr.mxu0 0.0
  %444 = vmatpush1.msra.mxu0 %v87
  %445 = vmatprep.subr.mxu0 0.0
  %446 = vmatpush1.msra.mxu0 %v88
  %447 = vmatprep.subr.mxu0 0.0
  %448 = vmatpush1.msra.mxu0 %v89
  %449 = vmatprep.subr.mxu0 0.0
  %450 = vmatpush1.msra.mxu0 %v90
  %451 = vmatprep.subr.mxu0 0.0
  %452 = vmatpush1.msra.mxu0 %v91
  %453 = vmatprep.subr.mxu0 0.0
  %454 = vmatpush1.msra.mxu0 %v92
  %455 = vmatprep.subr.mxu0 0.0
  %456 = vmatpush1.msra.mxu0 %v93
  %457 = vmatprep.subr.mxu0 0.0
  %458 = vmatpush1.msra.mxu0 %v94
  %459 = vmatprep.subr.mxu0 0.0
  %460 = vmatpush1.msra.mxu0 %v95
  %461 = vmatprep.mubr.f32.mxu0 %v17
  %462 = vmatmul.mubr.f32.gmra.mrb[0].mxu0 %v16
  %v463 = vpop.f32.mrb[0].mxu0
  %v464 = vadd.f32 %v394, %v463
  %v465 = vpop.f32.mrb[0].mxu0
  %466 = vdwg.mxu0
  %467 = vmatprep.subr.mxu0 0.0
  %468 = vmatpush1.msra.mxu0 %v96
  %469 = vmatprep.subr.mxu0 0.0
  %470 = vmatpush1.msra.mxu0 %v97
  %471 = vmatprep.subr.mxu0 0.0
  %472 = vmatpush1.msra.mxu0 %v98
  %473 = vmatprep.subr.mxu0 0.0
  %474 = vmatpush1.msra.mxu0 %v99
  %475 = vmatprep.subr.mxu0 0.0
  %476 = vmatpush1.msra.mxu0 %v100
  %477 = vmatprep.subr.mxu0 0.0
  %478 = vmatpush1.msra.mxu0 %v101
  %479 = vmatprep.subr.mxu0 0.0
  %480 = vmatpush1.msra.mxu0 %v102
  %481 = vmatprep.subr.mxu0 0.0
  %482 = vmatpush1.msra.mxu0 %v103
  %483 = vmatprep.subr.mxu0 0.0
  %484 = vmatpush1.msra.mxu0 %v104
  %485 = vmatprep.subr.mxu0 0.0
  %486 = vmatpush1.msra.mxu0 %v105
  %487 = vmatprep.subr.mxu0 0.0
  %488 = vmatpush1.msra.mxu0 %v106
  %489 = vmatprep.subr.mxu0 0.0
  %490 = vmatpush1.msra.mxu0 %v107
  %491 = vmatprep.subr.mxu0 0.0
  %492 = vmatpush1.msra.mxu0 %v108
  %493 = vmatprep.subr.mxu0 0.0
  %494 = vmatpush1.msra.mxu0 %v109
  %495 = vmatprep.subr.mxu0 0.0
  %496 = vmatpush1.msra.mxu0 %v110
  %497 = vmatprep.subr.mxu0 0.0
  %498 = vmatpush1.msra.mxu0 %v111
  %499 = vmatprep.subr.mxu0 0.0
  %500 = vmatpush1.msra.mxu0 %v112
  %501 = vmatprep.subr.mxu0 0.0
  %502 = vmatpush1.msra.mxu0 %v113
  %503 = vmatprep.subr.mxu0 0.0
  %504 = vmatpush1.msra.mxu0 %v114
  %505 = vmatprep.subr.mxu0 0.0
  %506 = vmatpush1.msra.mxu0 %v115
  %507 = vmatprep.subr.mxu0 0.0
  %508 = vmatpush1.msra.mxu0 %v116
  %509 = vmatprep.subr.mxu0 0.0
  %510 = vmatpush1.msra.mxu0 %v117
  %511 = vmatprep.subr.mxu0 0.0
  %512 = vmatpush1.msra.mxu0 %v118
  %513 = vmatprep.subr.mxu0 0.0
  %514 = vmatpush1.msra.mxu0 %v119
  %515 = vmatprep.subr.mxu0 0.0
  %516 = vmatpush1.msra.mxu0 %v120
  %517 = vmatprep.subr.mxu0 0.0
  %518 = vmatpush1.msra.mxu0 %v121
  %519 = vmatprep.subr.mxu0 0.0
  %520 = vmatpush1.msra.mxu0 %v122
  %521 = vmatprep.subr.mxu0 0.0
  %522 = vmatpush1.msra.mxu0 %v123
  %523 = vmatprep.subr.mxu0 0.0
  %524 = vmatpush1.msra.mxu0 %v124
  %525 = vmatprep.subr.mxu0 0.0
  %526 = vmatpush1.msra.mxu0 %v125
  %527 = vmatprep.subr.mxu0 0.0
  %528 = vmatpush1.msra.mxu0 %v126
  %529 = vmatprep.subr.mxu0 0.0
  %530 = vmatpush1.msra.mxu0 %v127
  %531 = vmatprep.mubr.f32.mxu0 %v19
  %532 = vmatmul.mubr.f32.gmra.mrb[0].mxu0 %v18
  %v533 = vpop.f32.mrb[0].mxu0
  %v534 = vadd.f32 %v464, %v533
  %v535 = vpop.f32.mrb[0].mxu0
  %536 = vdwg.mxu0
  %537 = vmatprep.subr.mxu0 0.0
  %538 = vmatpush1.msra.mxu0 %v128
  %539 = vmatprep.subr.mxu0 0.0
  %540 = vmatpush1.msra.mxu0 %v129
  %541 = vmatprep.subr.mxu0 0.0
  %542 = vmatpush1.msra.mxu0 %v130
  %543 = vmatprep.subr.mxu0 0.0
  %544 = vmatpush1.msra.mxu0 %v131
  %545 = vmatprep.subr.mxu0 0.0
  %546 = vmatpush1.msra.mxu0 %v132
  %547 = vmatprep.subr.mxu0 0.0
  %548 = vmatpush1.msra.mxu0 %v133
  %549 = vmatprep.subr.mxu0 0.0
  %550 = vmatpush1.msra.mxu0 %v134
  %551 = vmatprep.subr.mxu0 0.0
  %552 = vmatpush1.msra.mxu0 %v135
  %553 = vmatprep.subr.mxu0 0.0
  %554 = vmatpush1.msra.mxu0 %v136
  %555 = vmatprep.subr.mxu0 0.0
  %556 = vmatpush1.msra.mxu0 %v137
  %557 = vmatprep.subr.mxu0 0.0
  %558 = vmatpush1.msra.mxu0 %v138
  %559 = vmatprep.subr.mxu0 0.0
  %560 = vmatpush1.msra.mxu0 %v139
  %561 = vmatprep.subr.mxu0 0.0
  %562 = vmatpush1.msra.mxu0 %v140
  %563 = vmatprep.subr.mxu0 0.0
  %564 = vmatpush1.msra.mxu0 %v141
  %565 = vmatprep.subr.mxu0 0.0
  %566 = vmatpush1.msra.mxu0 %v142
  %567 = vmatprep.subr.mxu0 0.0
  %568 = vmatpush1.msra.mxu0 %v143
  %569 = vmatprep.subr.mxu0 0.0
  %570 = vmatpush1.msra.mxu0 %v144
  %571 = vmatprep.subr.mxu0 0.0
  %572 = vmatpush1.msra.mxu0 %v145
  %573 = vmatprep.subr.mxu0 0.0
  %574 = vmatpush1.msra.mxu0 %v146
  %575 = vmatprep.subr.mxu0 0.0
  %576 = vmatpush1.msra.mxu0 %v147
  %577 = vmatprep.subr.mxu0 0.0
  %578 = vmatpush1.msra.mxu0 %v148
  %579 = vmatprep.subr.mxu0 0.0
  %580 = vmatpush1.msra.mxu0 %v149
  %581 = vmatprep.subr.mxu0 0.0
  %582 = vmatpush1.msra.mxu0 %v150
  %583 = vmatprep.subr.mxu0 0.0
  %584 = vmatpush1.msra.mxu0 %v151
  %585 = vmatprep.subr.mxu0 0.0
  %586 = vmatpush1.msra.mxu0 %v152
  %587 = vmatprep.subr.mxu0 0.0
  %588 = vmatpush1.msra.mxu0 %v153
  %589 = vmatprep.subr.mxu0 0.0
  %590 = vmatpush1.msra.mxu0 %v154
  %591 = vmatprep.subr.mxu0 0.0
  %592 = vmatpush1.msra.mxu0 %v155
  %593 = vmatprep.subr.mxu0 0.0
  %594 = vmatpush1.msra.mxu0 %v156
  %595 = vmatprep.subr.mxu0 0.0
  %596 = vmatpush1.msra.mxu0 %v157
  %597 = vmatprep.subr.mxu0 0.0
  %598 = vmatpush1.msra.mxu0 %v158
  %599 = vmatprep.subr.mxu0 0.0
  %600 = vmatpush1.msra.mxu0 %v159
  %601 = vmatprep.mubr.f32.mxu0 %v21
  %602 = vmatmul.mubr.f32.gmra.mrb[0].mxu0 %v20
  %v603 = vpop.f32.mrb[0].mxu0
  %v604 = vadd.f32 %v534, %v603
  %v605 = vpop.f32.mrb[0].mxu0
  %606 = vdwg.mxu0
  %607 = vmatprep.subr.mxu0 0.0
  %608 = vmatpush1.msra.mxu0 %v160
  %609 = vmatprep.subr.mxu0 0.0
  %610 = vmatpush1.msra.mxu0 %v161
  %611 = vmatprep.subr.mxu0 0.0
  %612 = vmatpush1.msra.mxu0 %v162
  %613 = vmatprep.subr.mxu0 0.0
  %614 = vmatpush1.msra.mxu0 %v163
  %615 = vmatprep.subr.mxu0 0.0
  %616 = vmatpush1.msra.mxu0 %v164
  %617 = vmatprep.subr.mxu0 0.0
  %618 = vmatpush1.msra.mxu0 %v165
  %619 = vmatprep.subr.mxu0 0.0
  %620 = vmatpush1.msra.mxu0 %v166
  %621 = vmatprep.subr.mxu0 0.0
  %622 = vmatpush1.msra.mxu0 %v167
  %623 = vmatprep.subr.mxu0 0.0
  %624 = vmatpush1.msra.mxu0 %v168
  %625 = vmatprep.subr.mxu0 0.0
  %626 = vmatpush1.msra.mxu0 %v169
  %627 = vmatprep.subr.mxu0 0.0
  %628 = vmatpush1.msra.mxu0 %v170
  %629 = vmatprep.subr.mxu0 0.0
  %630 = vmatpush1.msra.mxu0 %v171
  %631 = vmatprep.subr.mxu0 0.0
  %632 = vmatpush1.msra.mxu0 %v172
  %633 = vmatprep.subr.mxu0 0.0
  %634 = vmatpush1.msra.mxu0 %v173
  %635 = vmatprep.subr.mxu0 0.0
  %636 = vmatpush1.msra.mxu0 %v174
  %637 = vmatprep.subr.mxu0 0.0
  %638 = vmatpush1.msra.mxu0 %v175
  %639 = vmatprep.subr.mxu0 0.0
  %640 = vmatpush1.msra.mxu0 %v176
  %641 = vmatprep.subr.mxu0 0.0
  %642 = vmatpush1.msra.mxu0 %v177
  %643 = vmatprep.subr.mxu0 0.0
  %644 = vmatpush1.msra.mxu0 %v178
  %645 = vmatprep.subr.mxu0 0.0
  %646 = vmatpush1.msra.mxu0 %v179
  %647 = vmatprep.subr.mxu0 0.0
  %648 = vmatpush1.msra.mxu0 %v180
  %649 = vmatprep.subr.mxu0 0.0
  %650 = vmatpush1.msra.mxu0 %v181
  %651 = vmatprep.subr.mxu0 0.0
  %652 = vmatpush1.msra.mxu0 %v182
  %653 = vmatprep.subr.mxu0 0.0
  %654 = vmatpush1.msra.mxu0 %v183
  %655 = vmatprep.subr.mxu0 0.0
  %656 = vmatpush1.msra.mxu0 %v184
  %657 = vmatprep.subr.mxu0 0.0
  %658 = vmatpush1.msra.mxu0 %v185
  %659 = vmatprep.subr.mxu0 0.0
  %660 = vmatpush1.msra.mxu0 %v186
  %661 = vmatprep.subr.mxu0 0.0
  %662 = vmatpush1.msra.mxu0 %v187
  %663 = vmatprep.subr.mxu0 0.0
  %664 = vmatpush1.msra.mxu0 %v188
  %665 = vmatprep.subr.mxu0 0.0
  %666 = vmatpush1.msra.mxu0 %v189
  %667 = vmatprep.subr.mxu0 0.0
  %668 = vmatpush1.msra.mxu0 %v190
  %669 = vmatprep.subr.mxu0 0.0
  %670 = vmatpush1.msra.mxu0 %v191
  %671 = vmatprep.mubr.f32.mxu0 %v23
  %672 = vmatmul.mubr.f32.gmra.mrb[0].mxu0 %v22
  %v673 = vpop.f32.mrb[0].mxu0
  %v674 = vadd.f32 %v604, %v673
  %v675 = vpop.f32.mrb[0].mxu0
  %676 = vdwg.mxu0
  %677 = vmatprep.subr.mxu0 0.0
  %678 = vmatpush1.msra.mxu0 %v192
  %679 = vmatprep.subr.mxu0 0.0
  %680 = vmatpush1.msra.mxu0 %v193
  %681 = vmatprep.subr.mxu0 0.0
  %682 = vmatpush1.msra.mxu0 %v194
  %683 = vmatprep.subr.mxu0 0.0
  %684 = vmatpush1.msra.mxu0 %v195
  %685 = vmatprep.subr.mxu0 0.0
  %686 = vmatpush1.msra.mxu0 %v196
  %687 = vmatprep.subr.mxu0 0.0
  %688 = vmatpush1.msra.mxu0 %v197
  %689 = vmatprep.subr.mxu0 0.0
  %690 = vmatpush1.msra.mxu0 %v198
  %691 = vmatprep.subr.mxu0 0.0
  %692 = vmatpush1.msra.mxu0 %v199
  %693 = vmatprep.subr.mxu0 0.0
  %694 = vmatpush1.msra.mxu0 %v200
  %695 = vmatprep.subr.mxu0 0.0
  %696 = vmatpush1.msra.mxu0 %v201
  %697 = vmatprep.subr.mxu0 0.0
  %698 = vmatpush1.msra.mxu0 %v202
  %699 = vmatprep.subr.mxu0 0.0
  %700 = vmatpush1.msra.mxu0 %v203
  %701 = vmatprep.subr.mxu0 0.0
  %702 = vmatpush1.msra.mxu0 %v204
  %703 = vmatprep.subr.mxu0 0.0
  %704 = vmatpush1.msra.mxu0 %v205
  %705 = vmatprep.subr.mxu0 0.0
  %706 = vmatpush1.msra.mxu0 %v206
  %707 = vmatprep.subr.mxu0 0.0
  %708 = vmatpush1.msra.mxu0 %v207
  %709 = vmatprep.subr.mxu0 0.0
  %710 = vmatpush1.msra.mxu0 %v208
  %711 = vmatprep.subr.mxu0 0.0
  %712 = vmatpush1.msra.mxu0 %v209
  %713 = vmatprep.subr.mxu0 0.0
  %714 = vmatpush1.msra.mxu0 %v210
  %715 = vmatprep.subr.mxu0 0.0
  %716 = vmatpush1.msra.mxu0 %v211
  %717 = vmatprep.subr.mxu0 0.0
  %718 = vmatpush1.msra.mxu0 %v212
  %719 = vmatprep.subr.mxu0 0.0
  %720 = vmatpush1.msra.mxu0 %v213
  %721 = vmatprep.subr.mxu0 0.0
  %722 = vmatpush1.msra.mxu0 %v214
  %723 = vmatprep.subr.mxu0 0.0
  %724 = vmatpush1.msra.mxu0 %v215
  %725 = vmatprep.subr.mxu0 0.0
  %726 = vmatpush1.msra.mxu0 %v216
  %727 = vmatprep.subr.mxu0 0.0
  %728 = vmatpush1.msra.mxu0 %v217
  %729 = vmatprep.subr.mxu0 0.0
  %730 = vmatpush1.msra.mxu0 %v218
  %731 = vmatprep.subr.mxu0 0.0
  %732 = vmatpush1.msra.mxu0 %v219
  %733 = vmatprep.subr.mxu0 0.0
  %734 = vmatpush1.msra.mxu0 %v220
  %735 = vmatprep.subr.mxu0 0.0
  %736 = vmatpush1.msra.mxu0 %v221
  %737 = vmatprep.subr.mxu0 0.0
  %738 = vmatpush1.msra.mxu0 %v222
  %739 = vmatprep.subr.mxu0 0.0
  %740 = vmatpush1.msra.mxu0 %v223
  %741 = vmatprep.mubr.f32.mxu0 %v25
  %742 = vmatmul.mubr.f32.gmra.mrb[0].mxu0 %v24
  %v743 = vpop.f32.mrb[0].mxu0
  %v744 = vadd.f32 %v674, %v743
  %v745 = vpop.f32.mrb[0].mxu0
  %746 = vdwg.mxu0
  %747 = vmatprep.subr.mxu0 0.0
  %748 = vmatpush1.msra.mxu0 %v224
  %749 = vmatprep.subr.mxu0 0.0
  %750 = vmatpush1.msra.mxu0 %v225
  %751 = vmatprep.subr.mxu0 0.0
  %752 = vmatpush1.msra.mxu0 %v226
  %753 = vmatprep.subr.mxu0 0.0
  %754 = vmatpush1.msra.mxu0 %v227
  %755 = vmatprep.subr.mxu0 0.0
  %756 = vmatpush1.msra.mxu0 %v228
  %757 = vmatprep.subr.mxu0 0.0
  %758 = vmatpush1.msra.mxu0 %v229
  %759 = vmatprep.subr.mxu0 0.0
  %760 = vmatpush1.msra.mxu0 %v230
  %761 = vmatprep.subr.mxu0 0.0
  %762 = vmatpush1.msra.mxu0 %v231
  %763 = vmatprep.subr.mxu0 0.0
  %764 = vmatpush1.msra.mxu0 %v232
  %765 = vmatprep.subr.mxu0 0.0
  %766 = vmatpush1.msra.mxu0 %v233
  %767 = vmatprep.subr.mxu0 0.0
  %768 = vmatpush1.msra.mxu0 %v234
  %769 = vmatprep.subr.mxu0 0.0
  %770 = vmatpush1.msra.mxu0 %v235
  %771 = vmatprep.subr.mxu0 0.0
  %772 = vmatpush1.msra.mxu0 %v236
  %773 = vmatprep.subr.mxu0 0.0
  %774 = vmatpush1.msra.mxu0 %v237
  %775 = vmatprep.subr.mxu0 0.0
  %776 = vmatpush1.msra.mxu0 %v238
  %777 = vmatprep.subr.mxu0 0.0
  %778 = vmatpush1.msra.mxu0 %v239
  %779 = vmatprep.subr.mxu0 0.0
  %780 = vmatpush1.msra.mxu0 %v240
  %781 = vmatprep.subr.mxu0 0.0
  %782 = vmatpush1.msra.mxu0 %v241
  %783 = vmatprep.subr.mxu0 0.0
  %784 = vmatpush1.msra.mxu0 %v242
  %785 = vmatprep.subr.mxu0 0.0
  %786 = vmatpush1.msra.mxu0 %v243
  %787 = vmatprep.subr.mxu0 0.0
  %788 = vmatpush1.msra.mxu0 %v244
  %789 = vmatprep.subr.mxu0 0.0
  %790 = vmatpush1.msra.mxu0 %v245
  %791 = vmatprep.subr.mxu0 0.0
  %792 = vmatpush1.msra.mxu0 %v246
  %793 = vmatprep.subr.mxu0 0.0
  %794 = vmatpush1.msra.mxu0 %v247
  %795 = vmatprep.subr.mxu0 0.0
  %796 = vmatpush1.msra.mxu0 %v248
  %797 = vmatprep.subr.mxu0 0.0
  %798 = vmatpush1.msra.mxu0 %v249
  %799 = vmatprep.subr.mxu0 0.0
  %800 = vmatpush1.msra.mxu0 %v250
  %801 = vmatprep.subr.mxu0 0.0
  %802 = vmatpush1.msra.mxu0 %v251
  %803 = vmatprep.subr.mxu0 0.0
  %804 = vmatpush1.msra.mxu0 %v252
  %805 = vmatprep.subr.mxu0 0.0
  %806 = vmatpush1.msra.mxu0 %v253
  %807 = vmatprep.subr.mxu0 0.0
  %808 = vmatpush1.msra.mxu0 %v254
  %809 = vmatprep.subr.mxu0 0.0
  %810 = vmatpush1.msra.mxu0 %v255
  %811 = vmatprep.mubr.f32.mxu0 %v27
  %812 = vmatmul.mubr.f32.gmra.mrb[0].mxu0 %v26
  %v813 = vpop.f32.mrb[0].mxu0
  %v814 = vadd.f32 %v744, %v813
  %v815 = vpop.f32.mrb[0].mxu0
  %816 = vdwg.mxu0
  %817 = vmatprep.subr.mxu0 0.0
  %818 = vmatpush1.msra.mxu0 %v256
  %819 = vmatprep.subr.mxu0 0.0
  %820 = vmatpush1.msra.mxu0 %v257
  %821 = vmatprep.subr.mxu0 0.0
  %822 = vmatpush1.msra.mxu0 %v258
  %823 = vmatprep.subr.mxu0 0.0
  %824 = vmatpush1.msra.mxu0 %v259
  %825 = vmatprep.subr.mxu0 0.0
  %826 = vmatpush1.msra.mxu0 %v260
  %827 = vmatprep.subr.mxu0 0.0
  %828 = vmatpush1.msra.mxu0 %v261
  %829 = vmatprep.subr.mxu0 0.0
  %830 = vmatpush1.msra.mxu0 %v262
  %831 = vmatprep.subr.mxu0 0.0
  %832 = vmatpush1.msra.mxu0 %v263
  %833 = vmatprep.subr.mxu0 0.0
  %834 = vmatpush1.msra.mxu0 %v264
  %835 = vmatprep.subr.mxu0 0.0
  %836 = vmatpush1.msra.mxu0 %v265
  %837 = vmatprep.subr.mxu0 0.0
  %838 = vmatpush1.msra.mxu0 %v266
  %839 = vmatprep.subr.mxu0 0.0
  %840 = vmatpush1.msra.mxu0 %v267
  %841 = vmatprep.subr.mxu0 0.0
  %842 = vmatpush1.msra.mxu0 %v268
  %843 = vmatprep.subr.mxu0 0.0
  %844 = vmatpush1.msra.mxu0 %v269
  %845 = vmatprep.subr.mxu0 0.0
  %846 = vmatpush1.msra.mxu0 %v270
  %847 = vmatprep.subr.mxu0 0.0
  %848 = vmatpush1.msra.mxu0 %v271
  %849 = vmatprep.subr.mxu0 0.0
  %850 = vmatpush1.msra.mxu0 %v272
  %851 = vmatprep.subr.mxu0 0.0
  %852 = vmatpush1.msra.mxu0 %v273
  %853 = vmatprep.subr.mxu0 0.0
  %854 = vmatpush1.msra.mxu0 %v274
  %855 = vmatprep.subr.mxu0 0.0
  %856 = vmatpush1.msra.mxu0 %v275
  %857 = vmatprep.subr.mxu0 0.0
  %858 = vmatpush1.msra.mxu0 %v276
  %859 = vmatprep.subr.mxu0 0.0
  %860 = vmatpush1.msra.mxu0 %v277
  %861 = vmatprep.subr.mxu0 0.0
  %862 = vmatpush1.msra.mxu0 %v278
  %863 = vmatprep.subr.mxu0 0.0
  %864 = vmatpush1.msra.mxu0 %v279
  %865 = vmatprep.subr.mxu0 0.0
  %866 = vmatpush1.msra.mxu0 %v280
  %867 = vmatprep.subr.mxu0 0.0
  %868 = vmatpush1.msra.mxu0 %v281
  %869 = vmatprep.subr.mxu0 0.0
  %870 = vmatpush1.msra.mxu0 %v282
  %871 = vmatprep.subr.mxu0 0.0
  %872 = vmatpush1.msra.mxu0 %v283
  %873 = vmatprep.subr.mxu0 0.0
  %874 = vmatpush1.msra.mxu0 %v284
  %875 = vmatprep.subr.mxu0 0.0
  %876 = vmatpush1.msra.mxu0 %v285
  %877 = vmatprep.subr.mxu0 0.0
  %878 = vmatpush1.msra.mxu0 %v286
  %879 = vmatprep.subr.mxu0 0.0
  %880 = vmatpush1.msra.mxu0 %v287
  %881 = vmatprep.mubr.f32.mxu0 %v29
  %882 = vmatmul.mubr.f32.gmra.mrb[0].mxu0 %v28
  %v883 = vpop.f32.mrb[0].mxu0
  %v884 = vadd.f32 %v814, %v883
  %v885 = vpop.f32.mrb[0].mxu0
  %886 = vdwg.mxu0
  %887 = vmatprep.subr.mxu0 0.0
  %888 = vmatpush1.msra.mxu0 %v288
  %889 = vmatprep.subr.mxu0 0.0
  %890 = vmatpush1.msra.mxu0 %v289
  %891 = vmatprep.subr.mxu0 0.0
  %892 = vmatpush1.msra.mxu0 %v290
  %893 = vmatprep.subr.mxu0 0.0
  %894 = vmatpush1.msra.mxu0 %v291
  %895 = vmatprep.subr.mxu0 0.0
  %896 = vmatpush1.msra.mxu0 %v292
  %897 = vmatprep.subr.mxu0 0.0
  %898 = vmatpush1.msra.mxu0 %v293
  %899 = vmatprep.subr.mxu0 0.0
  %900 = vmatpush1.msra.mxu0 %v294
  %901 = vmatprep.subr.mxu0 0.0
  %902 = vmatpush1.msra.mxu0 %v295
  %903 = vmatprep.subr.mxu0 0.0
  %904 = vmatpush1.msra.mxu0 %v296
  %905 = vmatprep.subr.mxu0 0.0
  %906 = vmatpush1.msra.mxu0 %v297
  %907 = vmatprep.subr.mxu0 0.0
  %908 = vmatpush1.msra.mxu0 %v298
  %909 = vmatprep.subr.mxu0 0.0
  %910 = vmatpush1.msra.mxu0 %v299
  %911 = vmatprep.subr.mxu0 0.0
  %912 = vmatpush1.msra.mxu0 %v300
  %913 = vmatprep.subr.mxu0 0.0
  %914 = vmatpush1.msra.mxu0 %v301
  %915 = vmatprep.subr.mxu0 0.0
  %916 = vmatpush1.msra.mxu0 %v302
  %917 = vmatprep.subr.mxu0 0.0
  %918 = vmatpush1.msra.mxu0 %v303
  %919 = vmatprep.subr.mxu0 0.0
  %920 = vmatpush1.msra.mxu0 %v304
  %921 = vmatprep.subr.mxu0 0.0
  %922 = vmatpush1.msra.mxu0 %v305
  %923 = vmatprep.subr.mxu0 0.0
  %924 = vmatpush1.msra.mxu0 %v306
  %925 = vmatprep.subr.mxu0 0.0
  %926 = vmatpush1.msra.mxu0 %v307
  %927 = vmatprep.subr.mxu0 0.0
  %928 = vmatpush1.msra.mxu0 %v308
  %929 = vmatprep.subr.mxu0 0.0
  %930 = vmatpush1.msra.mxu0 %v309
  %931 = vmatprep.subr.mxu0 0.0
  %932 = vmatpush1.msra.mxu0 %v310
  %933 = vmatprep.subr.mxu0 0.0
  %934 = vmatpush1.msra.mxu0 %v311
  %935 = vmatprep.subr.mxu0 0.0
  %936 = vmatpush1.msra.mxu0 %v312
  %937 = vmatprep.subr.mxu0 0.0
  %938 = vmatpush1.msra.mxu0 %v313
  %939 = vmatprep.subr.mxu0 0.0
  %940 = vmatpush1.msra.mxu0 %v314
  %941 = vmatprep.subr.mxu0 0.0
  %942 = vmatpush1.msra.mxu0 %v315
  %943 = vmatprep.subr.mxu0 0.0
  %944 = vmatpush1.msra.mxu0 %v316
  %945 = vmatprep.subr.mxu0 0.0
  %946 = vmatpush1.msra.mxu0 %v317
  %947 = vmatprep.subr.mxu0 0.0
  %948 = vmatpush1.msra.mxu0 %v318
  %949 = vmatprep.subr.mxu0 0.0
  %950 = vmatpush1.msra.mxu0 %v319
  %951 = vmatprep.mubr.f32.mxu0 %v31
  %952 = vmatmul.mubr.f32.gmra.mrb[0].mxu0 %v30
  %v953 = vpop.f32.mrb[0].mxu0
  %v954 = vadd.f32 %v884, %v953
  %v955 = vpop.f32.mrb[0].mxu0
  %956 = vdwg.mxu0
  %v957 = vmax.f32 %v954, 0.0
  %vm958 = vcmask 261120
  %959 = vst.msk [vmem:[%s3] sm:$0xff] %vm958, %v957
  // Predicated region
  $region14: #{model_forward.13} parent=0 // pred_check
    _
  $region15: #{model_forward.13} parent=0 // pred_check_branch
    %961 = sbr.rel (0) target = $region17
  $region16: #{model_forward.13} parent=0 // pred_region
    _
  $region17: #{model_forward.13} parent=0 // pred_fallthru
    _
  // Predicated region
  $region18: #{model_forward.13} parent=0 // pred_check
    _
  $region19: #{model_forward.13} parent=0 // pred_check_branch
    %963 = sbr.rel (0) target = $region21
  $region20: #{model_forward.13} parent=0 // pred_region
    _
  $region21: #{model_forward.13} parent=0 // pred_fallthru
    _

// kernel: model_forward.14
$region0: #{model_forward.14}
  #allocation0 [shape = 'u32[]', space=smem, size = 0x4, offset = 0x4, fixed_abs, tag = 'smem constant byte address 0x4 - core index']
  #allocation1 [shape = 'u32[144,128]{1,0:T(1,128)}', space=vmem, size = 0x12000, scoped, tag = 'internal scratch']
  %s0 = inlined_call_operand.vmem [shape: f32[8,384], index: 0, kind: input, shape index: {}]
  %s1 = inlined_call_operand.vmem [shape: f32[384,32], index: 1, kind: input, shape index: {}]
  %s2 = inlined_call_operand.vmem [shape: f32[1,32], index: 2, kind: input, shape index: {}]
  %s3 = inlined_call_operand.vmem [shape: f32[8,32], index: 3, kind: output, shape index: {}]
  %s4 = sld [smem:[#allocation0]]
  $region22: #{model_forward.14} parent=0
    _
  %s6 = ssub.s32 1, %s4
  %s7 = scalar_select 0, %s6, %s4
  // Predicated region
  $region2: #{model_forward.14} parent=0 // pred_check
    _
  $region3: #{model_forward.14} parent=0 // pred_check_branch
    %9 = sbr.rel (0) target = $region5
  $region4: #{model_forward.14} parent=0 // pred_region
    _
  $region5: #{model_forward.14} parent=0 // pred_fallthru
    _
  // Predicated region
  $region6: #{model_forward.14} parent=0 // pred_check
    _
  $region7: #{model_forward.14} parent=0 // pred_check_branch
    %11 = sbr.rel (0) target = $region9
  $region8: #{model_forward.14} parent=0 // pred_region
    _
  $region9: #{model_forward.14} parent=0 // pred_fallthru
    _
  // Predicated region
  $region10: #{model_forward.14} parent=0 // pred_check
    _
  $region11: #{model_forward.14} parent=0 // pred_check_branch
    %13 = sbr.rel (0) target = $region13
  $region12: #{model_forward.14} parent=0 // pred_region
    _
  $region13: #{model_forward.14} parent=0 // pred_fallthru
    _
  %v14 = vld [vmem:[%s0] sm:$0xff]
  %v15 = vld [vmem:[%s0 + $0x8] sm:$0xff]
  %v16 = vld [vmem:[%s0 + $0x10] sm:$0xff]
  %v17 = vld [vmem:[%s1] sm:$0xff]
  %v18 = vld [vmem:[%s1 + $0x8] sm:$0xff]
  %v19 = vld [vmem:[%s1 + $0x10] sm:$0xff]
  %v20 = vld [vmem:[%s1 + $0x18] sm:$0xff]
  %v21 = vld [vmem:[%s1 + $0x20] sm:$0xff]
  %v22 = vld [vmem:[%s1 + $0x28] sm:$0xff]
  %v23 = vld [vmem:[%s1 + $0x30] sm:$0xff]
  %v24 = vld [vmem:[%s1 + $0x38] sm:$0xff]
  %v25 = vld [vmem:[%s1 + $0x40] sm:$0xff]
  %v26 = vld [vmem:[%s1 + $0x48] sm:$0xff]
  %v27 = vld [vmem:[%s1 + $0x50] sm:$0xff]
  %v28 = vld [vmem:[%s1 + $0x58] sm:$0xff]
  %v29 = vld [vmem:[%s1 + $0x60] sm:$0xff]
  %v30 = vld [vmem:[%s1 + $0x68] sm:$0xff]
  %v31 = vld [vmem:[%s1 + $0x70] sm:$0xff]
  %v32 = vld [vmem:[%s1 + $0x78] sm:$0xff]
  %v33 = vld [vmem:[%s1 + $0x80] sm:$0xff]
  %v34 = vld [vmem:[%s1 + $0x88] sm:$0xff]
  %v35 = vld [vmem:[%s1 + $0x90] sm:$0xff]
  %v36 = vld [vmem:[%s1 + $0x98] sm:$0xff]
  %v37 = vld [vmem:[%s1 + $0xa0] sm:$0xff]
  %v38 = vld [vmem:[%s1 + $0xa8] sm:$0xff]
  %v39 = vld [vmem:[%s1 + $0xb0] sm:$0xff]
  %v40 = vld [vmem:[%s1 + $0xb8] sm:$0xff]
  %v41 = vld [vmem:[%s1 + $0xc0] sm:$0xff]
  %v42 = vld [vmem:[%s1 + $0xc8] sm:$0xff]
  %v43 = vld [vmem:[%s1 + $0xd0] sm:$0xff]
  %v44 = vld [vmem:[%s1 + $0xd8] sm:$0xff]
  %v45 = vld [vmem:[%s1 + $0xe0] sm:$0xff]
  %v46 = vld [vmem:[%s1 + $0xe8] sm:$0xff]
  %v47 = vld [vmem:[%s1 + $0xf0] sm:$0xff]
  %v48 = vld [vmem:[%s1 + $0xf8] sm:$0xff]
  %v49 = vld [vmem:[%s1 + $0x100] sm:$0xff]
  %v50 = vld [vmem:[%s1 + $0x108] sm:$0xff]
  %v51 = vld [vmem:[%s1 + $0x110] sm:$0xff]
  %v52 = vld [vmem:[%s1 + $0x118] sm:$0xff]
  %v53 = vld [vmem:[%s1 + $0x120] sm:$0xff]
  %v54 = vld [vmem:[%s1 + $0x128] sm:$0xff]
  %v55 = vld [vmem:[%s1 + $0x130] sm:$0xff]
  %v56 = vld [vmem:[%s1 + $0x138] sm:$0xff]
  %v57 = vld [vmem:[%s1 + $0x140] sm:$0xff]
  %v58 = vld [vmem:[%s1 + $0x148] sm:$0xff]
  %v59 = vld [vmem:[%s1 + $0x150] sm:$0xff]
  %v60 = vld [vmem:[%s1 + $0x158] sm:$0xff]
  %v61 = vld [vmem:[%s1 + $0x160] sm:$0xff]
  %v62 = vld [vmem:[%s1 + $0x168] sm:$0xff]
  %v63 = vld [vmem:[%s1 + $0x170] sm:$0xff]
  %v64 = vld [vmem:[%s1 + $0x178] sm:$0xff]
  %v65 = vld [vmem:[%s2] sm:$0x1]
  %v67 = vlaneseq
  %v68 = vshrl.u32 %v67, 7
  %v69 = vsub.s32 0, %v68
  %v70 = vrot.slane %v65, %v69
  %72 = vmatprep.subr.mxu0 0.0
  %73 = vmatpush1.msra.mxu0 %v17
  %74 = vmatprep.subr.mxu0 0.0
  %75 = vmatpush1.msra.mxu0 %v18
  %76 = vmatprep.subr.mxu0 0.0
  %77 = vmatpush1.msra.mxu0 %v19
  %78 = vmatprep.subr.mxu0 0.0
  %79 = vmatpush1.msra.mxu0 %v20
  %80 = vmatprep.subr.mxu0 0.0
  %81 = vmatpush1.msra.mxu0 %v21
  %82 = vmatprep.subr.mxu0 0.0
  %83 = vmatpush1.msra.mxu0 %v22
  %84 = vmatprep.subr.mxu0 0.0
  %85 = vmatpush1.msra.mxu0 %v23
  %86 = vmatprep.subr.mxu0 0.0
  %87 = vmatpush1.msra.mxu0 %v24
  %88 = vmatprep.subr.mxu0 0.0
  %89 = vmatpush1.msra.mxu0 %v25
  %90 = vmatprep.subr.mxu0 0.0
  %91 = vmatpush1.msra.mxu0 %v26
  %92 = vmatprep.subr.mxu0 0.0
  %93 = vmatpush1.msra.mxu0 %v27
  %94 = vmatprep.subr.mxu0 0.0
  %95 = vmatpush1.msra.mxu0 %v28
  %96 = vmatprep.subr.mxu0 0.0
  %97 = vmatpush1.msra.mxu0 %v29
  %98 = vmatprep.subr.mxu0 0.0
  %99 = vmatpush1.msra.mxu0 %v30
  %100 = vmatprep.subr.mxu0 0.0
  %101 = vmatpush1.msra.mxu0 %v31
  %102 = vmatprep.subr.mxu0 0.0
  %103 = vmatpush1.msra.mxu0 %v32
  %104 = vmatprep.subr.mxu0 0.0
  %105 = vmatpush1.msra.mxu0 %v33
  %106 = vmatprep.subr.mxu0 0.0
  %107 = vmatpush1.msra.mxu0 %v34
  %108 = vmatprep.subr.mxu0 0.0
  %109 = vmatpush1.msra.mxu0 %v35
  %110 = vmatprep.subr.mxu0 0.0
  %111 = vmatpush1.msra.mxu0 %v36
  %112 = vmatprep.subr.mxu0 0.0
  %113 = vmatpush1.msra.mxu0 %v37
  %114 = vmatprep.subr.mxu0 0.0
  %115 = vmatpush1.msra.mxu0 %v38
  %116 = vmatprep.subr.mxu0 0.0
  %117 = vmatpush1.msra.mxu0 %v39
  %118 = vmatprep.subr.mxu0 0.0
  %119 = vmatpush1.msra.mxu0 %v40
  %120 = vmatprep.subr.mxu0 0.0
  %121 = vmatpush1.msra.mxu0 %v41
  %122 = vmatprep.subr.mxu0 0.0
  %123 = vmatpush1.msra.mxu0 %v42
  %124 = vmatprep.subr.mxu0 0.0
  %125 = vmatpush1.msra.mxu0 %v43
  %126 = vmatprep.subr.mxu0 0.0
  %127 = vmatpush1.msra.mxu0 %v44
  %128 = vmatprep.subr.mxu0 0.0
  %129 = vmatpush1.msra.mxu0 %v45
  %130 = vmatprep.subr.mxu0 0.0
  %131 = vmatpush1.msra.mxu0 %v46
  %132 = vmatprep.subr.mxu0 0.0
  %133 = vmatpush1.msra.mxu0 %v47
  %134 = vmatprep.subr.mxu0 0.0
  %135 = vmatpush1.msra.mxu0 %v48
  %136 = vmatprep.mubr.f32.mxu0 %v15
  %137 = vmatmul.mubr.f32.gmra.mrb[0].mxu0 %v14
  %v138 = vpop.f32.mrb[0].mxu0
  %v139 = vadd.f32 %v70, %v138
  %v140 = vpop.f32.mrb[0].mxu0
  %141 = vdwg.mxu0
  %142 = vmatprep.subr.mxu0 0.0
  %143 = vmatpush1.msra.mxu0 %v49
  %144 = vmatprep.subr.mxu0 0.0
  %145 = vmatpush1.msra.mxu0 %v50
  %146 = vmatprep.subr.mxu0 0.0
  %147 = vmatpush1.msra.mxu0 %v51
  %148 = vmatprep.subr.mxu0 0.0
  %149 = vmatpush1.msra.mxu0 %v52
  %150 = vmatprep.subr.mxu0 0.0
  %151 = vmatpush1.msra.mxu0 %v53
  %152 = vmatprep.subr.mxu0 0.0
  %153 = vmatpush1.msra.mxu0 %v54
  %154 = vmatprep.subr.mxu0 0.0
  %155 = vmatpush1.msra.mxu0 %v55
  %156 = vmatprep.subr.mxu0 0.0
  %157 = vmatpush1.msra.mxu0 %v56
  %158 = vmatprep.subr.mxu0 0.0
  %159 = vmatpush1.msra.mxu0 %v57
  %160 = vmatprep.subr.mxu0 0.0
  %161 = vmatpush1.msra.mxu0 %v58
  %162 = vmatprep.subr.mxu0 0.0
  %163 = vmatpush1.msra.mxu0 %v59
  %164 = vmatprep.subr.mxu0 0.0
  %165 = vmatpush1.msra.mxu0 %v60
  %166 = vmatprep.subr.mxu0 0.0
  %167 = vmatpush1.msra.mxu0 %v61
  %168 = vmatprep.subr.mxu0 0.0
  %169 = vmatpush1.msra.mxu0 %v62
  %170 = vmatprep.subr.mxu0 0.0
  %171 = vmatpush1.msra.mxu0 %v63
  %172 = vmatprep.subr.mxu0 0.0
  %173 = vmatpush1.msra.mxu0 %v64
  %174 = vmatprep.subr.mxu0 0.0
  %175 = vmatpush1.msra.mxu0 0.0
  %176 = vmatprep.subr.mxu0 0.0
  %177 = vmatpush1.msra.mxu0 0.0
  %178 = vmatprep.subr.mxu0 0.0
  %179 = vmatpush1.msra.mxu0 0.0
  %180 = vmatprep.subr.mxu0 0.0
  %181 = vmatpush1.msra.mxu0 0.0
  %182 = vmatprep.subr.mxu0 0.0
  %183 = vmatpush1.msra.mxu0 0.0
  %184 = vmatprep.subr.mxu0 0.0
  %185 = vmatpush1.msra.mxu0 0.0
  %186 = vmatprep.subr.mxu0 0.0
  %187 = vmatpush1.msra.mxu0 0.0
  %188 = vmatprep.subr.mxu0 0.0
  %189 = vmatpush1.msra.mxu0 0.0
  %190 = vmatprep.subr.mxu0 0.0
  %191 = vmatpush1.msra.mxu0 0.0
  %192 = vmatprep.subr.mxu0 0.0
  %193 = vmatpush1.msra.mxu0 0.0
  %194 = vmatprep.subr.mxu0 0.0
  %195 = vmatpush1.msra.mxu0 0.0
  %196 = vmatprep.subr.mxu0 0.0
  %197 = vmatpush1.msra.mxu0 0.0
  %198 = vmatprep.subr.mxu0 0.0
  %199 = vmatpush1.msra.mxu0 0.0
  %200 = vmatprep.subr.mxu0 0.0
  %201 = vmatpush1.msra.mxu0 0.0
  %202 = vmatprep.subr.mxu0 0.0
  %203 = vmatpush1.msra.mxu0 0.0
  %204 = vmatprep.subr.mxu0 0.0
  %205 = vmatpush1.msra.mxu0 0.0
  %206 = vmatprep.mubr.f32.mxu0 0.0
  %207 = vmatmul.mubr.f32.gmra.mrb[0].mxu0 %v16
  %v208 = vpop.f32.mrb[0].mxu0
  %v209 = vadd.f32 %v139, %v208
  %v210 = vpop.f32.mrb[0].mxu0
  %211 = vdwg.mxu0
  %vm212 = vcmask 261120
  %213 = vst.msk [vmem:[%s3] sm:$0xff] %vm212, %v209
  // Predicated region
  $region14: #{model_forward.14} parent=0 // pred_check
    _
  $region15: #{model_forward.14} parent=0 // pred_check_branch
    %215 = sbr.rel (0) target = $region17
  $region16: #{model_forward.14} parent=0 // pred_region
    _
  $region17: #{model_forward.14} parent=0 // pred_fallthru
    _
  // Predicated region
  $region18: #{model_forward.14} parent=0 // pred_check
    _
  $region19: #{model_forward.14} parent=0 // pred_check_branch
    %217 = sbr.rel (0) target = $region21
  $region20: #{model_forward.14} parent=0 // pred_region
    _
  $region21: #{model_forward.14} parent=0 // pred_fallthru
    _

// kernel: model_forward.15
$region0: #{model_forward.15}
  #allocation0 [shape = 'u32[]', space=smem, size = 0x4, offset = 0x4, fixed_abs, tag = 'smem constant byte address 0x4 - core index']
  #allocation1 [shape = 'u32[144,128]{1,0:T(1,128)}', space=vmem, size = 0x12000, scoped, tag = 'internal scratch']
  %s0 = inlined_call_operand.vmem [shape: f32[8,384], index: 0, kind: input, shape index: {}]
  %s1 = inlined_call_operand.vmem [shape: f32[384,8], index: 1, kind: input, shape index: {}]
  %s2 = inlined_call_operand.vmem [shape: f32[8,32], index: 2, kind: input, shape index: {}]
  %s3 = inlined_call_operand.vmem [shape: f32[8,32], index: 3, kind: input, shape index: {}]
  %s4 = inlined_call_operand.vmem [shape: f32[8,32], index: 4, kind: output, shape index: {}]
  %s5 = sld [smem:[#allocation0]]
  $region26: #{model_forward.15} parent=0
    _
  %s7 = ssub.s32 1, %s5
  %s8 = scalar_select 0, %s7, %s5
  // Predicated region
  $region2: #{model_forward.15} parent=0 // pred_check
    _
  $region3: #{model_forward.15} parent=0 // pred_check_branch
    %10 = sbr.rel (0) target = $region5
  $region4: #{model_forward.15} parent=0 // pred_region
    _
  $region5: #{model_forward.15} parent=0 // pred_fallthru
    _
  // Predicated region
  $region6: #{model_forward.15} parent=0 // pred_check
    _
  $region7: #{model_forward.15} parent=0 // pred_check_branch
    %12 = sbr.rel (0) target = $region9
  $region8: #{model_forward.15} parent=0 // pred_region
    _
  $region9: #{model_forward.15} parent=0 // pred_fallthru
    _
  // Predicated region
  $region10: #{model_forward.15} parent=0 // pred_check
    _
  $region11: #{model_forward.15} parent=0 // pred_check_branch
    %14 = sbr.rel (0) target = $region13
  $region12: #{model_forward.15} parent=0 // pred_region
    _
  $region13: #{model_forward.15} parent=0 // pred_fallthru
    _
  // Predicated region
  $region14: #{model_forward.15} parent=0 // pred_check
    _
  $region15: #{model_forward.15} parent=0 // pred_check_branch
    %16 = sbr.rel (0) target = $region17
  $region16: #{model_forward.15} parent=0 // pred_region
    _
  $region17: #{model_forward.15} parent=0 // pred_fallthru
    _
  %v17 = vld [vmem:[%s0] sm:$0xff]
  %v18 = vld [vmem:[%s0 + $0x8] sm:$0xff]
  %v19 = vld [vmem:[%s0 + $0x10] sm:$0xff]
  %v20 = vmax.f32 %v17, 0.0
  %v21 = vmax.f32 %v18, 0.0
  %v22 = vmax.f32 %v19, 0.0
  %v23 = vld [vmem:[%s1] sm:$0xff]
  %v24 = vld [vmem:[%s1 + $0x8] sm:$0xff]
  %v25 = vld [vmem:[%s1 + $0x10] sm:$0xff]
  %v26 = vld [vmem:[%s1 + $0x18] sm:$0xff]
  %v27 = vld [vmem:[%s1 + $0x20] sm:$0xff]
  %v28 = vld [vmem:[%s1 + $0x28] sm:$0xff]
  %v29 = vld [vmem:[%s1 + $0x30] sm:$0xff]
  %v30 = vld [vmem:[%s1 + $0x38] sm:$0xff]
  %v31 = vld [vmem:[%s1 + $0x40] sm:$0xff]
  %v32 = vld [vmem:[%s1 + $0x48] sm:$0xff]
  %v33 = vld [vmem:[%s1 + $0x50] sm:$0xff]
  %v34 = vld [vmem:[%s1 + $0x58] sm:$0xff]
  %v35 = vld [vmem:[%s1 + $0x60] sm:$0xff]
  %v36 = vld [vmem:[%s1 + $0x68] sm:$0xff]
  %v37 = vld [vmem:[%s1 + $0x70] sm:$0xff]
  %v38 = vld [vmem:[%s1 + $0x78] sm:$0xff]
  %v39 = vld [vmem:[%s1 + $0x80] sm:$0xff]
  %v40 = vld [vmem:[%s1 + $0x88] sm:$0xff]
  %v41 = vld [vmem:[%s1 + $0x90] sm:$0xff]
  %v42 = vld [vmem:[%s1 + $0x98] sm:$0xff]
  %v43 = vld [vmem:[%s1 + $0xa0] sm:$0xff]
  %v44 = vld [vmem:[%s1 + $0xa8] sm:$0xff]
  %v45 = vld [vmem:[%s1 + $0xb0] sm:$0xff]
  %v46 = vld [vmem:[%s1 + $0xb8] sm:$0xff]
  %v47 = vld [vmem:[%s1 + $0xc0] sm:$0xff]
  %v48 = vld [vmem:[%s1 + $0xc8] sm:$0xff]
  %v49 = vld [vmem:[%s1 + $0xd0] sm:$0xff]
  %v50 = vld [vmem:[%s1 + $0xd8] sm:$0xff]
  %v51 = vld [vmem:[%s1 + $0xe0] sm:$0xff]
  %v52 = vld [vmem:[%s1 + $0xe8] sm:$0xff]
  %v53 = vld [vmem:[%s1 + $0xf0] sm:$0xff]
  %v54 = vld [vmem:[%s1 + $0xf8] sm:$0xff]
  %v55 = vld [vmem:[%s1 + $0x100] sm:$0xff]
  %v56 = vld [vmem:[%s1 + $0x108] sm:$0xff]
  %v57 = vld [vmem:[%s1 + $0x110] sm:$0xff]
  %v58 = vld [vmem:[%s1 + $0x118] sm:$0xff]
  %v59 = vld [vmem:[%s1 + $0x120] sm:$0xff]
  %v60 = vld [vmem:[%s1 + $0x128] sm:$0xff]
  %v61 = vld [vmem:[%s1 + $0x130] sm:$0xff]
  %v62 = vld [vmem:[%s1 + $0x138] sm:$0xff]
  %v63 = vld [vmem:[%s1 + $0x140] sm:$0xff]
  %v64 = vld [vmem:[%s1 + $0x148] sm:$0xff]
  %v65 = vld [vmem:[%s1 + $0x150] sm:$0xff]
  %v66 = vld [vmem:[%s1 + $0x158] sm:$0xff]
  %v67 = vld [vmem:[%s1 + $0x160] sm:$0xff]
  %v68 = vld [vmem:[%s1 + $0x168] sm:$0xff]
  %v69 = vld [vmem:[%s1 + $0x170] sm:$0xff]
  %v70 = vld [vmem:[%s1 + $0x178] sm:$0xff]
  %71 = vmatprep.subr.mxu0 0.0
  %72 = vmatpush1.msra.mxu0 %v23
  %73 = vmatprep.subr.mxu0 0.0
  %74 = vmatpush1.msra.mxu0 %v24
  %75 = vmatprep.subr.mxu0 0.0
  %76 = vmatpush1.msra.mxu0 %v25
  %77 = vmatprep.subr.mxu0 0.0
  %78 = vmatpush1.msra.mxu0 %v26
  %79 = vmatprep.subr.mxu0 0.0
  %80 = vmatpush1.msra.mxu0 %v27
  %81 = vmatprep.subr.mxu0 0.0
  %82 = vmatpush1.msra.mxu0 %v28
  %83 = vmatprep.subr.mxu0 0.0
  %84 = vmatpush1.msra.mxu0 %v29
  %85 = vmatprep.subr.mxu0 0.0
  %86 = vmatpush1.msra.mxu0 %v30
  %87 = vmatprep.subr.mxu0 0.0
  %88 = vmatpush1.msra.mxu0 %v31
  %89 = vmatprep.subr.mxu0 0.0
  %90 = vmatpush1.msra.mxu0 %v32
  %91 = vmatprep.subr.mxu0 0.0
  %92 = vmatpush1.msra.mxu0 %v33
  %93 = vmatprep.subr.mxu0 0.0
  %94 = vmatpush1.msra.mxu0 %v34
  %95 = vmatprep.subr.mxu0 0.0
  %96 = vmatpush1.msra.mxu0 %v35
  %97 = vmatprep.subr.mxu0 0.0
  %98 = vmatpush1.msra.mxu0 %v36
  %99 = vmatprep.subr.mxu0 0.0
  %100 = vmatpush1.msra.mxu0 %v37
  %101 = vmatprep.subr.mxu0 0.0
  %102 = vmatpush1.msra.mxu0 %v38
  %103 = vmatprep.subr.mxu0 0.0
  %104 = vmatpush1.msra.mxu0 %v39
  %105 = vmatprep.subr.mxu0 0.0
  %106 = vmatpush1.msra.mxu0 %v40
  %107 = vmatprep.subr.mxu0 0.0
  %108 = vmatpush1.msra.mxu0 %v41
  %109 = vmatprep.subr.mxu0 0.0
  %110 = vmatpush1.msra.mxu0 %v42
  %111 = vmatprep.subr.mxu0 0.0
  %112 = vmatpush1.msra.mxu0 %v43
  %113 = vmatprep.subr.mxu0 0.0
  %114 = vmatpush1.msra.mxu0 %v44
  %115 = vmatprep.subr.mxu0 0.0
  %116 = vmatpush1.msra.mxu0 %v45
  %117 = vmatprep.subr.mxu0 0.0
  %118 = vmatpush1.msra.mxu0 %v46
  %119 = vmatprep.subr.mxu0 0.0
  %120 = vmatpush1.msra.mxu0 %v47
  %121 = vmatprep.subr.mxu0 0.0
  %122 = vmatpush1.msra.mxu0 %v48
  %123 = vmatprep.subr.mxu0 0.0
  %124 = vmatpush1.msra.mxu0 %v49
  %125 = vmatprep.subr.mxu0 0.0
  %126 = vmatpush1.msra.mxu0 %v50
  %127 = vmatprep.subr.mxu0 0.0
  %128 = vmatpush1.msra.mxu0 %v51
  %129 = vmatprep.subr.mxu0 0.0
  %130 = vmatpush1.msra.mxu0 %v52
  %131 = vmatprep.subr.mxu0 0.0
  %132 = vmatpush1.msra.mxu0 %v53
  %133 = vmatprep.subr.mxu0 0.0
  %134 = vmatpush1.msra.mxu0 %v54
  %135 = vmatprep.mubr.f32.mxu0 %v21
  %136 = vmatmul.mubr.f32.gmra.mrb[0].mxu0 %v20
  %v137 = vpop.f32.mrb[0].mxu0
  %v138 = vadd.f32 0.0, %v137
  %v139 = vpop.f32.mrb[0].mxu0
  %140 = vdwg.mxu0
  %141 = vmatprep.subr.mxu0 0.0
  %142 = vmatpush1.msra.mxu0 %v55
  %143 = vmatprep.subr.mxu0 0.0
  %144 = vmatpush1.msra.mxu0 %v56
  %145 = vmatprep.subr.mxu0 0.0
  %146 = vmatpush1.msra.mxu0 %v57
  %147 = vmatprep.subr.mxu0 0.0
  %148 = vmatpush1.msra.mxu0 %v58
  %149 = vmatprep.subr.mxu0 0.0
  %150 = vmatpush1.msra.mxu0 %v59
  %151 = vmatprep.subr.mxu0 0.0
  %152 = vmatpush1.msra.mxu0 %v60
  %153 = vmatprep.subr.mxu0 0.0
  %154 = vmatpush1.msra.mxu0 %v61
  %155 = vmatprep.subr.mxu0 0.0
  %156 = vmatpush1.msra.mxu0 %v62
  %157 = vmatprep.subr.mxu0 0.0
  %158 = vmatpush1.msra.mxu0 %v63
  %159 = vmatprep.subr.mxu0 0.0
  %160 = vmatpush1.msra.mxu0 %v64
  %161 = vmatprep.subr.mxu0 0.0
  %162 = vmatpush1.msra.mxu0 %v65
  %163 = vmatprep.subr.mxu0 0.0
  %164 = vmatpush1.msra.mxu0 %v66
  %165 = vmatprep.subr.mxu0 0.0
  %166 = vmatpush1.msra.mxu0 %v67
  %167 = vmatprep.subr.mxu0 0.0
  %168 = vmatpush1.msra.mxu0 %v68
  %169 = vmatprep.subr.mxu0 0.0
  %170 = vmatpush1.msra.mxu0 %v69
  %171 = vmatprep.subr.mxu0 0.0
  %172 = vmatpush1.msra.mxu0 %v70
  %173 = vmatprep.subr.mxu0 0.0
  %174 = vmatpush1.msra.mxu0 0.0
  %175 = vmatprep.subr.mxu0 0.0
  %176 = vmatpush1.msra.mxu0 0.0
  %177 = vmatprep.subr.mxu0 0.0
  %178 = vmatpush1.msra.mxu0 0.0
  %179 = vmatprep.subr.mxu0 0.0
  %180 = vmatpush1.msra.mxu0 0.0
  %181 = vmatprep.subr.mxu0 0.0
  %182 = vmatpush1.msra.mxu0 0.0
  %183 = vmatprep.subr.mxu0 0.0
  %184 = vmatpush1.msra.mxu0 0.0
  %185 = vmatprep.subr.mxu0 0.0
  %186 = vmatpush1.msra.mxu0 0.0
  %187 = vmatprep.subr.mxu0 0.0
  %188 = vmatpush1.msra.mxu0 0.0
  %189 = vmatprep.subr.mxu0 0.0
  %190 = vmatpush1.msra.mxu0 0.0
  %191 = vmatprep.subr.mxu0 0.0
  %192 = vmatpush1.msra.mxu0 0.0
  %193 = vmatprep.subr.mxu0 0.0
  %194 = vmatpush1.msra.mxu0 0.0
  %195 = vmatprep.subr.mxu0 0.0
  %196 = vmatpush1.msra.mxu0 0.0
  %197 = vmatprep.subr.mxu0 0.0
  %198 = vmatpush1.msra.mxu0 0.0
  %199 = vmatprep.subr.mxu0 0.0
  %200 = vmatpush1.msra.mxu0 0.0
  %201 = vmatprep.subr.mxu0 0.0
  %202 = vmatpush1.msra.mxu0 0.0
  %203 = vmatprep.subr.mxu0 0.0
  %204 = vmatpush1.msra.mxu0 0.0
  %205 = vmatprep.mubr.f32.mxu0 0.0
  %206 = vmatmul.mubr.f32.gmra.mrb[0].mxu0 %v22
  %v207 = vpop.f32.mrb[0].mxu0
  %v208 = vadd.f32 %v138, %v207
  %v209 = vpop.f32.mrb[0].mxu0
  %210 = vdwg.mxu0
  %v211 = vmax.f32 %v208, 0.0
  %v212 = vld [vmem:[%s2] sm:$0xff]
  %vm213 = vcmask 64512
  %v215 = vsel %vm213, %v211, 0
  %217 = vmatprep.subr.mxu0 0.0
  %218 = vmatpush1.msra.mxu0 %v212
  %219 = vmatprep.subr.mxu0 0.0
  %220 = vmatpush1.msra.mxu0 0.0
  %221 = vmatprep.subr.mxu0 0.0
  %222 = vmatpush1.msra.mxu0 0.0
  %223 = vmatprep.subr.mxu0 0.0
  %224 = vmatpush1.msra.mxu0 0.0
  %225 = vmatprep.subr.mxu0 0.0
  %226 = vmatpush1.msra.mxu0 0.0
  %227 = vmatprep.subr.mxu0 0.0
  %228 = vmatpush1.msra.mxu0 0.0
  %229 = vmatprep.subr.mxu0 0.0
  %230 = vmatpush1.msra.mxu0 0.0
  %231 = vmatprep.subr.mxu0 0.0
  %232 = vmatpush1.msra.mxu0 0.0
  %233 = vmatprep.subr.mxu0 0.0
  %234 = vmatpush1.msra.mxu0 0.0
  %235 = vmatprep.subr.mxu0 0.0
  %236 = vmatpush1.msra.mxu0 0.0
  %237 = vmatprep.subr.mxu0 0.0
  %238 = vmatpush1.msra.mxu0 0.0
  %239 = vmatprep.subr.mxu0 0.0
  %240 = vmatpush1.msra.mxu0 0.0
  %241 = vmatprep.subr.mxu0 0.0
  %242 = vmatpush1.msra.mxu0 0.0
  %243 = vmatprep.subr.mxu0 0.0
  %244 = vmatpush1.msra.mxu0 0.0
  %245 = vmatprep.subr.mxu0 0.0
  %246 = vmatpush1.msra.mxu0 0.0
  %247 = vmatprep.subr.mxu0 0.0
  %248 = vmatpush1.msra.mxu0 0.0
  %249 = vmatprep.subr.mxu0 0.0
  %250 = vmatpush1.msra.mxu0 0.0
  %251 = vmatprep.subr.mxu0 0.0
  %252 = vmatpush1.msra.mxu0 0.0
  %253 = vmatprep.subr.mxu0 0.0
  %254 = vmatpush1.msra.mxu0 0.0
  %255 = vmatprep.subr.mxu0 0.0
  %256 = vmatpush1.msra.mxu0 0.0
  %257 = vmatprep.subr.mxu0 0.0
  %258 = vmatpush1.msra.mxu0 0.0
  %259 = vmatprep.subr.mxu0 0.0
  %260 = vmatpush1.msra.mxu0 0.0
  %261 = vmatprep.subr.mxu0 0.0
  %262 = vmatpush1.msra.mxu0 0.0
  %263 = vmatprep.subr.mxu0 0.0
  %264 = vmatpush1.msra.mxu0 0.0
  %265 = vmatprep.subr.mxu0 0.0
  %266 = vmatpush1.msra.mxu0 0.0
  %267 = vmatprep.subr.mxu0 0.0
  %268 = vmatpush1.msra.mxu0 0.0
  %269 = vmatprep.subr.mxu0 0.0
  %270 = vmatpush1.msra.mxu0 0.0
  %271 = vmatprep.subr.mxu0 0.0
  %272 = vmatpush1.msra.mxu0 0.0
  %273 = vmatprep.subr.mxu0 0.0
  %274 = vmatpush1.msra.mxu0 0.0
  %275 = vmatprep.subr.mxu0 0.0
  %276 = vmatpush1.msra.mxu0 0.0
  %277 = vmatprep.subr.mxu0 0.0
  %278 = vmatpush1.msra.mxu0 0.0
  %279 = vmatprep.subr.mxu0 0.0
  %280 = vmatpush1.msra.mxu0 0.0
  %281 = vmatprep.mubr.f32.mxu0 0.0
  %282 = vmatmul.mubr.f32.gmra.mrb[0].mxu0 %v215
  %v283 = vpop.f32.mrb[0].mxu0
  %v284 = vadd.f32 0.0, %v283
  %v285 = vpop.f32.mrb[0].mxu0
  %286 = vdwg.mxu0
  %v287 = vld [vmem:[%s3] sm:$0xff]
  %v288 = vadd.f32 %v287, %v284
  %vm289 = vcmask 261120
  %290 = vst.msk [vmem:[%s4] sm:$0xff] %vm289, %v288
  // Predicated region
  $region18: #{model_forward.15} parent=0 // pred_check
    _
  $region19: #{model_forward.15} parent=0 // pred_check_branch
    %292 = sbr.rel (0) target = $region21
  $region20: #{model_forward.15} parent=0 // pred_region
    _
  $region21: #{model_forward.15} parent=0 // pred_fallthru
    _
  // Predicated region
  $region22: #{model_forward.15} parent=0 // pred_check
    _
  $region23: #{model_forward.15} parent=0 // pred_check_branch
    %294 = sbr.rel (0) target = $region25
  $region24: #{model_forward.15} parent=0 // pred_region
    _
  $region25: #{model_forward.15} parent=0 // pred_fallthru
    _

// kernel: model_forward.16
$region0: #{model_forward.16}
  #allocation0 [shape = 'u32[]', space=smem, size = 0x4, offset = 0x4, fixed_abs, tag = 'smem constant byte address 0x4 - core index']
  #allocation1 [shape = 'u32[144,128]{1,0:T(1,128)}', space=vmem, size = 0x12000, scoped, tag = 'internal scratch']
  %s0 = inlined_call_operand.vmem [shape: f32[8,384], index: 0, kind: input, shape index: {}]
  %s1 = inlined_call_operand.vmem [shape: f32[384,8], index: 1, kind: input, shape index: {}]
  %s2 = inlined_call_operand.vmem [shape: f32[8,32], index: 2, kind: input, shape index: {}]
  %s3 = inlined_call_operand.vmem [shape: f32[8,32], index: 3, kind: input, shape index: {}]
  %s4 = inlined_call_operand.vmem [shape: f32[8,32], index: 4, kind: output, shape index: {}]
  %s5 = sld [smem:[#allocation0]]
  $region26: #{model_forward.16} parent=0
    _
  %s7 = ssub.s32 1, %s5
  %s8 = scalar_select 0, %s7, %s5
  // Predicated region
  $region2: #{model_forward.16} parent=0 // pred_check
    _
  $region3: #{model_forward.16} parent=0 // pred_check_branch
    %10 = sbr.rel (0) target = $region5
  $region4: #{model_forward.16} parent=0 // pred_region
    _
  $region5: #{model_forward.16} parent=0 // pred_fallthru
    _
  // Predicated region
  $region6: #{model_forward.16} parent=0 // pred_check
    _
  $region7: #{model_forward.16} parent=0 // pred_check_branch
    %12 = sbr.rel (0) target = $region9
  $region8: #{model_forward.16} parent=0 // pred_region
    _
  $region9: #{model_forward.16} parent=0 // pred_fallthru
    _
  // Predicated region
  $region10: #{model_forward.16} parent=0 // pred_check
    _
  $region11: #{model_forward.16} parent=0 // pred_check_branch
    %14 = sbr.rel (0) target = $region13
  $region12: #{model_forward.16} parent=0 // pred_region
    _
  $region13: #{model_forward.16} parent=0 // pred_fallthru
    _
  // Predicated region
  $region14: #{model_forward.16} parent=0 // pred_check
    _
  $region15: #{model_forward.16} parent=0 // pred_check_branch
    %16 = sbr.rel (0) target = $region17
  $region16: #{model_forward.16} parent=0 // pred_region
    _
  $region17: #{model_forward.16} parent=0 // pred_fallthru
    _
  %v17 = vld [vmem:[%s0] sm:$0xff]
  %v18 = vld [vmem:[%s0 + $0x8] sm:$0xff]
  %v19 = vld [vmem:[%s0 + $0x10] sm:$0xff]
  %v20 = vmax.f32 %v17, 0.0
  %v21 = vmax.f32 %v18, 0.0
  %v22 = vmax.f32 %v19, 0.0
  %v23 = vld [vmem:[%s1] sm:$0xff]
  %v24 = vld [vmem:[%s1 + $0x8] sm:$0xff]
  %v25 = vld [vmem:[%s1 + $0x10] sm:$0xff]
  %v26 = vld [vmem:[%s1 + $0x18] sm:$0xff]
  %v27 = vld [vmem:[%s1 + $0x20] sm:$0xff]
  %v28 = vld [vmem:[%s1 + $0x28] sm:$0xff]
  %v29 = vld [vmem:[%s1 + $0x30] sm:$0xff]
  %v30 = vld [vmem:[%s1 + $0x38] sm:$0xff]
  %v31 = vld [vmem:[%s1 + $0x40] sm:$0xff]
  %v32 = vld [vmem:[%s1 + $0x48] sm:$0xff]
  %v33 = vld [vmem:[%s1 + $0x50] sm:$0xff]
  %v34 = vld [vmem:[%s1 + $0x58] sm:$0xff]
  %v35 = vld [vmem:[%s1 + $0x60] sm:$0xff]
  %v36 = vld [vmem:[%s1 + $0x68] sm:$0xff]
  %v37 = vld [vmem:[%s1 + $0x70] sm:$0xff]
  %v38 = vld [vmem:[%s1 + $0x78] sm:$0xff]
  %v39 = vld [vmem:[%s1 + $0x80] sm:$0xff]
  %v40 = vld [vmem:[%s1 + $0x88] sm:$0xff]
  %v41 = vld [vmem:[%s1 + $0x90] sm:$0xff]
  %v42 = vld [vmem:[%s1 + $0x98] sm:$0xff]
  %v43 = vld [vmem:[%s1 + $0xa0] sm:$0xff]
  %v44 = vld [vmem:[%s1 + $0xa8] sm:$0xff]
  %v45 = vld [vmem:[%s1 + $0xb0] sm:$0xff]
  %v46 = vld [vmem:[%s1 + $0xb8] sm:$0xff]
  %v47 = vld [vmem:[%s1 + $0xc0] sm:$0xff]
  %v48 = vld [vmem:[%s1 + $0xc8] sm:$0xff]
  %v49 = vld [vmem:[%s1 + $0xd0] sm:$0xff]
  %v50 = vld [vmem:[%s1 + $0xd8] sm:$0xff]
  %v51 = vld [vmem:[%s1 + $0xe0] sm:$0xff]
  %v52 = vld [vmem:[%s1 + $0xe8] sm:$0xff]
  %v53 = vld [vmem:[%s1 + $0xf0] sm:$0xff]
  %v54 = vld [vmem:[%s1 + $0xf8] sm:$0xff]
  %v55 = vld [vmem:[%s1 + $0x100] sm:$0xff]
  %v56 = vld [vmem:[%s1 + $0x108] sm:$0xff]
  %v57 = vld [vmem:[%s1 + $0x110] sm:$0xff]
  %v58 = vld [vmem:[%s1 + $0x118] sm:$0xff]
  %v59 = vld [vmem:[%s1 + $0x120] sm:$0xff]
  %v60 = vld [vmem:[%s1 + $0x128] sm:$0xff]
  %v61 = vld [vmem:[%s1 + $0x130] sm:$0xff]
  %v62 = vld [vmem:[%s1 + $0x138] sm:$0xff]
  %v63 = vld [vmem:[%s1 + $0x140] sm:$0xff]
  %v64 = vld [vmem:[%s1 + $0x148] sm:$0xff]
  %v65 = vld [vmem:[%s1 + $0x150] sm:$0xff]
  %v66 = vld [vmem:[%s1 + $0x158] sm:$0xff]
  %v67 = vld [vmem:[%s1 + $0x160] sm:$0xff]
  %v68 = vld [vmem:[%s1 + $0x168] sm:$0xff]
  %v69 = vld [vmem:[%s1 + $0x170] sm:$0xff]
  %v70 = vld [vmem:[%s1 + $0x178] sm:$0xff]
  %71 = vmatprep.subr.mxu0 0.0
  %72 = vmatpush1.msra.mxu0 %v23
  %73 = vmatprep.subr.mxu0 0.0
  %74 = vmatpush1.msra.mxu0 %v24
  %75 = vmatprep.subr.mxu0 0.0
  %76 = vmatpush1.msra.mxu0 %v25
  %77 = vmatprep.subr.mxu0 0.0
  %78 = vmatpush1.msra.mxu0 %v26
  %79 = vmatprep.subr.mxu0 0.0
  %80 = vmatpush1.msra.mxu0 %v27
  %81 = vmatprep.subr.mxu0 0.0
  %82 = vmatpush1.msra.mxu0 %v28
  %83 = vmatprep.subr.mxu0 0.0
  %84 = vmatpush1.msra.mxu0 %v29
  %85 = vmatprep.subr.mxu0 0.0
  %86 = vmatpush1.msra.mxu0 %v30
  %87 = vmatprep.subr.mxu0 0.0
  %88 = vmatpush1.msra.mxu0 %v31
  %89 = vmatprep.subr.mxu0 0.0
  %90 = vmatpush1.msra.mxu0 %v32
  %91 = vmatprep.subr.mxu0 0.0
  %92 = vmatpush1.msra.mxu0 %v33
  %93 = vmatprep.subr.mxu0 0.0
  %94 = vmatpush1.msra.mxu0 %v34
  %95 = vmatprep.subr.mxu0 0.0
  %96 = vmatpush1.msra.mxu0 %v35
  %97 = vmatprep.subr.mxu0 0.0
  %98 = vmatpush1.msra.mxu0 %v36
  %99 = vmatprep.subr.mxu0 0.0
  %100 = vmatpush1.msra.mxu0 %v37
  %101 = vmatprep.subr.mxu0 0.0
  %102 = vmatpush1.msra.mxu0 %v38
  %103 = vmatprep.subr.mxu0 0.0
  %104 = vmatpush1.msra.mxu0 %v39
  %105 = vmatprep.subr.mxu0 0.0
  %106 = vmatpush1.msra.mxu0 %v40
  %107 = vmatprep.subr.mxu0 0.0
  %108 = vmatpush1.msra.mxu0 %v41
  %109 = vmatprep.subr.mxu0 0.0
  %110 = vmatpush1.msra.mxu0 %v42
  %111 = vmatprep.subr.mxu0 0.0
  %112 = vmatpush1.msra.mxu0 %v43
  %113 = vmatprep.subr.mxu0 0.0
  %114 = vmatpush1.msra.mxu0 %v44
  %115 = vmatprep.subr.mxu0 0.0
  %116 = vmatpush1.msra.mxu0 %v45
  %117 = vmatprep.subr.mxu0 0.0
  %118 = vmatpush1.msra.mxu0 %v46
  %119 = vmatprep.subr.mxu0 0.0
  %120 = vmatpush1.msra.mxu0 %v47
  %121 = vmatprep.subr.mxu0 0.0
  %122 = vmatpush1.msra.mxu0 %v48
  %123 = vmatprep.subr.mxu0 0.0
  %124 = vmatpush1.msra.mxu0 %v49
  %125 = vmatprep.subr.mxu0 0.0
  %126 = vmatpush1.msra.mxu0 %v50
  %127 = vmatprep.subr.mxu0 0.0
  %128 = vmatpush1.msra.mxu0 %v51
  %129 = vmatprep.subr.mxu0 0.0
  %130 = vmatpush1.msra.mxu0 %v52
  %131 = vmatprep.subr.mxu0 0.0
  %132 = vmatpush1.msra.mxu0 %v53
  %133 = vmatprep.subr.mxu0 0.0
  %134 = vmatpush1.msra.mxu0 %v54
  %135 = vmatprep.mubr.f32.mxu0 %v21
  %136 = vmatmul.mubr.f32.gmra.mrb[0].mxu0 %v20
  %v137 = vpop.f32.mrb[0].mxu0
  %v138 = vadd.f32 0.0, %v137
  %v139 = vpop.f32.mrb[0].mxu0
  %140 = vdwg.mxu0
  %141 = vmatprep.subr.mxu0 0.0
  %142 = vmatpush1.msra.mxu0 %v55
  %143 = vmatprep.subr.mxu0 0.0
  %144 = vmatpush1.msra.mxu0 %v56
  %145 = vmatprep.subr.mxu0 0.0
  %146 = vmatpush1.msra.mxu0 %v57
  %147 = vmatprep.subr.mxu0 0.0
  %148 = vmatpush1.msra.mxu0 %v58
  %149 = vmatprep.subr.mxu0 0.0
  %150 = vmatpush1.msra.mxu0 %v59
  %151 = vmatprep.subr.mxu0 0.0
  %152 = vmatpush1.msra.mxu0 %v60
  %153 = vmatprep.subr.mxu0 0.0
  %154 = vmatpush1.msra.mxu0 %v61
  %155 = vmatprep.subr.mxu0 0.0
  %156 = vmatpush1.msra.mxu0 %v62
  %157 = vmatprep.subr.mxu0 0.0
  %158 = vmatpush1.msra.mxu0 %v63
  %159 = vmatprep.subr.mxu0 0.0
  %160 = vmatpush1.msra.mxu0 %v64
  %161 = vmatprep.subr.mxu0 0.0
  %162 = vmatpush1.msra.mxu0 %v65
  %163 = vmatprep.subr.mxu0 0.0
  %164 = vmatpush1.msra.mxu0 %v66
  %165 = vmatprep.subr.mxu0 0.0
  %166 = vmatpush1.msra.mxu0 %v67
  %167 = vmatprep.subr.mxu0 0.0
  %168 = vmatpush1.msra.mxu0 %v68
  %169 = vmatprep.subr.mxu0 0.0
  %170 = vmatpush1.msra.mxu0 %v69
  %171 = vmatprep.subr.mxu0 0.0
  %172 = vmatpush1.msra.mxu0 %v70
  %173 = vmatprep.subr.mxu0 0.0
  %174 = vmatpush1.msra.mxu0 0.0
  %175 = vmatprep.subr.mxu0 0.0
  %176 = vmatpush1.msra.mxu0 0.0
  %177 = vmatprep.subr.mxu0 0.0
  %178 = vmatpush1.msra.mxu0 0.0
  %179 = vmatprep.subr.mxu0 0.0
  %180 = vmatpush1.msra.mxu0 0.0
  %181 = vmatprep.subr.mxu0 0.0
  %182 = vmatpush1.msra.mxu0 0.0
  %183 = vmatprep.subr.mxu0 0.0
  %184 = vmatpush1.msra.mxu0 0.0
  %185 = vmatprep.subr.mxu0 0.0
  %186 = vmatpush1.msra.mxu0 0.0
  %187 = vmatprep.subr.mxu0 0.0
  %188 = vmatpush1.msra.mxu0 0.0
  %189 = vmatprep.subr.mxu0 0.0
  %190 = vmatpush1.msra.mxu0 0.0
  %191 = vmatprep.subr.mxu0 0.0
  %192 = vmatpush1.msra.mxu0 0.0
  %193 = vmatprep.subr.mxu0 0.0
  %194 = vmatpush1.msra.mxu0 0.0
  %195 = vmatprep.subr.mxu0 0.0
  %196 = vmatpush1.msra.mxu0 0.0
  %197 = vmatprep.subr.mxu0 0.0
  %198 = vmatpush1.msra.mxu0 0.0
  %199 = vmatprep.subr.mxu0 0.0
  %200 = vmatpush1.msra.mxu0 0.0
  %201 = vmatprep.subr.mxu0 0.0
  %202 = vmatpush1.msra.mxu0 0.0
  %203 = vmatprep.subr.mxu0 0.0
  %204 = vmatpush1.msra.mxu0 0.0
  %205 = vmatprep.mubr.f32.mxu0 0.0
  %206 = vmatmul.mubr.f32.gmra.mrb[0].mxu0 %v22
  %v207 = vpop.f32.mrb[0].mxu0
  %v208 = vadd.f32 %v138, %v207
  %v209 = vpop.f32.mrb[0].mxu0
  %210 = vdwg.mxu0
  %v211 = vmax.f32 %v208, 0.0
  %v212 = vld [vmem:[%s2] sm:$0xff]
  %vm213 = vcmask 64512
  %v215 = vsel %vm213, %v211, 0
  %217 = vmatprep.subr.mxu0 0.0
  %218 = vmatpush1.msra.mxu0 %v212
  %219 = vmatprep.subr.mxu0 0.0
  %220 = vmatpush1.msra.mxu0 0.0
  %221 = vmatprep.subr.mxu0 0.0
  %222 = vmatpush1.msra.mxu0 0.0
  %223 = vmatprep.subr.mxu0 0.0
  %224 = vmatpush1.msra.mxu0 0.0
  %225 = vmatprep.subr.mxu0 0.0
  %226 = vmatpush1.msra.mxu0 0.0
  %227 = vmatprep.subr.mxu0 0.0
  %228 = vmatpush1.msra.mxu0 0.0
  %229 = vmatprep.subr.mxu0 0.0
  %230 = vmatpush1.msra.mxu0 0.0
  %231 = vmatprep.subr.mxu0 0.0
  %232 = vmatpush1.msra.mxu0 0.0
  %233 = vmatprep.subr.mxu0 0.0
  %234 = vmatpush1.msra.mxu0 0.0
  %235 = vmatprep.subr.mxu0 0.0
  %236 = vmatpush1.msra.mxu0 0.0
  %237 = vmatprep.subr.mxu0 0.0
  %238 = vmatpush1.msra.mxu0 0.0
  %239 = vmatprep.subr.mxu0 0.0
  %240 = vmatpush1.msra.mxu0 0.0
  %241 = vmatprep.subr.mxu0 0.0
  %242 = vmatpush1.msra.mxu0 0.0
  %243 = vmatprep.subr.mxu0 0.0
  %244 = vmatpush1.msra.mxu0 0.0
  %245 = vmatprep.subr.mxu0 0.0
  %246 = vmatpush1.msra.mxu0 0.0
  %247 = vmatprep.subr.mxu0 0.0
  %248 = vmatpush1.msra.mxu0 0.0
  %249 = vmatprep.subr.mxu0 0.0
  %250 = vmatpush1.msra.mxu0 0.0
  %251 = vmatprep.subr.mxu0 0.0
  %252 = vmatpush1.msra.mxu0 0.0
  %253 = vmatprep.subr.mxu0 0.0
  %254 = vmatpush1.msra.mxu0 0.0
  %255 = vmatprep.subr.mxu0 0.0
  %256 = vmatpush1.msra.mxu0 0.0
  %257 = vmatprep.subr.mxu0 0.0
  %258 = vmatpush1.msra.mxu0 0.0
  %259 = vmatprep.subr.mxu0 0.0
  %260 = vmatpush1.msra.mxu0 0.0
  %261 = vmatprep.subr.mxu0 0.0
  %262 = vmatpush1.msra.mxu0 0.0
  %263 = vmatprep.subr.mxu0 0.0
  %264 = vmatpush1.msra.mxu0 0.0
  %265 = vmatprep.subr.mxu0 0.0
  %266 = vmatpush1.msra.mxu0 0.0
  %267 = vmatprep.subr.mxu0 0.0
  %268 = vmatpush1.msra.mxu0 0.0
  %269 = vmatprep.subr.mxu0 0.0
  %270 = vmatpush1.msra.mxu0 0.0
  %271 = vmatprep.subr.mxu0 0.0
  %272 = vmatpush1.msra.mxu0 0.0
  %273 = vmatprep.subr.mxu0 0.0
  %274 = vmatpush1.msra.mxu0 0.0
  %275 = vmatprep.subr.mxu0 0.0
  %276 = vmatpush1.msra.mxu0 0.0
  %277 = vmatprep.subr.mxu0 0.0
  %278 = vmatpush1.msra.mxu0 0.0
  %279 = vmatprep.subr.mxu0 0.0
  %280 = vmatpush1.msra.mxu0 0.0
  %281 = vmatprep.mubr.f32.mxu0 0.0
  %282 = vmatmul.mubr.f32.gmra.mrb[0].mxu0 %v215
  %v283 = vpop.f32.mrb[0].mxu0
  %v284 = vadd.f32 0.0, %v283
  %v285 = vpop.f32.mrb[0].mxu0
  %286 = vdwg.mxu0
  %v287 = vld [vmem:[%s3] sm:$0xff]
  %v288 = vadd.f32 %v287, %v284
  %v289 = vmax.f32 %v288, 0.0
  %vm290 = vcmask 261120
  %291 = vst.msk [vmem:[%s4] sm:$0xff] %vm290, %v289
  // Predicated region
  $region18: #{model_forward.16} parent=0 // pred_check
    _
  $region19: #{model_forward.16} parent=0 // pred_check_branch
    %293 = sbr.rel (0) target = $region21
  $region20: #{model_forward.16} parent=0 // pred_region
    _
  $region21: #{model_forward.16} parent=0 // pred_fallthru
    _
  // Predicated region
  $region22: #{model_forward.16} parent=0 // pred_check
    _
  $region23: #{model_forward.16} parent=0 // pred_check_branch
    %295 = sbr.rel (0) target = $region25
  $region24: #{model_forward.16} parent=0 // pred_region
    _
  $region25: #{model_forward.16} parent=0 // pred_fallthru
    _

// kernel: model_forward.17
$region0: #{model_forward.17}
  #allocation0 [shape = 'u32[]', space=smem, size = 0x4, offset = 0x4, fixed_abs, tag = 'smem constant byte address 0x4 - core index']
  #allocation1 [shape = 'u32[144,128]{1,0:T(1,128)}', space=vmem, size = 0x12000, scoped, tag = 'internal scratch']
  %s0 = inlined_call_operand.vmem [shape: f32[8,128], index: 0, kind: input, shape index: {}]
  %s1 = inlined_call_operand.vmem [shape: f32[128,16], index: 1, kind: input, shape index: {}]
  %s2 = inlined_call_operand.vmem [shape: f32[1,16], index: 2, kind: input, shape index: {}]
  %s3 = inlined_call_operand.vmem [shape: f32[8,16], index: 3, kind: output, shape index: {}]
  %s4 = sld [smem:[#allocation0]]
  $region22: #{model_forward.17} parent=0
    _
  %s6 = ssub.s32 1, %s4
  %s7 = scalar_select 0, %s6, %s4
  // Predicated region
  $region2: #{model_forward.17} parent=0 // pred_check
    _
  $region3: #{model_forward.17} parent=0 // pred_check_branch
    %9 = sbr.rel (0) target = $region5
  $region4: #{model_forward.17} parent=0 // pred_region
    _
  $region5: #{model_forward.17} parent=0 // pred_fallthru
    _
  // Predicated region
  $region6: #{model_forward.17} parent=0 // pred_check
    _
  $region7: #{model_forward.17} parent=0 // pred_check_branch
    %11 = sbr.rel (0) target = $region9
  $region8: #{model_forward.17} parent=0 // pred_region
    _
  $region9: #{model_forward.17} parent=0 // pred_fallthru
    _
  // Predicated region
  $region10: #{model_forward.17} parent=0 // pred_check
    _
  $region11: #{model_forward.17} parent=0 // pred_check_branch
    %13 = sbr.rel (0) target = $region13
  $region12: #{model_forward.17} parent=0 // pred_region
    _
  $region13: #{model_forward.17} parent=0 // pred_fallthru
    _
  %v14 = vld [vmem:[%s0] sm:$0xff]
  %v15 = vld [vmem:[%s1] sm:$0xff]
  %v16 = vld [vmem:[%s1 + $0x8] sm:$0xff]
  %v17 = vld [vmem:[%s1 + $0x10] sm:$0xff]
  %v18 = vld [vmem:[%s1 + $0x18] sm:$0xff]
  %v19 = vld [vmem:[%s1 + $0x20] sm:$0xff]
  %v20 = vld [vmem:[%s1 + $0x28] sm:$0xff]
  %v21 = vld [vmem:[%s1 + $0x30] sm:$0xff]
  %v22 = vld [vmem:[%s1 + $0x38] sm:$0xff]
  %v23 = vld [vmem:[%s1 + $0x40] sm:$0xff]
  %v24 = vld [vmem:[%s1 + $0x48] sm:$0xff]
  %v25 = vld [vmem:[%s1 + $0x50] sm:$0xff]
  %v26 = vld [vmem:[%s1 + $0x58] sm:$0xff]
  %v27 = vld [vmem:[%s1 + $0x60] sm:$0xff]
  %v28 = vld [vmem:[%s1 + $0x68] sm:$0xff]
  %v29 = vld [vmem:[%s1 + $0x70] sm:$0xff]
  %v30 = vld [vmem:[%s1 + $0x78] sm:$0xff]
  %v31 = vld [vmem:[%s2] sm:$0x1]
  %v33 = vlaneseq
  %v34 = vshrl.u32 %v33, 7
  %v35 = vsub.s32 0, %v34
  %v36 = vrot.slane %v31, %v35
  %38 = vmatprep.subr.mxu0 0.0
  %39 = vmatpush1.msra.mxu0 %v15
  %40 = vmatprep.subr.mxu0 0.0
  %41 = vmatpush1.msra.mxu0 %v16
  %42 = vmatprep.subr.mxu0 0.0
  %43 = vmatpush1.msra.mxu0 %v17
  %44 = vmatprep.subr.mxu0 0.0
  %45 = vmatpush1.msra.mxu0 %v18
  %46 = vmatprep.subr.mxu0 0.0
  %47 = vmatpush1.msra.mxu0 %v19
  %48 = vmatprep.subr.mxu0 0.0
  %49 = vmatpush1.msra.mxu0 %v20
  %50 = vmatprep.subr.mxu0 0.0
  %51 = vmatpush1.msra.mxu0 %v21
  %52 = vmatprep.subr.mxu0 0.0
  %53 = vmatpush1.msra.mxu0 %v22
  %54 = vmatprep.subr.mxu0 0.0
  %55 = vmatpush1.msra.mxu0 %v23
  %56 = vmatprep.subr.mxu0 0.0
  %57 = vmatpush1.msra.mxu0 %v24
  %58 = vmatprep.subr.mxu0 0.0
  %59 = vmatpush1.msra.mxu0 %v25
  %60 = vmatprep.subr.mxu0 0.0
  %61 = vmatpush1.msra.mxu0 %v26
  %62 = vmatprep.subr.mxu0 0.0
  %63 = vmatpush1.msra.mxu0 %v27
  %64 = vmatprep.subr.mxu0 0.0
  %65 = vmatpush1.msra.mxu0 %v28
  %66 = vmatprep.subr.mxu0 0.0
  %67 = vmatpush1.msra.mxu0 %v29
  %68 = vmatprep.subr.mxu0 0.0
  %69 = vmatpush1.msra.mxu0 %v30
  %70 = vmatprep.subr.mxu0 0.0
  %71 = vmatpush1.msra.mxu0 0.0
  %72 = vmatprep.subr.mxu0 0.0
  %73 = vmatpush1.msra.mxu0 0.0
  %74 = vmatprep.subr.mxu0 0.0
  %75 = vmatpush1.msra.mxu0 0.0
  %76 = vmatprep.subr.mxu0 0.0
  %77 = vmatpush1.msra.mxu0 0.0
  %78 = vmatprep.subr.mxu0 0.0
  %79 = vmatpush1.msra.mxu0 0.0
  %80 = vmatprep.subr.mxu0 0.0
  %81 = vmatpush1.msra.mxu0 0.0
  %82 = vmatprep.subr.mxu0 0.0
  %83 = vmatpush1.msra.mxu0 0.0
  %84 = vmatprep.subr.mxu0 0.0
  %85 = vmatpush1.msra.mxu0 0.0
  %86 = vmatprep.subr.mxu0 0.0
  %87 = vmatpush1.msra.mxu0 0.0
  %88 = vmatprep.subr.mxu0 0.0
  %89 = vmatpush1.msra.mxu0 0.0
  %90 = vmatprep.subr.mxu0 0.0
  %91 = vmatpush1.msra.mxu0 0.0
  %92 = vmatprep.subr.mxu0 0.0
  %93 = vmatpush1.msra.mxu0 0.0
  %94 = vmatprep.subr.mxu0 0.0
  %95 = vmatpush1.msra.mxu0 0.0
  %96 = vmatprep.subr.mxu0 0.0
  %97 = vmatpush1.msra.mxu0 0.0
  %98 = vmatprep.subr.mxu0 0.0
  %99 = vmatpush1.msra.mxu0 0.0
  %100 = vmatprep.subr.mxu0 0.0
  %101 = vmatpush1.msra.mxu0 0.0
  %102 = vmatprep.mubr.f32.mxu0 0.0
  %103 = vmatmul.mubr.f32.gmra.mrb[0].mxu0 %v14
  %v104 = vpop.f32.mrb[0].mxu0
  %v105 = vadd.f32 %v36, %v104
  %v106 = vpop.f32.mrb[0].mxu0
  %107 = vdwg.mxu0
  %vm108 = vcmask 130048
  %109 = vst.msk [vmem:[%s3] sm:$0xff] %vm108, %v105
  // Predicated region
  $region14: #{model_forward.17} parent=0 // pred_check
    _
  $region15: #{model_forward.17} parent=0 // pred_check_branch
    %111 = sbr.rel (0) target = $region17
  $region16: #{model_forward.17} parent=0 // pred_region
    _
  $region17: #{model_forward.17} parent=0 // pred_fallthru
    _
  // Predicated region
  $region18: #{model_forward.17} parent=0 // pred_check
    _
  $region19: #{model_forward.17} parent=0 // pred_check_branch
    %113 = sbr.rel (0) target = $region21
  $region20: #{model_forward.17} parent=0 // pred_region
    _
  $region21: #{model_forward.17} parent=0 // pred_fallthru
    _

// kernel: model_forward.18
$region0: #{model_forward.18}
  #allocation0 [shape = 'u32[]', space=smem, size = 0x4, offset = 0x4, fixed_abs, tag = 'smem constant byte address 0x4 - core index']
  #allocation1 [shape = 'u32[144,128]{1,0:T(1,128)}', space=vmem, size = 0x12000, scoped, tag = 'internal scratch']
  %s0 = inlined_call_operand.vmem [shape: f32[8,16], index: 0, kind: input, shape index: {}]
  %s1 = inlined_call_operand.vmem [shape: f32[16,16], index: 1, kind: input, shape index: {}]
  %s2 = inlined_call_operand.vmem [shape: f32[8,16], index: 2, kind: output, shape index: {0}]
  %s3 = inlined_call_operand.vmem [shape: f32[8,16], index: 3, kind: output, shape index: {1}]
  %4 = xla_tuple %s2, %s3
  %s5 = sld [smem:[#allocation0]]
  $region26: #{model_forward.18} parent=0
    _
  %s7 = ssub.s32 1, %s5
  %s8 = scalar_select 0, %s7, %s5
  // Predicated region
  $region2: #{model_forward.18} parent=0 // pred_check
    _
  $region3: #{model_forward.18} parent=0 // pred_check_branch
    %10 = sbr.rel (0) target = $region5
  $region4: #{model_forward.18} parent=0 // pred_region
    _
  $region5: #{model_forward.18} parent=0 // pred_fallthru
    _
  // Predicated region
  $region6: #{model_forward.18} parent=0 // pred_check
    _
  $region7: #{model_forward.18} parent=0 // pred_check_branch
    %12 = sbr.rel (0) target = $region9
  $region8: #{model_forward.18} parent=0 // pred_region
    _
  $region9: #{model_forward.18} parent=0 // pred_fallthru
    _
  %v13 = vld [vmem:[%s0] sm:$0xff]
  %v14 = vld [vmem:[%s1] sm:$0xff]
  %v15 = vld [vmem:[%s1 + $0x8] sm:$0xff]
  %v16 = vmul.f32 %v13, %v13
  %vm17 = vcmask 130048
  %v18 = vsel %vm17, %v16, 0.0
  %19 = vadd.xlane.f32.xlu0 %v18
  %v20 = vpop.xlane.xlu0 %19
  %v21 = vmul.f32 %v14, %v14
  %v22 = vmul.f32 %v15, %v15
  %v23 = vsel %vm17, %v21, 0.0
  %24 = vadd.xlane.f32.xlu0 %v23
  %v25 = vpop.xlane.xlu0 %24
  %v26 = vsel %vm17, %v22, 0.0
  %27 = vadd.xlane.f32.xlu0 %v26
  %v28 = vpop.xlane.xlu0 %27
  %v30 = vsel %vm17, %v13, 0
  %v33 = vsel %vm17, %v14, 0
  %v36 = vsel %vm17, %v15, 0
  %38 = vmatprep.subr.mxu0 0.0
  %39 = vmatpush1.xpose.msra.mxu0 %v33
  %40 = vmatprep.subr.mxu0 0.0
  %41 = vmatpush1.xpose.msra.mxu0 %v36
  %42 = vmatprep.subr.mxu0 0.0
  %43 = vmatpush1.xpose.msra.mxu0 0.0
  %44 = vmatprep.subr.mxu0 0.0
  %45 = vmatpush1.xpose.msra.mxu0 0.0
  %46 = vmatprep.subr.mxu0 0.0
  %47 = vmatpush1.xpose.msra.mxu0 0.0
  %48 = vmatprep.subr.mxu0 0.0
  %49 = vmatpush1.xpose.msra.mxu0 0.0
  %50 = vmatprep.subr.mxu0 0.0
  %51 = vmatpush1.xpose.msra.mxu0 0.0
  %52 = vmatprep.subr.mxu0 0.0
  %53 = vmatpush1.xpose.msra.mxu0 0.0
  %54 = vmatprep.subr.mxu0 0.0
  %55 = vmatpush1.xpose.msra.mxu0 0.0
  %56 = vmatprep.subr.mxu0 0.0
  %57 = vmatpush1.xpose.msra.mxu0 0.0
  %58 = vmatprep.subr.mxu0 0.0
  %59 = vmatpush1.xpose.msra.mxu0 0.0
  %60 = vmatprep.subr.mxu0 0.0
  %61 = vmatpush1.xpose.msra.mxu0 0.0
  %62 = vmatprep.subr.mxu0 0.0
  %63 = vmatpush1.xpose.msra.mxu0 0.0
  %64 = vmatprep.subr.mxu0 0.0
  %65 = vmatpush1.xpose.msra.mxu0 0.0
  %66 = vmatprep.subr.mxu0 0.0
  %67 = vmatpush1.xpose.msra.mxu0 0.0
  %68 = vmatprep.subr.mxu0 0.0
  %69 = vmatpush1.xpose.msra.mxu0 0.0
  %70 = vmatprep.subr.mxu0 0.0
  %71 = vmatpush1.xpose.msra.mxu0 0.0
  %72 = vmatprep.subr.mxu0 0.0
  %73 = vmatpush1.xpose.msra.mxu0 0.0
  %74 = vmatprep.subr.mxu0 0.0
  %75 = vmatpush1.xpose.msra.mxu0 0.0
  %76 = vmatprep.subr.mxu0 0.0
  %77 = vmatpush1.xpose.msra.mxu0 0.0
  %78 = vmatprep.subr.mxu0 0.0
  %79 = vmatpush1.xpose.msra.mxu0 0.0
  %80 = vmatprep.subr.mxu0 0.0
  %81 = vmatpush1.xpose.msra.mxu0 0.0
  %82 = vmatprep.subr.mxu0 0.0
  %83 = vmatpush1.xpose.msra.mxu0 0.0
  %84 = vmatprep.subr.mxu0 0.0
  %85 = vmatpush1.xpose.msra.mxu0 0.0
  %86 = vmatprep.subr.mxu0 0.0
  %87 = vmatpush1.xpose.msra.mxu0 0.0
  %88 = vmatprep.subr.mxu0 0.0
  %89 = vmatpush1.xpose.msra.mxu0 0.0
  %90 = vmatprep.subr.mxu0 0.0
  %91 = vmatpush1.xpose.msra.mxu0 0.0
  %92 = vmatprep.subr.mxu0 0.0
  %93 = vmatpush1.xpose.msra.mxu0 0.0
  %94 = vmatprep.subr.mxu0 0.0
  %95 = vmatpush1.xpose.msra.mxu0 0.0
  %96 = vmatprep.subr.mxu0 0.0
  %97 = vmatpush1.xpose.msra.mxu0 0.0
  %98 = vmatprep.subr.mxu0 0.0
  %99 = vmatpush1.xpose.msra.mxu0 0.0
  %100 = vmatprep.subr.mxu0 0.0
  %101 = vmatpush1.xpose.msra.mxu0 0.0
  %102 = vmatprep.mubr.f32.mxu0 0.0
  %103 = vmatmul.mubr.f32.gmra.mrb[0].mxu0 %v30
  %v104 = vpop.f32.mrb[0].mxu0
  %v105 = vadd.f32 0.0, %v104
  %v106 = vpop.f32.mrb[0].mxu0
  %107 = vdwg.mxu0
  %v110 = vlaneseq
  %v111 = vand.u32 %v110, 127
  %v112 = vlaneseq
  %v113 = vshrl.u32 %v112, 7
  %v114 = vsub.s32 %v111, %v113
  %v115 = vrot.slane %v25, %v114
  %v116 = vadd.s32 %v111, 4294967288
  %v117 = vlaneseq
  %v118 = vshrl.u32 %v117, 7
  %v119 = vsub.s32 %v116, %v118
  %v120 = vrot.slane %v28, %v119
  %vm121 = vcmask 130112
  %v122 = vsel %vm121, %v120, %v115
  %vm123 = vcmask 1042434
  %v124 = vsel %vm123, %v122, %v122
  %vm125 = vcmask 1043459
  %v126 = vsel %vm125, %v122, %v124
  %vm127 = vcmask 1044484
  %v128 = vsel %vm127, %v122, %v126
  %vm129 = vcmask 1045509
  %v130 = vsel %vm129, %v122, %v128
  %vm131 = vcmask 1046534
  %v132 = vsel %vm131, %v122, %v130
  %vm133 = vcmask 1047559
  %v134 = vsel %vm133, %v122, %v132
  %v136 = vadd.f32 %v20, %v134
  %v137 = vmul.f32 %v105, 2.0
  %v138 = vsub.f32 %v136, %v137
  %v139 = vsel %vm17, %v138, inf
  %140 = vmin.xlane.f32.xlu0 %v139
  %v141 = vpop.xlane.xlu0 %140
  %vm142 = vcmp.le.f32.partialorder %v138, %v141
  %v143 = vsel %vm142, %v111, 16
  %v144 = vsel %vm17, %v143, 2147483647
  %v145 = vand.u32 %v144, 65535
  %v146 = vshra.s32 %v144, 16
  %v147 = vcvt.s32.f32 %v145
  %v148 = vcvt.s32.f32 %v146
  %149 = vmin.xlane.f32.xlu0 %v148
  %v150 = vpop.xlane.xlu0 %149
  %vm151 = vcmp.eq.f32.partialorder %v148, %v150
  %v152 = vsel %vm151, %v147, inf
  %153 = vmin.xlane.f32.xlu0 %v152
  %v154 = vpop.xlane.xlu0 %153
  %v155 = vcvt.f32.s32 %v154
  %v156 = vcvt.f32.s32 %v150
  %v157 = vshll.u32 %v156, 16
  %v158 = vadd.s32 %v157, %v155
  %vm159 = vcmp.eq.s32.totalorder %v111, %v158
  %v160 = vsel %vm159, 1, 0
  %v161 = vcvt.s32.f32 %v160
  %162 = vst.msk [vmem:[%s3] sm:$0xff] %vm17, %v161
  %v164 = vsel %vm17, %v161, 0
  %166 = vmatprep.subr.mxu0 0.0
  %167 = vmatpush1.msra.mxu0 %v14
  %168 = vmatprep.subr.mxu0 0.0
  %169 = vmatpush1.msra.mxu0 %v15
  %170 = vmatprep.subr.mxu0 0.0
  %171 = vmatpush1.msra.mxu0 0.0
  %172 = vmatprep.subr.mxu0 0.0
  %173 = vmatpush1.msra.mxu0 0.0
  %174 = vmatprep.subr.mxu0 0.0
  %175 = vmatpush1.msra.mxu0 0.0
  %176 = vmatprep.subr.mxu0 0.0
  %177 = vmatpush1.msra.mxu0 0.0
  %178 = vmatprep.subr.mxu0 0.0
  %179 = vmatpush1.msra.mxu0 0.0
  %180 = vmatprep.subr.mxu0 0.0
  %181 = vmatpush1.msra.mxu0 0.0
  %182 = vmatprep.subr.mxu0 0.0
  %183 = vmatpush1.msra.mxu0 0.0
  %184 = vmatprep.subr.mxu0 0.0
  %185 = vmatpush1.msra.mxu0 0.0
  %186 = vmatprep.subr.mxu0 0.0
  %187 = vmatpush1.msra.mxu0 0.0
  %188 = vmatprep.subr.mxu0 0.0
  %189 = vmatpush1.msra.mxu0 0.0
  %190 = vmatprep.subr.mxu0 0.0
  %191 = vmatpush1.msra.mxu0 0.0
  %192 = vmatprep.subr.mxu0 0.0
  %193 = vmatpush1.msra.mxu0 0.0
  %194 = vmatprep.subr.mxu0 0.0
  %195 = vmatpush1.msra.mxu0 0.0
  %196 = vmatprep.subr.mxu0 0.0
  %197 = vmatpush1.msra.mxu0 0.0
  %198 = vmatprep.subr.mxu0 0.0
  %199 = vmatpush1.msra.mxu0 0.0
  %200 = vmatprep.subr.mxu0 0.0
  %201 = vmatpush1.msra.mxu0 0.0
  %202 = vmatprep.subr.mxu0 0.0
  %203 = vmatpush1.msra.mxu0 0.0
  %204 = vmatprep.subr.mxu0 0.0
  %205 = vmatpush1.msra.mxu0 0.0
  %206 = vmatprep.subr.mxu0 0.0
  %207 = vmatpush1.msra.mxu0 0.0
  %208 = vmatprep.subr.mxu0 0.0
  %209 = vmatpush1.msra.mxu0 0.0
  %210 = vmatprep.subr.mxu0 0.0
  %211 = vmatpush1.msra.mxu0 0.0
  %212 = vmatprep.subr.mxu0 0.0
  %213 = vmatpush1.msra.mxu0 0.0
  %214 = vmatprep.subr.mxu0 0.0
  %215 = vmatpush1.msra.mxu0 0.0
  %216 = vmatprep.subr.mxu0 0.0
  %217 = vmatpush1.msra.mxu0 0.0
  %218 = vmatprep.subr.mxu0 0.0
  %219 = vmatpush1.msra.mxu0 0.0
  %220 = vmatprep.subr.mxu0 0.0
  %221 = vmatpush1.msra.mxu0 0.0
  %222 = vmatprep.subr.mxu0 0.0
  %223 = vmatpush1.msra.mxu0 0.0
  %224 = vmatprep.subr.mxu0 0.0
  %225 = vmatpush1.msra.mxu0 0.0
  %226 = vmatprep.subr.mxu0 0.0
  %227 = vmatpush1.msra.mxu0 0.0
  %228 = vmatprep.subr.mxu0 0.0
  %229 = vmatpush1.msra.mxu0 0.0
  %230 = vmatprep.mubr.f32.mxu0 0.0
  %231 = vmatmul.mubr.f32.gmra.mrb[0].mxu0 %v164
  %v232 = vpop.f32.mrb[0].mxu0
  %v233 = vadd.f32 0.0, %v232
  %v234 = vpop.f32.mrb[0].mxu0
  %235 = vdwg.mxu0
  %236 = vst.msk [vmem:[%s2] sm:$0xff] %vm17, %v233
  // Predicated region
  $region10: #{model_forward.18} parent=0 // pred_check
    _
  $region11: #{model_forward.18} parent=0 // pred_check_branch
    %238 = sbr.rel (0) target = $region13
  $region12: #{model_forward.18} parent=0 // pred_region
    _
  $region13: #{model_forward.18} parent=0 // pred_fallthru
    _
  // Predicated region
  $region14: #{model_forward.18} parent=0 // pred_check
    _
  $region15: #{model_forward.18} parent=0 // pred_check_branch
    %240 = sbr.rel (0) target = $region17
  $region16: #{model_forward.18} parent=0 // pred_region
    _
  $region17: #{model_forward.18} parent=0 // pred_fallthru
    _
  // Predicated region
  $region18: #{model_forward.18} parent=0 // pred_check
    _
  $region19: #{model_forward.18} parent=0 // pred_check_branch
    %242 = sbr.rel (0) target = $region21
  $region20: #{model_forward.18} parent=0 // pred_region
    _
  $region21: #{model_forward.18} parent=0 // pred_fallthru
    _
  // Predicated region
  $region22: #{model_forward.18} parent=0 // pred_check
    _
  $region23: #{model_forward.18} parent=0 // pred_check_branch
    %244 = sbr.rel (0) target = $region25
  $region24: #{model_forward.18} parent=0 // pred_region
    _
  $region25: #{model_forward.18} parent=0 // pred_fallthru
    _

// kernel: model_forward.19
$region0: #{model_forward.19}
  #allocation0 [shape = 'u32[]', space=smem, size = 0x4, offset = 0x4, fixed_abs, tag = 'smem constant byte address 0x4 - core index']
  #allocation1 [shape = 'u32[144,128]{1,0:T(1,128)}', space=vmem, size = 0x12000, scoped, tag = 'internal scratch']
  %s0 = inlined_call_operand.vmem [shape: f32[8,256], index: 0, kind: input, shape index: {}]
  %s1 = inlined_call_operand.vmem [shape: f32[256,32], index: 1, kind: input, shape index: {}]
  %s2 = inlined_call_operand.vmem [shape: f32[1,32], index: 2, kind: input, shape index: {}]
  %s3 = inlined_call_operand.vmem [shape: f32[8,32], index: 3, kind: output, shape index: {}]
  %s4 = sld [smem:[#allocation0]]
  $region22: #{model_forward.19} parent=0
    _
  %s6 = ssub.s32 1, %s4
  %s7 = scalar_select 0, %s6, %s4
  // Predicated region
  $region2: #{model_forward.19} parent=0 // pred_check
    _
  $region3: #{model_forward.19} parent=0 // pred_check_branch
    %9 = sbr.rel (0) target = $region5
  $region4: #{model_forward.19} parent=0 // pred_region
    _
  $region5: #{model_forward.19} parent=0 // pred_fallthru
    _
  // Predicated region
  $region6: #{model_forward.19} parent=0 // pred_check
    _
  $region7: #{model_forward.19} parent=0 // pred_check_branch
    %11 = sbr.rel (0) target = $region9
  $region8: #{model_forward.19} parent=0 // pred_region
    _
  $region9: #{model_forward.19} parent=0 // pred_fallthru
    _
  // Predicated region
  $region10: #{model_forward.19} parent=0 // pred_check
    _
  $region11: #{model_forward.19} parent=0 // pred_check_branch
    %13 = sbr.rel (0) target = $region13
  $region12: #{model_forward.19} parent=0 // pred_region
    _
  $region13: #{model_forward.19} parent=0 // pred_fallthru
    _
  %v14 = vld [vmem:[%s0] sm:$0xff]
  %v15 = vld [vmem:[%s0 + $0x8] sm:$0xff]
  %v16 = vld [vmem:[%s1] sm:$0xff]
  %v17 = vld [vmem:[%s1 + $0x8] sm:$0xff]
  %v18 = vld [vmem:[%s1 + $0x10] sm:$0xff]
  %v19 = vld [vmem:[%s1 + $0x18] sm:$0xff]
  %v20 = vld [vmem:[%s1 + $0x20] sm:$0xff]
  %v21 = vld [vmem:[%s1 + $0x28] sm:$0xff]
  %v22 = vld [vmem:[%s1 + $0x30] sm:$0xff]
  %v23 = vld [vmem:[%s1 + $0x38] sm:$0xff]
  %v24 = vld [vmem:[%s1 + $0x40] sm:$0xff]
  %v25 = vld [vmem:[%s1 + $0x48] sm:$0xff]
  %v26 = vld [vmem:[%s1 + $0x50] sm:$0xff]
  %v27 = vld [vmem:[%s1 + $0x58] sm:$0xff]
  %v28 = vld [vmem:[%s1 + $0x60] sm:$0xff]
  %v29 = vld [vmem:[%s1 + $0x68] sm:$0xff]
  %v30 = vld [vmem:[%s1 + $0x70] sm:$0xff]
  %v31 = vld [vmem:[%s1 + $0x78] sm:$0xff]
  %v32 = vld [vmem:[%s1 + $0x80] sm:$0xff]
  %v33 = vld [vmem:[%s1 + $0x88] sm:$0xff]
  %v34 = vld [vmem:[%s1 + $0x90] sm:$0xff]
  %v35 = vld [vmem:[%s1 + $0x98] sm:$0xff]
  %v36 = vld [vmem:[%s1 + $0xa0] sm:$0xff]
  %v37 = vld [vmem:[%s1 + $0xa8] sm:$0xff]
  %v38 = vld [vmem:[%s1 + $0xb0] sm:$0xff]
  %v39 = vld [vmem:[%s1 + $0xb8] sm:$0xff]
  %v40 = vld [vmem:[%s1 + $0xc0] sm:$0xff]
  %v41 = vld [vmem:[%s1 + $0xc8] sm:$0xff]
  %v42 = vld [vmem:[%s1 + $0xd0] sm:$0xff]
  %v43 = vld [vmem:[%s1 + $0xd8] sm:$0xff]
  %v44 = vld [vmem:[%s1 + $0xe0] sm:$0xff]
  %v45 = vld [vmem:[%s1 + $0xe8] sm:$0xff]
  %v46 = vld [vmem:[%s1 + $0xf0] sm:$0xff]
  %v47 = vld [vmem:[%s1 + $0xf8] sm:$0xff]
  %v48 = vld [vmem:[%s2] sm:$0x1]
  %v50 = vlaneseq
  %v51 = vshrl.u32 %v50, 7
  %v52 = vsub.s32 0, %v51
  %v53 = vrot.slane %v48, %v52
  %55 = vmatprep.subr.mxu0 0.0
  %56 = vmatpush1.msra.mxu0 %v16
  %57 = vmatprep.subr.mxu0 0.0
  %58 = vmatpush1.msra.mxu0 %v17
  %59 = vmatprep.subr.mxu0 0.0
  %60 = vmatpush1.msra.mxu0 %v18
  %61 = vmatprep.subr.mxu0 0.0
  %62 = vmatpush1.msra.mxu0 %v19
  %63 = vmatprep.subr.mxu0 0.0
  %64 = vmatpush1.msra.mxu0 %v20
  %65 = vmatprep.subr.mxu0 0.0
  %66 = vmatpush1.msra.mxu0 %v21
  %67 = vmatprep.subr.mxu0 0.0
  %68 = vmatpush1.msra.mxu0 %v22
  %69 = vmatprep.subr.mxu0 0.0
  %70 = vmatpush1.msra.mxu0 %v23
  %71 = vmatprep.subr.mxu0 0.0
  %72 = vmatpush1.msra.mxu0 %v24
  %73 = vmatprep.subr.mxu0 0.0
  %74 = vmatpush1.msra.mxu0 %v25
  %75 = vmatprep.subr.mxu0 0.0
  %76 = vmatpush1.msra.mxu0 %v26
  %77 = vmatprep.subr.mxu0 0.0
  %78 = vmatpush1.msra.mxu0 %v27
  %79 = vmatprep.subr.mxu0 0.0
  %80 = vmatpush1.msra.mxu0 %v28
  %81 = vmatprep.subr.mxu0 0.0
  %82 = vmatpush1.msra.mxu0 %v29
  %83 = vmatprep.subr.mxu0 0.0
  %84 = vmatpush1.msra.mxu0 %v30
  %85 = vmatprep.subr.mxu0 0.0
  %86 = vmatpush1.msra.mxu0 %v31
  %87 = vmatprep.subr.mxu0 0.0
  %88 = vmatpush1.msra.mxu0 %v32
  %89 = vmatprep.subr.mxu0 0.0
  %90 = vmatpush1.msra.mxu0 %v33
  %91 = vmatprep.subr.mxu0 0.0
  %92 = vmatpush1.msra.mxu0 %v34
  %93 = vmatprep.subr.mxu0 0.0
  %94 = vmatpush1.msra.mxu0 %v35
  %95 = vmatprep.subr.mxu0 0.0
  %96 = vmatpush1.msra.mxu0 %v36
  %97 = vmatprep.subr.mxu0 0.0
  %98 = vmatpush1.msra.mxu0 %v37
  %99 = vmatprep.subr.mxu0 0.0
  %100 = vmatpush1.msra.mxu0 %v38
  %101 = vmatprep.subr.mxu0 0.0
  %102 = vmatpush1.msra.mxu0 %v39
  %103 = vmatprep.subr.mxu0 0.0
  %104 = vmatpush1.msra.mxu0 %v40
  %105 = vmatprep.subr.mxu0 0.0
  %106 = vmatpush1.msra.mxu0 %v41
  %107 = vmatprep.subr.mxu0 0.0
  %108 = vmatpush1.msra.mxu0 %v42
  %109 = vmatprep.subr.mxu0 0.0
  %110 = vmatpush1.msra.mxu0 %v43
  %111 = vmatprep.subr.mxu0 0.0
  %112 = vmatpush1.msra.mxu0 %v44
  %113 = vmatprep.subr.mxu0 0.0
  %114 = vmatpush1.msra.mxu0 %v45
  %115 = vmatprep.subr.mxu0 0.0
  %116 = vmatpush1.msra.mxu0 %v46
  %117 = vmatprep.subr.mxu0 0.0
  %118 = vmatpush1.msra.mxu0 %v47
  %119 = vmatprep.mubr.f32.mxu0 %v15
  %120 = vmatmul.mubr.f32.gmra.mrb[0].mxu0 %v14
  %v121 = vpop.f32.mrb[0].mxu0
  %v122 = vadd.f32 %v53, %v121
  %v123 = vpop.f32.mrb[0].mxu0
  %124 = vdwg.mxu0
  %vm125 = vcmask 261120
  %126 = vst.msk [vmem:[%s3] sm:$0xff] %vm125, %v122
  // Predicated region
  $region14: #{model_forward.19} parent=0 // pred_check
    _
  $region15: #{model_forward.19} parent=0 // pred_check_branch
    %128 = sbr.rel (0) target = $region17
  $region16: #{model_forward.19} parent=0 // pred_region
    _
  $region17: #{model_forward.19} parent=0 // pred_fallthru
    _
  // Predicated region
  $region18: #{model_forward.19} parent=0 // pred_check
    _
  $region19: #{model_forward.19} parent=0 // pred_check_branch
    %130 = sbr.rel (0) target = $region21
  $region20: #{model_forward.19} parent=0 // pred_region
    _
  $region21: #{model_forward.19} parent=0 // pred_fallthru
    _

// kernel: model_forward.22
$region0: #{model_forward.22}
  #allocation0 [shape = 'u32[]', space=smem, size = 0x4, offset = 0x4, fixed_abs, tag = 'smem constant byte address 0x4 - core index']
  #allocation1 [shape = 'u32[144,128]{1,0:T(1,128)}', space=vmem, size = 0x12000, scoped, tag = 'internal scratch']
  %s0 = inlined_call_operand.vmem [shape: f32[8,128], index: 0, kind: input, shape index: {}]
  %s1 = inlined_call_operand.vmem [shape: f32[128,2304], index: 1, kind: input, shape index: {}]
  %s2 = inlined_call_operand.vmem [shape: f32[1,2304], index: 2, kind: input, shape index: {}]
  %s3 = inlined_call_operand.vmem [shape: f32[8,2304], index: 3, kind: output, shape index: {}]
  %s4 = sld [smem:[#allocation0]]
  $region22: #{model_forward.22} parent=0
    _
  %s6 = ssub.s32 1, %s4
  %s7 = scalar_select 0, %s6, %s4
  // Predicated region
  $region2: #{model_forward.22} parent=0 // pred_check
    _
  $region3: #{model_forward.22} parent=0 // pred_check_branch
    %9 = sbr.rel (0) target = $region5
  $region4: #{model_forward.22} parent=0 // pred_region
    _
  $region5: #{model_forward.22} parent=0 // pred_fallthru
    _
  // Predicated region
  $region6: #{model_forward.22} parent=0 // pred_check
    _
  $region7: #{model_forward.22} parent=0 // pred_check_branch
    %11 = sbr.rel (0) target = $region9
  $region8: #{model_forward.22} parent=0 // pred_region
    _
  $region9: #{model_forward.22} parent=0 // pred_fallthru
    _
  // Predicated region
  $region10: #{model_forward.22} parent=0 // pred_check
    _
  $region11: #{model_forward.22} parent=0 // pred_check_branch
    %13 = sbr.rel (0) target = $region13
  $region12: #{model_forward.22} parent=0 // pred_region
    _
  $region13: #{model_forward.22} parent=0 // pred_fallthru
    _
  %v14 = vld [vmem:[%s0] sm:$0xff]
  %v15 = vld [vmem:[%s1] sm:$0xff]
  %v16 = vld [vmem:[%s1 + $0x8] sm:$0xff]
  %v17 = vld [vmem:[%s1 + $0x10] sm:$0xff]
  %v18 = vld [vmem:[%s1 + $0x18] sm:$0xff]
  %v19 = vld [vmem:[%s1 + $0x20] sm:$0xff]
  %v20 = vld [vmem:[%s1 + $0x28] sm:$0xff]
  %v21 = vld [vmem:[%s1 + $0x30] sm:$0xff]
  %v22 = vld [vmem:[%s1 + $0x38] sm:$0xff]
  %v23 = vld [vmem:[%s1 + $0x40] sm:$0xff]
  %v24 = vld [vmem:[%s1 + $0x48] sm:$0xff]
  %v25 = vld [vmem:[%s1 + $0x50] sm:$0xff]
  %v26 = vld [vmem:[%s1 + $0x58] sm:$0xff]
  %v27 = vld [vmem:[%s1 + $0x60] sm:$0xff]
  %v28 = vld [vmem:[%s1 + $0x68] sm:$0xff]
  %v29 = vld [vmem:[%s1 + $0x70] sm:$0xff]
  %v30 = vld [vmem:[%s1 + $0x78] sm:$0xff]
  %v31 = vld [vmem:[%s1 + $0x80] sm:$0xff]
  %v32 = vld [vmem:[%s1 + $0x88] sm:$0xff]
  %v33 = vld [vmem:[%s1 + $0x90] sm:$0xff]
  %v34 = vld [vmem:[%s1 + $0x98] sm:$0xff]
  %v35 = vld [vmem:[%s1 + $0xa0] sm:$0xff]
  %v36 = vld [vmem:[%s1 + $0xa8] sm:$0xff]
  %v37 = vld [vmem:[%s1 + $0xb0] sm:$0xff]
  %v38 = vld [vmem:[%s1 + $0xb8] sm:$0xff]
  %v39 = vld [vmem:[%s1 + $0xc0] sm:$0xff]
  %v40 = vld [vmem:[%s1 + $0xc8] sm:$0xff]
  %v41 = vld [vmem:[%s1 + $0xd0] sm:$0xff]
  %v42 = vld [vmem:[%s1 + $0xd8] sm:$0xff]
  %v43 = vld [vmem:[%s1 + $0xe0] sm:$0xff]
  %v44 = vld [vmem:[%s1 + $0xe8] sm:$0xff]
  %v45 = vld [vmem:[%s1 + $0xf0] sm:$0xff]
  %v46 = vld [vmem:[%s1 + $0xf8] sm:$0xff]
  %v47 = vld [vmem:[%s1 + $0x100] sm:$0xff]
  %v48 = vld [vmem:[%s1 + $0x108] sm:$0xff]
  %v49 = vld [vmem:[%s1 + $0x110] sm:$0xff]
  %v50 = vld [vmem:[%s1 + $0x118] sm:$0xff]
  %v51 = vld [vmem:[%s1 + $0x120] sm:$0xff]
  %v52 = vld [vmem:[%s1 + $0x128] sm:$0xff]
  %v53 = vld [vmem:[%s1 + $0x130] sm:$0xff]
  %v54 = vld [vmem:[%s1 + $0x138] sm:$0xff]
  %v55 = vld [vmem:[%s1 + $0x140] sm:$0xff]
  %v56 = vld [vmem:[%s1 + $0x148] sm:$0xff]
  %v57 = vld [vmem:[%s1 + $0x150] sm:$0xff]
  %v58 = vld [vmem:[%s1 + $0x158] sm:$0xff]
  %v59 = vld [vmem:[%s1 + $0x160] sm:$0xff]
  %v60 = vld [vmem:[%s1 + $0x168] sm:$0xff]
  %v61 = vld [vmem:[%s1 + $0x170] sm:$0xff]
  %v62 = vld [vmem:[%s1 + $0x178] sm:$0xff]
  %v63 = vld [vmem:[%s1 + $0x180] sm:$0xff]
  %v64 = vld [vmem:[%s1 + $0x188] sm:$0xff]
  %v65 = vld [vmem:[%s1 + $0x190] sm:$0xff]
  %v66 = vld [vmem:[%s1 + $0x198] sm:$0xff]
  %v67 = vld [vmem:[%s1 + $0x1a0] sm:$0xff]
  %v68 = vld [vmem:[%s1 + $0x1a8] sm:$0xff]
  %v69 = vld [vmem:[%s1 + $0x1b0] sm:$0xff]
  %v70 = vld [vmem:[%s1 + $0x1b8] sm:$0xff]
  %v71 = vld [vmem:[%s1 + $0x1c0] sm:$0xff]
  %v72 = vld [vmem:[%s1 + $0x1c8] sm:$0xff]
  %v73 = vld [vmem:[%s1 + $0x1d0] sm:$0xff]
  %v74 = vld [vmem:[%s1 + $0x1d8] sm:$0xff]
  %v75 = vld [vmem:[%s1 + $0x1e0] sm:$0xff]
  %v76 = vld [vmem:[%s1 + $0x1e8] sm:$0xff]
  %v77 = vld [vmem:[%s1 + $0x1f0] sm:$0xff]
  %v78 = vld [vmem:[%s1 + $0x1f8] sm:$0xff]
  %v79 = vld [vmem:[%s1 + $0x200] sm:$0xff]
  %v80 = vld [vmem:[%s1 + $0x208] sm:$0xff]
  %v81 = vld [vmem:[%s1 + $0x210] sm:$0xff]
  %v82 = vld [vmem:[%s1 + $0x218] sm:$0xff]
  %v83 = vld [vmem:[%s1 + $0x220] sm:$0xff]
  %v84 = vld [vmem:[%s1 + $0x228] sm:$0xff]
  %v85 = vld [vmem:[%s1 + $0x230] sm:$0xff]
  %v86 = vld [vmem:[%s1 + $0x238] sm:$0xff]
  %v87 = vld [vmem:[%s1 + $0x240] sm:$0xff]
  %v88 = vld [vmem:[%s1 + $0x248] sm:$0xff]
  %v89 = vld [vmem:[%s1 + $0x250] sm:$0xff]
  %v90 = vld [vmem:[%s1 + $0x258] sm:$0xff]
  %v91 = vld [vmem:[%s1 + $0x260] sm:$0xff]
  %v92 = vld [vmem:[%s1 + $0x268] sm:$0xff]
  %v93 = vld [vmem:[%s1 + $0x270] sm:$0xff]
  %v94 = vld [vmem:[%s1 + $0x278] sm:$0xff]
  %v95 = vld [vmem:[%s1 + $0x280] sm:$0xff]
  %v96 = vld [vmem:[%s1 + $0x288] sm:$0xff]
  %v97 = vld [vmem:[%s1 + $0x290] sm:$0xff]
  %v98 = vld [vmem:[%s1 + $0x298] sm:$0xff]
  %v99 = vld [vmem:[%s1 + $0x2a0] sm:$0xff]
  %v100 = vld [vmem:[%s1 + $0x2a8] sm:$0xff]
  %v101 = vld [vmem:[%s1 + $0x2b0] sm:$0xff]
  %v102 = vld [vmem:[%s1 + $0x2b8] sm:$0xff]
  %v103 = vld [vmem:[%s1 + $0x2c0] sm:$0xff]
  %v104 = vld [vmem:[%s1 + $0x2c8] sm:$0xff]
  %v105 = vld [vmem:[%s1 + $0x2d0] sm:$0xff]
  %v106 = vld [vmem:[%s1 + $0x2d8] sm:$0xff]
  %v107 = vld [vmem:[%s1 + $0x2e0] sm:$0xff]
  %v108 = vld [vmem:[%s1 + $0x2e8] sm:$0xff]
  %v109 = vld [vmem:[%s1 + $0x2f0] sm:$0xff]
  %v110 = vld [vmem:[%s1 + $0x2f8] sm:$0xff]
  %v111 = vld [vmem:[%s1 + $0x300] sm:$0xff]
  %v112 = vld [vmem:[%s1 + $0x308] sm:$0xff]
  %v113 = vld [vmem:[%s1 + $0x310] sm:$0xff]
  %v114 = vld [vmem:[%s1 + $0x318] sm:$0xff]
  %v115 = vld [vmem:[%s1 + $0x320] sm:$0xff]
  %v116 = vld [vmem:[%s1 + $0x328] sm:$0xff]
  %v117 = vld [vmem:[%s1 + $0x330] sm:$0xff]
  %v118 = vld [vmem:[%s1 + $0x338] sm:$0xff]
  %v119 = vld [vmem:[%s1 + $0x340] sm:$0xff]
  %v120 = vld [vmem:[%s1 + $0x348] sm:$0xff]
  %v121 = vld [vmem:[%s1 + $0x350] sm:$0xff]
  %v122 = vld [vmem:[%s1 + $0x358] sm:$0xff]
  %v123 = vld [vmem:[%s1 + $0x360] sm:$0xff]
  %v124 = vld [vmem:[%s1 + $0x368] sm:$0xff]
  %v125 = vld [vmem:[%s1 + $0x370] sm:$0xff]
  %v126 = vld [vmem:[%s1 + $0x378] sm:$0xff]
  %v127 = vld [vmem:[%s1 + $0x380] sm:$0xff]
  %v128 = vld [vmem:[%s1 + $0x388] sm:$0xff]
  %v129 = vld [vmem:[%s1 + $0x390] sm:$0xff]
  %v130 = vld [vmem:[%s1 + $0x398] sm:$0xff]
  %v131 = vld [vmem:[%s1 + $0x3a0] sm:$0xff]
  %v132 = vld [vmem:[%s1 + $0x3a8] sm:$0xff]
  %v133 = vld [vmem:[%s1 + $0x3b0] sm:$0xff]
  %v134 = vld [vmem:[%s1 + $0x3b8] sm:$0xff]
  %v135 = vld [vmem:[%s1 + $0x3c0] sm:$0xff]
  %v136 = vld [vmem:[%s1 + $0x3c8] sm:$0xff]
  %v137 = vld [vmem:[%s1 + $0x3d0] sm:$0xff]
  %v138 = vld [vmem:[%s1 + $0x3d8] sm:$0xff]
  %v139 = vld [vmem:[%s1 + $0x3e0] sm:$0xff]
  %v140 = vld [vmem:[%s1 + $0x3e8] sm:$0xff]
  %v141 = vld [vmem:[%s1 + $0x3f0] sm:$0xff]
  %v142 = vld [vmem:[%s1 + $0x3f8] sm:$0xff]
  %v143 = vld [vmem:[%s1 + $0x400] sm:$0xff]
  %v144 = vld [vmem:[%s1 + $0x408] sm:$0xff]
  %v145 = vld [vmem:[%s1 + $0x410] sm:$0xff]
  %v146 = vld [vmem:[%s1 + $0x418] sm:$0xff]
  %v147 = vld [vmem:[%s1 + $0x420] sm:$0xff]
  %v148 = vld [vmem:[%s1 + $0x428] sm:$0xff]
  %v149 = vld [vmem:[%s1 + $0x430] sm:$0xff]
  %v150 = vld [vmem:[%s1 + $0x438] sm:$0xff]
  %v151 = vld [vmem:[%s1 + $0x440] sm:$0xff]
  %v152 = vld [vmem:[%s1 + $0x448] sm:$0xff]
  %v153 = vld [vmem:[%s1 + $0x450] sm:$0xff]
  %v154 = vld [vmem:[%s1 + $0x458] sm:$0xff]
  %v155 = vld [vmem:[%s1 + $0x460] sm:$0xff]
  %v156 = vld [vmem:[%s1 + $0x468] sm:$0xff]
  %v157 = vld [vmem:[%s1 + $0x470] sm:$0xff]
  %v158 = vld [vmem:[%s1 + $0x478] sm:$0xff]
  %v159 = vld [vmem:[%s1 + $0x480] sm:$0xff]
  %v160 = vld [vmem:[%s1 + $0x488] sm:$0xff]
  %v161 = vld [vmem:[%s1 + $0x490] sm:$0xff]
  %v162 = vld [vmem:[%s1 + $0x498] sm:$0xff]
  %v163 = vld [vmem:[%s1 + $0x4a0] sm:$0xff]
  %v164 = vld [vmem:[%s1 + $0x4a8] sm:$0xff]
  %v165 = vld [vmem:[%s1 + $0x4b0] sm:$0xff]
  %v166 = vld [vmem:[%s1 + $0x4b8] sm:$0xff]
  %v167 = vld [vmem:[%s1 + $0x4c0] sm:$0xff]
  %v168 = vld [vmem:[%s1 + $0x4c8] sm:$0xff]
  %v169 = vld [vmem:[%s1 + $0x4d0] sm:$0xff]
  %v170 = vld [vmem:[%s1 + $0x4d8] sm:$0xff]
  %v171 = vld [vmem:[%s1 + $0x4e0] sm:$0xff]
  %v172 = vld [vmem:[%s1 + $0x4e8] sm:$0xff]
  %v173 = vld [vmem:[%s1 + $0x4f0] sm:$0xff]
  %v174 = vld [vmem:[%s1 + $0x4f8] sm:$0xff]
  %v175 = vld [vmem:[%s1 + $0x500] sm:$0xff]
  %v176 = vld [vmem:[%s1 + $0x508] sm:$0xff]
  %v177 = vld [vmem:[%s1 + $0x510] sm:$0xff]
  %v178 = vld [vmem:[%s1 + $0x518] sm:$0xff]
  %v179 = vld [vmem:[%s1 + $0x520] sm:$0xff]
  %v180 = vld [vmem:[%s1 + $0x528] sm:$0xff]
  %v181 = vld [vmem:[%s1 + $0x530] sm:$0xff]
  %v182 = vld [vmem:[%s1 + $0x538] sm:$0xff]
  %v183 = vld [vmem:[%s1 + $0x540] sm:$0xff]
  %v184 = vld [vmem:[%s1 + $0x548] sm:$0xff]
  %v185 = vld [vmem:[%s1 + $0x550] sm:$0xff]
  %v186 = vld [vmem:[%s1 + $0x558] sm:$0xff]
  %v187 = vld [vmem:[%s1 + $0x560] sm:$0xff]
  %v188 = vld [vmem:[%s1 + $0x568] sm:$0xff]
  %v189 = vld [vmem:[%s1 + $0x570] sm:$0xff]
  %v190 = vld [vmem:[%s1 + $0x578] sm:$0xff]
  %v191 = vld [vmem:[%s1 + $0x580] sm:$0xff]
  %v192 = vld [vmem:[%s1 + $0x588] sm:$0xff]
  %v193 = vld [vmem:[%s1 + $0x590] sm:$0xff]
  %v194 = vld [vmem:[%s1 + $0x598] sm:$0xff]
  %v195 = vld [vmem:[%s1 + $0x5a0] sm:$0xff]
  %v196 = vld [vmem:[%s1 + $0x5a8] sm:$0xff]
  %v197 = vld [vmem:[%s1 + $0x5b0] sm:$0xff]
  %v198 = vld [vmem:[%s1 + $0x5b8] sm:$0xff]
  %v199 = vld [vmem:[%s1 + $0x5c0] sm:$0xff]
  %v200 = vld [vmem:[%s1 + $0x5c8] sm:$0xff]
  %v201 = vld [vmem:[%s1 + $0x5d0] sm:$0xff]
  %v202 = vld [vmem:[%s1 + $0x5d8] sm:$0xff]
  %v203 = vld [vmem:[%s1 + $0x5e0] sm:$0xff]
  %v204 = vld [vmem:[%s1 + $0x5e8] sm:$0xff]
  %v205 = vld [vmem:[%s1 + $0x5f0] sm:$0xff]
  %v206 = vld [vmem:[%s1 + $0x5f8] sm:$0xff]
  %v207 = vld [vmem:[%s1 + $0x600] sm:$0xff]
  %v208 = vld [vmem:[%s1 + $0x608] sm:$0xff]
  %v209 = vld [vmem:[%s1 + $0x610] sm:$0xff]
  %v210 = vld [vmem:[%s1 + $0x618] sm:$0xff]
  %v211 = vld [vmem:[%s1 + $0x620] sm:$0xff]
  %v212 = vld [vmem:[%s1 + $0x628] sm:$0xff]
  %v213 = vld [vmem:[%s1 + $0x630] sm:$0xff]
  %v214 = vld [vmem:[%s1 + $0x638] sm:$0xff]
  %v215 = vld [vmem:[%s1 + $0x640] sm:$0xff]
  %v216 = vld [vmem:[%s1 + $0x648] sm:$0xff]
  %v217 = vld [vmem:[%s1 + $0x650] sm:$0xff]
  %v218 = vld [vmem:[%s1 + $0x658] sm:$0xff]
  %v219 = vld [vmem:[%s1 + $0x660] sm:$0xff]
  %v220 = vld [vmem:[%s1 + $0x668] sm:$0xff]
  %v221 = vld [vmem:[%s1 + $0x670] sm:$0xff]
  %v222 = vld [vmem:[%s1 + $0x678] sm:$0xff]
  %v223 = vld [vmem:[%s1 + $0x680] sm:$0xff]
  %v224 = vld [vmem:[%s1 + $0x688] sm:$0xff]
  %v225 = vld [vmem:[%s1 + $0x690] sm:$0xff]
  %v226 = vld [vmem:[%s1 + $0x698] sm:$0xff]
  %v227 = vld [vmem:[%s1 + $0x6a0] sm:$0xff]
  %v228 = vld [vmem:[%s1 + $0x6a8] sm:$0xff]
  %v229 = vld [vmem:[%s1 + $0x6b0] sm:$0xff]
  %v230 = vld [vmem:[%s1 + $0x6b8] sm:$0xff]
  %v231 = vld [vmem:[%s1 + $0x6c0] sm:$0xff]
  %v232 = vld [vmem:[%s1 + $0x6c8] sm:$0xff]
  %v233 = vld [vmem:[%s1 + $0x6d0] sm:$0xff]
  %v234 = vld [vmem:[%s1 + $0x6d8] sm:$0xff]
  %v235 = vld [vmem:[%s1 + $0x6e0] sm:$0xff]
  %v236 = vld [vmem:[%s1 + $0x6e8] sm:$0xff]
  %v237 = vld [vmem:[%s1 + $0x6f0] sm:$0xff]
  %v238 = vld [vmem:[%s1 + $0x6f8] sm:$0xff]
  %v239 = vld [vmem:[%s1 + $0x700] sm:$0xff]
  %v240 = vld [vmem:[%s1 + $0x708] sm:$0xff]
  %v241 = vld [vmem:[%s1 + $0x710] sm:$0xff]
  %v242 = vld [vmem:[%s1 + $0x718] sm:$0xff]
  %v243 = vld [vmem:[%s1 + $0x720] sm:$0xff]
  %v244 = vld [vmem:[%s1 + $0x728] sm:$0xff]
  %v245 = vld [vmem:[%s1 + $0x730] sm:$0xff]
  %v246 = vld [vmem:[%s1 + $0x738] sm:$0xff]
  %v247 = vld [vmem:[%s1 + $0x740] sm:$0xff]
  %v248 = vld [vmem:[%s1 + $0x748] sm:$0xff]
  %v249 = vld [vmem:[%s1 + $0x750] sm:$0xff]
  %v250 = vld [vmem:[%s1 + $0x758] sm:$0xff]
  %v251 = vld [vmem:[%s1 + $0x760] sm:$0xff]
  %v252 = vld [vmem:[%s1 + $0x768] sm:$0xff]
  %v253 = vld [vmem:[%s1 + $0x770] sm:$0xff]
  %v254 = vld [vmem:[%s1 + $0x778] sm:$0xff]
  %v255 = vld [vmem:[%s1 + $0x780] sm:$0xff]
  %v256 = vld [vmem:[%s1 + $0x788] sm:$0xff]
  %v257 = vld [vmem:[%s1 + $0x790] sm:$0xff]
  %v258 = vld [vmem:[%s1 + $0x798] sm:$0xff]
  %v259 = vld [vmem:[%s1 + $0x7a0] sm:$0xff]
  %v260 = vld [vmem:[%s1 + $0x7a8] sm:$0xff]
  %v261 = vld [vmem:[%s1 + $0x7b0] sm:$0xff]
  %v262 = vld [vmem:[%s1 + $0x7b8] sm:$0xff]
  %v263 = vld [vmem:[%s1 + $0x7c0] sm:$0xff]
  %v264 = vld [vmem:[%s1 + $0x7c8] sm:$0xff]
  %v265 = vld [vmem:[%s1 + $0x7d0] sm:$0xff]
  %v266 = vld [vmem:[%s1 + $0x7d8] sm:$0xff]
  %v267 = vld [vmem:[%s1 + $0x7e0] sm:$0xff]
  %v268 = vld [vmem:[%s1 + $0x7e8] sm:$0xff]
  %v269 = vld [vmem:[%s1 + $0x7f0] sm:$0xff]
  %v270 = vld [vmem:[%s1 + $0x7f8] sm:$0xff]
  %v271 = vld [vmem:[%s1 + $0x800] sm:$0xff]
  %v272 = vld [vmem:[%s1 + $0x808] sm:$0xff]
  %v273 = vld [vmem:[%s1 + $0x810] sm:$0xff]
  %v274 = vld [vmem:[%s1 + $0x818] sm:$0xff]
  %v275 = vld [vmem:[%s1 + $0x820] sm:$0xff]
  %v276 = vld [vmem:[%s1 + $0x828] sm:$0xff]
  %v277 = vld [vmem:[%s1 + $0x830] sm:$0xff]
  %v278 = vld [vmem:[%s1 + $0x838] sm:$0xff]
  %v279 = vld [vmem:[%s1 + $0x840] sm:$0xff]
  %v280 = vld [vmem:[%s1 + $0x848] sm:$0xff]
  %v281 = vld [vmem:[%s1 + $0x850] sm:$0xff]
  %v282 = vld [vmem:[%s1 + $0x858] sm:$0xff]
  %v283 = vld [vmem:[%s1 + $0x860] sm:$0xff]
  %v284 = vld [vmem:[%s1 + $0x868] sm:$0xff]
  %v285 = vld [vmem:[%s1 + $0x870] sm:$0xff]
  %v286 = vld [vmem:[%s1 + $0x878] sm:$0xff]
  %v287 = vld [vmem:[%s1 + $0x880] sm:$0xff]
  %v288 = vld [vmem:[%s1 + $0x888] sm:$0xff]
  %v289 = vld [vmem:[%s1 + $0x890] sm:$0xff]
  %v290 = vld [vmem:[%s1 + $0x898] sm:$0xff]
  %v291 = vld [vmem:[%s1 + $0x8a0] sm:$0xff]
  %v292 = vld [vmem:[%s1 + $0x8a8] sm:$0xff]
  %v293 = vld [vmem:[%s1 + $0x8b0] sm:$0xff]
  %v294 = vld [vmem:[%s1 + $0x8b8] sm:$0xff]
  %v295 = vld [vmem:[%s1 + $0x8c0] sm:$0xff]
  %v296 = vld [vmem:[%s1 + $0x8c8] sm:$0xff]
  %v297 = vld [vmem:[%s1 + $0x8d0] sm:$0xff]
  %v298 = vld [vmem:[%s1 + $0x8d8] sm:$0xff]
  %v299 = vld [vmem:[%s1 + $0x8e0] sm:$0xff]
  %v300 = vld [vmem:[%s1 + $0x8e8] sm:$0xff]
  %v301 = vld [vmem:[%s1 + $0x8f0] sm:$0xff]
  %v302 = vld [vmem:[%s1 + $0x8f8] sm:$0xff]
  %v303 = vld [vmem:[%s2] sm:$0xff]
  %v304 = vld [vmem:[%s2 + $0x8] sm:$0xff]
  %v305 = vld [vmem:[%s2 + $0x10] sm:$0x3]
  %v309 = vlaneseq
  %v310 = vshrl.u32 %v309, 7
  %v311 = vsub.s32 0, %v310
  %v312 = vrot.slane %v303, %v311
  %v313 = vlaneseq
  %v314 = vshrl.u32 %v313, 7
  %v315 = vsub.s32 1, %v314
  %v316 = vrot.slane %v303, %v315
  %v317 = vlaneseq
  %v318 = vshrl.u32 %v317, 7
  %v319 = vsub.s32 2, %v318
  %v320 = vrot.slane %v303, %v319
  %v321 = vlaneseq
  %v322 = vshrl.u32 %v321, 7
  %v323 = vsub.s32 3, %v322
  %v324 = vrot.slane %v303, %v323
  %v325 = vlaneseq
  %v326 = vshrl.u32 %v325, 7
  %v327 = vsub.s32 4, %v326
  %v328 = vrot.slane %v303, %v327
  %v329 = vlaneseq
  %v330 = vshrl.u32 %v329, 7
  %v331 = vsub.s32 5, %v330
  %v332 = vrot.slane %v303, %v331
  %v333 = vlaneseq
  %v334 = vshrl.u32 %v333, 7
  %v335 = vsub.s32 6, %v334
  %v336 = vrot.slane %v303, %v335
  %v337 = vlaneseq
  %v338 = vshrl.u32 %v337, 7
  %v339 = vsub.s32 7, %v338
  %v340 = vrot.slane %v303, %v339
  %v341 = vlaneseq
  %v342 = vshrl.u32 %v341, 7
  %v343 = vsub.s32 0, %v342
  %v344 = vrot.slane %v304, %v343
  %v345 = vlaneseq
  %v346 = vshrl.u32 %v345, 7
  %v347 = vsub.s32 1, %v346
  %v348 = vrot.slane %v304, %v347
  %v349 = vlaneseq
  %v350 = vshrl.u32 %v349, 7
  %v351 = vsub.s32 2, %v350
  %v352 = vrot.slane %v304, %v351
  %v353 = vlaneseq
  %v354 = vshrl.u32 %v353, 7
  %v355 = vsub.s32 3, %v354
  %v356 = vrot.slane %v304, %v355
  %v357 = vlaneseq
  %v358 = vshrl.u32 %v357, 7
  %v359 = vsub.s32 4, %v358
  %v360 = vrot.slane %v304, %v359
  %v361 = vlaneseq
  %v362 = vshrl.u32 %v361, 7
  %v363 = vsub.s32 5, %v362
  %v364 = vrot.slane %v304, %v363
  %v365 = vlaneseq
  %v366 = vshrl.u32 %v365, 7
  %v367 = vsub.s32 6, %v366
  %v368 = vrot.slane %v304, %v367
  %v369 = vlaneseq
  %v370 = vshrl.u32 %v369, 7
  %v371 = vsub.s32 7, %v370
  %v372 = vrot.slane %v304, %v371
  %v373 = vlaneseq
  %v374 = vshrl.u32 %v373, 7
  %v375 = vsub.s32 0, %v374
  %v376 = vrot.slane %v305, %v375
  %v377 = vlaneseq
  %v378 = vshrl.u32 %v377, 7
  %v379 = vsub.s32 1, %v378
  %v380 = vrot.slane %v305, %v379
  %399 = vmatprep.subr.mxu0 %v16
  %400 = vmatpush1.msra.mxu0 %v15
  %401 = vmatprep.subr.mxu0 %v34
  %402 = vmatpush1.msra.mxu0 %v33
  %403 = vmatprep.subr.mxu0 %v52
  %404 = vmatpush1.msra.mxu0 %v51
  %405 = vmatprep.subr.mxu0 %v70
  %406 = vmatpush1.msra.mxu0 %v69
  %407 = vmatprep.subr.mxu0 %v88
  %408 = vmatpush1.msra.mxu0 %v87
  %409 = vmatprep.subr.mxu0 %v106
  %410 = vmatpush1.msra.mxu0 %v105
  %411 = vmatprep.subr.mxu0 %v124
  %412 = vmatpush1.msra.mxu0 %v123
  %413 = vmatprep.subr.mxu0 %v142
  %414 = vmatpush1.msra.mxu0 %v141
  %415 = vmatprep.subr.mxu0 %v160
  %416 = vmatpush1.msra.mxu0 %v159
  %417 = vmatprep.subr.mxu0 %v178
  %418 = vmatpush1.msra.mxu0 %v177
  %419 = vmatprep.subr.mxu0 %v196
  %420 = vmatpush1.msra.mxu0 %v195
  %421 = vmatprep.subr.mxu0 %v214
  %422 = vmatpush1.msra.mxu0 %v213
  %423 = vmatprep.subr.mxu0 %v232
  %424 = vmatpush1.msra.mxu0 %v231
  %425 = vmatprep.subr.mxu0 %v250
  %426 = vmatpush1.msra.mxu0 %v249
  %427 = vmatprep.subr.mxu0 %v268
  %428 = vmatpush1.msra.mxu0 %v267
  %429 = vmatprep.subr.mxu0 %v286
  %430 = vmatpush1.msra.mxu0 %v285
  %431 = vmatprep.subr.mxu0 0.0
  %432 = vmatpush1.msra.mxu0 0.0
  %433 = vmatprep.subr.mxu0 0.0
  %434 = vmatpush1.msra.mxu0 0.0
  %435 = vmatprep.subr.mxu0 0.0
  %436 = vmatpush1.msra.mxu0 0.0
  %437 = vmatprep.subr.mxu0 0.0
  %438 = vmatpush1.msra.mxu0 0.0
  %439 = vmatprep.subr.mxu0 0.0
  %440 = vmatpush1.msra.mxu0 0.0
  %441 = vmatprep.subr.mxu0 0.0
  %442 = vmatpush1.msra.mxu0 0.0
  %443 = vmatprep.subr.mxu0 0.0
  %444 = vmatpush1.msra.mxu0 0.0
  %445 = vmatprep.subr.mxu0 0.0
  %446 = vmatpush1.msra.mxu0 0.0
  %447 = vmatprep.subr.mxu0 0.0
  %448 = vmatpush1.msra.mxu0 0.0
  %449 = vmatprep.subr.mxu0 0.0
  %450 = vmatpush1.msra.mxu0 0.0
  %451 = vmatprep.subr.mxu0 0.0
  %452 = vmatpush1.msra.mxu0 0.0
  %453 = vmatprep.subr.mxu0 0.0
  %454 = vmatpush1.msra.mxu0 0.0
  %455 = vmatprep.subr.mxu0 0.0
  %456 = vmatpush1.msra.mxu0 0.0
  %457 = vmatprep.subr.mxu0 0.0
  %458 = vmatpush1.msra.mxu0 0.0
  %459 = vmatprep.subr.mxu0 0.0
  %460 = vmatpush1.msra.mxu0 0.0
  %461 = vmatprep.subr.mxu0 0.0
  %462 = vmatpush1.msra.mxu0 0.0
  %463 = vmatprep.mubr.f32.mxu0 0.0
  %464 = vmatmul.mubr.f32.gmra.mrb[0].mxu0 %v14
  %v465 = vpop.f32.mrb[0].mxu0
  %v466 = vadd.f32 %v312, %v465
  %v467 = vpop.f32.mrb[0].mxu0
  %v468 = vadd.f32 %v316, %v467
  %469 = vdwg.mxu0
  %470 = vmatprep.subr.mxu0 %v18
  %471 = vmatpush1.msra.mxu0 %v17
  %472 = vmatprep.subr.mxu0 %v36
  %473 = vmatpush1.msra.mxu0 %v35
  %474 = vmatprep.subr.mxu0 %v54
  %475 = vmatpush1.msra.mxu0 %v53
  %476 = vmatprep.subr.mxu0 %v72
  %477 = vmatpush1.msra.mxu0 %v71
  %478 = vmatprep.subr.mxu0 %v90
  %479 = vmatpush1.msra.mxu0 %v89
  %480 = vmatprep.subr.mxu0 %v108
  %481 = vmatpush1.msra.mxu0 %v107
  %482 = vmatprep.subr.mxu0 %v126
  %483 = vmatpush1.msra.mxu0 %v125
  %484 = vmatprep.subr.mxu0 %v144
  %485 = vmatpush1.msra.mxu0 %v143
  %486 = vmatprep.subr.mxu0 %v162
  %487 = vmatpush1.msra.mxu0 %v161
  %488 = vmatprep.subr.mxu0 %v180
  %489 = vmatpush1.msra.mxu0 %v179
  %490 = vmatprep.subr.mxu0 %v198
  %491 = vmatpush1.msra.mxu0 %v197
  %492 = vmatprep.subr.mxu0 %v216
  %493 = vmatpush1.msra.mxu0 %v215
  %494 = vmatprep.subr.mxu0 %v234
  %495 = vmatpush1.msra.mxu0 %v233
  %496 = vmatprep.subr.mxu0 %v252
  %497 = vmatpush1.msra.mxu0 %v251
  %498 = vmatprep.subr.mxu0 %v270
  %499 = vmatpush1.msra.mxu0 %v269
  %500 = vmatprep.subr.mxu0 %v288
  %501 = vmatpush1.msra.mxu0 %v287
  %502 = vmatprep.subr.mxu0 0.0
  %503 = vmatpush1.msra.mxu0 0.0
  %504 = vmatprep.subr.mxu0 0.0
  %505 = vmatpush1.msra.mxu0 0.0
  %506 = vmatprep.subr.mxu0 0.0
  %507 = vmatpush1.msra.mxu0 0.0
  %508 = vmatprep.subr.mxu0 0.0
  %509 = vmatpush1.msra.mxu0 0.0
  %510 = vmatprep.subr.mxu0 0.0
  %511 = vmatpush1.msra.mxu0 0.0
  %512 = vmatprep.subr.mxu0 0.0
  %513 = vmatpush1.msra.mxu0 0.0
  %514 = vmatprep.subr.mxu0 0.0
  %515 = vmatpush1.msra.mxu0 0.0
  %516 = vmatprep.subr.mxu0 0.0
  %517 = vmatpush1.msra.mxu0 0.0
  %518 = vmatprep.subr.mxu0 0.0
  %519 = vmatpush1.msra.mxu0 0.0
  %520 = vmatprep.subr.mxu0 0.0
  %521 = vmatpush1.msra.mxu0 0.0
  %522 = vmatprep.subr.mxu0 0.0
  %523 = vmatpush1.msra.mxu0 0.0
  %524 = vmatprep.subr.mxu0 0.0
  %525 = vmatpush1.msra.mxu0 0.0
  %526 = vmatprep.subr.mxu0 0.0
  %527 = vmatpush1.msra.mxu0 0.0
  %528 = vmatprep.subr.mxu0 0.0
  %529 = vmatpush1.msra.mxu0 0.0
  %530 = vmatprep.subr.mxu0 0.0
  %531 = vmatpush1.msra.mxu0 0.0
  %532 = vmatprep.subr.mxu0 0.0
  %533 = vmatpush1.msra.mxu0 0.0
  %534 = vmatprep.mubr.f32.mxu0 0.0
  %535 = vmatmul.mubr.f32.gmra.mrb[0].mxu0 %v14
  %v536 = vpop.f32.mrb[0].mxu0
  %v537 = vadd.f32 %v320, %v536
  %v538 = vpop.f32.mrb[0].mxu0
  %v539 = vadd.f32 %v324, %v538
  %540 = vdwg.mxu0
  %541 = vmatprep.subr.mxu0 %v20
  %542 = vmatpush1.msra.mxu0 %v19
  %543 = vmatprep.subr.mxu0 %v38
  %544 = vmatpush1.msra.mxu0 %v37
  %545 = vmatprep.subr.mxu0 %v56
  %546 = vmatpush1.msra.mxu0 %v55
  %547 = vmatprep.subr.mxu0 %v74
  %548 = vmatpush1.msra.mxu0 %v73
  %549 = vmatprep.subr.mxu0 %v92
  %550 = vmatpush1.msra.mxu0 %v91
  %551 = vmatprep.subr.mxu0 %v110
  %552 = vmatpush1.msra.mxu0 %v109
  %553 = vmatprep.subr.mxu0 %v128
  %554 = vmatpush1.msra.mxu0 %v127
  %555 = vmatprep.subr.mxu0 %v146
  %556 = vmatpush1.msra.mxu0 %v145
  %557 = vmatprep.subr.mxu0 %v164
  %558 = vmatpush1.msra.mxu0 %v163
  %559 = vmatprep.subr.mxu0 %v182
  %560 = vmatpush1.msra.mxu0 %v181
  %561 = vmatprep.subr.mxu0 %v200
  %562 = vmatpush1.msra.mxu0 %v199
  %563 = vmatprep.subr.mxu0 %v218
  %564 = vmatpush1.msra.mxu0 %v217
  %565 = vmatprep.subr.mxu0 %v236
  %566 = vmatpush1.msra.mxu0 %v235
  %567 = vmatprep.subr.mxu0 %v254
  %568 = vmatpush1.msra.mxu0 %v253
  %569 = vmatprep.subr.mxu0 %v272
  %570 = vmatpush1.msra.mxu0 %v271
  %571 = vmatprep.subr.mxu0 %v290
  %572 = vmatpush1.msra.mxu0 %v289
  %573 = vmatprep.subr.mxu0 0.0
  %574 = vmatpush1.msra.mxu0 0.0
  %575 = vmatprep.subr.mxu0 0.0
  %576 = vmatpush1.msra.mxu0 0.0
  %577 = vmatprep.subr.mxu0 0.0
  %578 = vmatpush1.msra.mxu0 0.0
  %579 = vmatprep.subr.mxu0 0.0
  %580 = vmatpush1.msra.mxu0 0.0
  %581 = vmatprep.subr.mxu0 0.0
  %582 = vmatpush1.msra.mxu0 0.0
  %583 = vmatprep.subr.mxu0 0.0
  %584 = vmatpush1.msra.mxu0 0.0
  %585 = vmatprep.subr.mxu0 0.0
  %586 = vmatpush1.msra.mxu0 0.0
  %587 = vmatprep.subr.mxu0 0.0
  %588 = vmatpush1.msra.mxu0 0.0
  %589 = vmatprep.subr.mxu0 0.0
  %590 = vmatpush1.msra.mxu0 0.0
  %591 = vmatprep.subr.mxu0 0.0
  %592 = vmatpush1.msra.mxu0 0.0
  %593 = vmatprep.subr.mxu0 0.0
  %594 = vmatpush1.msra.mxu0 0.0
  %595 = vmatprep.subr.mxu0 0.0
  %596 = vmatpush1.msra.mxu0 0.0
  %597 = vmatprep.subr.mxu0 0.0
  %598 = vmatpush1.msra.mxu0 0.0
  %599 = vmatprep.subr.mxu0 0.0
  %600 = vmatpush1.msra.mxu0 0.0
  %601 = vmatprep.subr.mxu0 0.0
  %602 = vmatpush1.msra.mxu0 0.0
  %603 = vmatprep.subr.mxu0 0.0
  %604 = vmatpush1.msra.mxu0 0.0
  %605 = vmatprep.mubr.f32.mxu0 0.0
  %606 = vmatmul.mubr.f32.gmra.mrb[0].mxu0 %v14
  %v607 = vpop.f32.mrb[0].mxu0
  %v608 = vadd.f32 %v328, %v607
  %v609 = vpop.f32.mrb[0].mxu0
  %v610 = vadd.f32 %v332, %v609
  %611 = vdwg.mxu0
  %612 = vmatprep.subr.mxu0 %v22
  %613 = vmatpush1.msra.mxu0 %v21
  %614 = vmatprep.subr.mxu0 %v40
  %615 = vmatpush1.msra.mxu0 %v39
  %616 = vmatprep.subr.mxu0 %v58
  %617 = vmatpush1.msra.mxu0 %v57
  %618 = vmatprep.subr.mxu0 %v76
  %619 = vmatpush1.msra.mxu0 %v75
  %620 = vmatprep.subr.mxu0 %v94
  %621 = vmatpush1.msra.mxu0 %v93
  %622 = vmatprep.subr.mxu0 %v112
  %623 = vmatpush1.msra.mxu0 %v111
  %624 = vmatprep.subr.mxu0 %v130
  %625 = vmatpush1.msra.mxu0 %v129
  %626 = vmatprep.subr.mxu0 %v148
  %627 = vmatpush1.msra.mxu0 %v147
  %628 = vmatprep.subr.mxu0 %v166
  %629 = vmatpush1.msra.mxu0 %v165
  %630 = vmatprep.subr.mxu0 %v184
  %631 = vmatpush1.msra.mxu0 %v183
  %632 = vmatprep.subr.mxu0 %v202
  %633 = vmatpush1.msra.mxu0 %v201
  %634 = vmatprep.subr.mxu0 %v220
  %635 = vmatpush1.msra.mxu0 %v219
  %636 = vmatprep.subr.mxu0 %v238
  %637 = vmatpush1.msra.mxu0 %v237
  %638 = vmatprep.subr.mxu0 %v256
  %639 = vmatpush1.msra.mxu0 %v255
  %640 = vmatprep.subr.mxu0 %v274
  %641 = vmatpush1.msra.mxu0 %v273
  %642 = vmatprep.subr.mxu0 %v292
  %643 = vmatpush1.msra.mxu0 %v291
  %644 = vmatprep.subr.mxu0 0.0
  %645 = vmatpush1.msra.mxu0 0.0
  %646 = vmatprep.subr.mxu0 0.0
  %647 = vmatpush1.msra.mxu0 0.0
  %648 = vmatprep.subr.mxu0 0.0
  %649 = vmatpush1.msra.mxu0 0.0
  %650 = vmatprep.subr.mxu0 0.0
  %651 = vmatpush1.msra.mxu0 0.0
  %652 = vmatprep.subr.mxu0 0.0
  %653 = vmatpush1.msra.mxu0 0.0
  %654 = vmatprep.subr.mxu0 0.0
  %655 = vmatpush1.msra.mxu0 0.0
  %656 = vmatprep.subr.mxu0 0.0
  %657 = vmatpush1.msra.mxu0 0.0
  %658 = vmatprep.subr.mxu0 0.0
  %659 = vmatpush1.msra.mxu0 0.0
  %660 = vmatprep.subr.mxu0 0.0
  %661 = vmatpush1.msra.mxu0 0.0
  %662 = vmatprep.subr.mxu0 0.0
  %663 = vmatpush1.msra.mxu0 0.0
  %664 = vmatprep.subr.mxu0 0.0
  %665 = vmatpush1.msra.mxu0 0.0
  %666 = vmatprep.subr.mxu0 0.0
  %667 = vmatpush1.msra.mxu0 0.0
  %668 = vmatprep.subr.mxu0 0.0
  %669 = vmatpush1.msra.mxu0 0.0
  %670 = vmatprep.subr.mxu0 0.0
  %671 = vmatpush1.msra.mxu0 0.0
  %672 = vmatprep.subr.mxu0 0.0
  %673 = vmatpush1.msra.mxu0 0.0
  %674 = vmatprep.subr.mxu0 0.0
  %675 = vmatpush1.msra.mxu0 0.0
  %676 = vmatprep.mubr.f32.mxu0 0.0
  %677 = vmatmul.mubr.f32.gmra.mrb[0].mxu0 %v14
  %v678 = vpop.f32.mrb[0].mxu0
  %v679 = vadd.f32 %v336, %v678
  %v680 = vpop.f32.mrb[0].mxu0
  %v681 = vadd.f32 %v340, %v680
  %682 = vdwg.mxu0
  %683 = vmatprep.subr.mxu0 %v24
  %684 = vmatpush1.msra.mxu0 %v23
  %685 = vmatprep.subr.mxu0 %v42
  %686 = vmatpush1.msra.mxu0 %v41
  %687 = vmatprep.subr.mxu0 %v60
  %688 = vmatpush1.msra.mxu0 %v59
  %689 = vmatprep.subr.mxu0 %v78
  %690 = vmatpush1.msra.mxu0 %v77
  %691 = vmatprep.subr.mxu0 %v96
  %692 = vmatpush1.msra.mxu0 %v95
  %693 = vmatprep.subr.mxu0 %v114
  %694 = vmatpush1.msra.mxu0 %v113
  %695 = vmatprep.subr.mxu0 %v132
  %696 = vmatpush1.msra.mxu0 %v131
  %697 = vmatprep.subr.mxu0 %v150
  %698 = vmatpush1.msra.mxu0 %v149
  %699 = vmatprep.subr.mxu0 %v168
  %700 = vmatpush1.msra.mxu0 %v167
  %701 = vmatprep.subr.mxu0 %v186
  %702 = vmatpush1.msra.mxu0 %v185
  %703 = vmatprep.subr.mxu0 %v204
  %704 = vmatpush1.msra.mxu0 %v203
  %705 = vmatprep.subr.mxu0 %v222
  %706 = vmatpush1.msra.mxu0 %v221
  %707 = vmatprep.subr.mxu0 %v240
  %708 = vmatpush1.msra.mxu0 %v239
  %709 = vmatprep.subr.mxu0 %v258
  %710 = vmatpush1.msra.mxu0 %v257
  %711 = vmatprep.subr.mxu0 %v276
  %712 = vmatpush1.msra.mxu0 %v275
  %713 = vmatprep.subr.mxu0 %v294
  %714 = vmatpush1.msra.mxu0 %v293
  %715 = vmatprep.subr.mxu0 0.0
  %716 = vmatpush1.msra.mxu0 0.0
  %717 = vmatprep.subr.mxu0 0.0
  %718 = vmatpush1.msra.mxu0 0.0
  %719 = vmatprep.subr.mxu0 0.0
  %720 = vmatpush1.msra.mxu0 0.0
  %721 = vmatprep.subr.mxu0 0.0
  %722 = vmatpush1.msra.mxu0 0.0
  %723 = vmatprep.subr.mxu0 0.0
  %724 = vmatpush1.msra.mxu0 0.0
  %725 = vmatprep.subr.mxu0 0.0
  %726 = vmatpush1.msra.mxu0 0.0
  %727 = vmatprep.subr.mxu0 0.0
  %728 = vmatpush1.msra.mxu0 0.0
  %729 = vmatprep.subr.mxu0 0.0
  %730 = vmatpush1.msra.mxu0 0.0
  %731 = vmatprep.subr.mxu0 0.0
  %732 = vmatpush1.msra.mxu0 0.0
  %733 = vmatprep.subr.mxu0 0.0
  %734 = vmatpush1.msra.mxu0 0.0
  %735 = vmatprep.subr.mxu0 0.0
  %736 = vmatpush1.msra.mxu0 0.0
  %737 = vmatprep.subr.mxu0 0.0
  %738 = vmatpush1.msra.mxu0 0.0
  %739 = vmatprep.subr.mxu0 0.0
  %740 = vmatpush1.msra.mxu0 0.0
  %741 = vmatprep.subr.mxu0 0.0
  %742 = vmatpush1.msra.mxu0 0.0
  %743 = vmatprep.subr.mxu0 0.0
  %744 = vmatpush1.msra.mxu0 0.0
  %745 = vmatprep.subr.mxu0 0.0
  %746 = vmatpush1.msra.mxu0 0.0
  %747 = vmatprep.mubr.f32.mxu0 0.0
  %748 = vmatmul.mubr.f32.gmra.mrb[0].mxu0 %v14
  %v749 = vpop.f32.mrb[0].mxu0
  %v750 = vadd.f32 %v344, %v749
  %v751 = vpop.f32.mrb[0].mxu0
  %v752 = vadd.f32 %v348, %v751
  %753 = vdwg.mxu0
  %754 = vmatprep.subr.mxu0 %v26
  %755 = vmatpush1.msra.mxu0 %v25
  %756 = vmatprep.subr.mxu0 %v44
  %757 = vmatpush1.msra.mxu0 %v43
  %758 = vmatprep.subr.mxu0 %v62
  %759 = vmatpush1.msra.mxu0 %v61
  %760 = vmatprep.subr.mxu0 %v80
  %761 = vmatpush1.msra.mxu0 %v79
  %762 = vmatprep.subr.mxu0 %v98
  %763 = vmatpush1.msra.mxu0 %v97
  %764 = vmatprep.subr.mxu0 %v116
  %765 = vmatpush1.msra.mxu0 %v115
  %766 = vmatprep.subr.mxu0 %v134
  %767 = vmatpush1.msra.mxu0 %v133
  %768 = vmatprep.subr.mxu0 %v152
  %769 = vmatpush1.msra.mxu0 %v151
  %770 = vmatprep.subr.mxu0 %v170
  %771 = vmatpush1.msra.mxu0 %v169
  %772 = vmatprep.subr.mxu0 %v188
  %773 = vmatpush1.msra.mxu0 %v187
  %774 = vmatprep.subr.mxu0 %v206
  %775 = vmatpush1.msra.mxu0 %v205
  %776 = vmatprep.subr.mxu0 %v224
  %777 = vmatpush1.msra.mxu0 %v223
  %778 = vmatprep.subr.mxu0 %v242
  %779 = vmatpush1.msra.mxu0 %v241
  %780 = vmatprep.subr.mxu0 %v260
  %781 = vmatpush1.msra.mxu0 %v259
  %782 = vmatprep.subr.mxu0 %v278
  %783 = vmatpush1.msra.mxu0 %v277
  %784 = vmatprep.subr.mxu0 %v296
  %785 = vmatpush1.msra.mxu0 %v295
  %786 = vmatprep.subr.mxu0 0.0
  %787 = vmatpush1.msra.mxu0 0.0
  %788 = vmatprep.subr.mxu0 0.0
  %789 = vmatpush1.msra.mxu0 0.0
  %790 = vmatprep.subr.mxu0 0.0
  %791 = vmatpush1.msra.mxu0 0.0
  %792 = vmatprep.subr.mxu0 0.0
  %793 = vmatpush1.msra.mxu0 0.0
  %794 = vmatprep.subr.mxu0 0.0
  %795 = vmatpush1.msra.mxu0 0.0
  %796 = vmatprep.subr.mxu0 0.0
  %797 = vmatpush1.msra.mxu0 0.0
  %798 = vmatprep.subr.mxu0 0.0
  %799 = vmatpush1.msra.mxu0 0.0
  %800 = vmatprep.subr.mxu0 0.0
  %801 = vmatpush1.msra.mxu0 0.0
  %802 = vmatprep.subr.mxu0 0.0
  %803 = vmatpush1.msra.mxu0 0.0
  %804 = vmatprep.subr.mxu0 0.0
  %805 = vmatpush1.msra.mxu0 0.0
  %806 = vmatprep.subr.mxu0 0.0
  %807 = vmatpush1.msra.mxu0 0.0
  %808 = vmatprep.subr.mxu0 0.0
  %809 = vmatpush1.msra.mxu0 0.0
  %810 = vmatprep.subr.mxu0 0.0
  %811 = vmatpush1.msra.mxu0 0.0
  %812 = vmatprep.subr.mxu0 0.0
  %813 = vmatpush1.msra.mxu0 0.0
  %814 = vmatprep.subr.mxu0 0.0
  %815 = vmatpush1.msra.mxu0 0.0
  %816 = vmatprep.subr.mxu0 0.0
  %817 = vmatpush1.msra.mxu0 0.0
  %818 = vmatprep.mubr.f32.mxu0 0.0
  %819 = vmatmul.mubr.f32.gmra.mrb[0].mxu0 %v14
  %v820 = vpop.f32.mrb[0].mxu0
  %v821 = vadd.f32 %v352, %v820
  %v822 = vpop.f32.mrb[0].mxu0
  %v823 = vadd.f32 %v356, %v822
  %824 = vdwg.mxu0
  %825 = vmatprep.subr.mxu0 %v28
  %826 = vmatpush1.msra.mxu0 %v27
  %827 = vmatprep.subr.mxu0 %v46
  %828 = vmatpush1.msra.mxu0 %v45
  %829 = vmatprep.subr.mxu0 %v64
  %830 = vmatpush1.msra.mxu0 %v63
  %831 = vmatprep.subr.mxu0 %v82
  %832 = vmatpush1.msra.mxu0 %v81
  %833 = vmatprep.subr.mxu0 %v100
  %834 = vmatpush1.msra.mxu0 %v99
  %835 = vmatprep.subr.mxu0 %v118
  %836 = vmatpush1.msra.mxu0 %v117
  %837 = vmatprep.subr.mxu0 %v136
  %838 = vmatpush1.msra.mxu0 %v135
  %839 = vmatprep.subr.mxu0 %v154
  %840 = vmatpush1.msra.mxu0 %v153
  %841 = vmatprep.subr.mxu0 %v172
  %842 = vmatpush1.msra.mxu0 %v171
  %843 = vmatprep.subr.mxu0 %v190
  %844 = vmatpush1.msra.mxu0 %v189
  %845 = vmatprep.subr.mxu0 %v208
  %846 = vmatpush1.msra.mxu0 %v207
  %847 = vmatprep.subr.mxu0 %v226
  %848 = vmatpush1.msra.mxu0 %v225
  %849 = vmatprep.subr.mxu0 %v244
  %850 = vmatpush1.msra.mxu0 %v243
  %851 = vmatprep.subr.mxu0 %v262
  %852 = vmatpush1.msra.mxu0 %v261
  %853 = vmatprep.subr.mxu0 %v280
  %854 = vmatpush1.msra.mxu0 %v279
  %855 = vmatprep.subr.mxu0 %v298
  %856 = vmatpush1.msra.mxu0 %v297
  %857 = vmatprep.subr.mxu0 0.0
  %858 = vmatpush1.msra.mxu0 0.0
  %859 = vmatprep.subr.mxu0 0.0
  %860 = vmatpush1.msra.mxu0 0.0
  %861 = vmatprep.subr.mxu0 0.0
  %862 = vmatpush1.msra.mxu0 0.0
  %863 = vmatprep.subr.mxu0 0.0
  %864 = vmatpush1.msra.mxu0 0.0
  %865 = vmatprep.subr.mxu0 0.0
  %866 = vmatpush1.msra.mxu0 0.0
  %867 = vmatprep.subr.mxu0 0.0
  %868 = vmatpush1.msra.mxu0 0.0
  %869 = vmatprep.subr.mxu0 0.0
  %870 = vmatpush1.msra.mxu0 0.0
  %871 = vmatprep.subr.mxu0 0.0
  %872 = vmatpush1.msra.mxu0 0.0
  %873 = vmatprep.subr.mxu0 0.0
  %874 = vmatpush1.msra.mxu0 0.0
  %875 = vmatprep.subr.mxu0 0.0
  %876 = vmatpush1.msra.mxu0 0.0
  %877 = vmatprep.subr.mxu0 0.0
  %878 = vmatpush1.msra.mxu0 0.0
  %879 = vmatprep.subr.mxu0 0.0
  %880 = vmatpush1.msra.mxu0 0.0
  %881 = vmatprep.subr.mxu0 0.0
  %882 = vmatpush1.msra.mxu0 0.0
  %883 = vmatprep.subr.mxu0 0.0
  %884 = vmatpush1.msra.mxu0 0.0
  %885 = vmatprep.subr.mxu0 0.0
  %886 = vmatpush1.msra.mxu0 0.0
  %887 = vmatprep.subr.mxu0 0.0
  %888 = vmatpush1.msra.mxu0 0.0
  %889 = vmatprep.mubr.f32.mxu0 0.0
  %890 = vmatmul.mubr.f32.gmra.mrb[0].mxu0 %v14
  %v891 = vpop.f32.mrb[0].mxu0
  %v892 = vadd.f32 %v360, %v891
  %v893 = vpop.f32.mrb[0].mxu0
  %v894 = vadd.f32 %v364, %v893
  %895 = vdwg.mxu0
  %896 = vmatprep.subr.mxu0 %v30
  %897 = vmatpush1.msra.mxu0 %v29
  %898 = vmatprep.subr.mxu0 %v48
  %899 = vmatpush1.msra.mxu0 %v47
  %900 = vmatprep.subr.mxu0 %v66
  %901 = vmatpush1.msra.mxu0 %v65
  %902 = vmatprep.subr.mxu0 %v84
  %903 = vmatpush1.msra.mxu0 %v83
  %904 = vmatprep.subr.mxu0 %v102
  %905 = vmatpush1.msra.mxu0 %v101
  %906 = vmatprep.subr.mxu0 %v120
  %907 = vmatpush1.msra.mxu0 %v119
  %908 = vmatprep.subr.mxu0 %v138
  %909 = vmatpush1.msra.mxu0 %v137
  %910 = vmatprep.subr.mxu0 %v156
  %911 = vmatpush1.msra.mxu0 %v155
  %912 = vmatprep.subr.mxu0 %v174
  %913 = vmatpush1.msra.mxu0 %v173
  %914 = vmatprep.subr.mxu0 %v192
  %915 = vmatpush1.msra.mxu0 %v191
  %916 = vmatprep.subr.mxu0 %v210
  %917 = vmatpush1.msra.mxu0 %v209
  %918 = vmatprep.subr.mxu0 %v228
  %919 = vmatpush1.msra.mxu0 %v227
  %920 = vmatprep.subr.mxu0 %v246
  %921 = vmatpush1.msra.mxu0 %v245
  %922 = vmatprep.subr.mxu0 %v264
  %923 = vmatpush1.msra.mxu0 %v263
  %924 = vmatprep.subr.mxu0 %v282
  %925 = vmatpush1.msra.mxu0 %v281
  %926 = vmatprep.subr.mxu0 %v300
  %927 = vmatpush1.msra.mxu0 %v299
  %928 = vmatprep.subr.mxu0 0.0
  %929 = vmatpush1.msra.mxu0 0.0
  %930 = vmatprep.subr.mxu0 0.0
  %931 = vmatpush1.msra.mxu0 0.0
  %932 = vmatprep.subr.mxu0 0.0
  %933 = vmatpush1.msra.mxu0 0.0
  %934 = vmatprep.subr.mxu0 0.0
  %935 = vmatpush1.msra.mxu0 0.0
  %936 = vmatprep.subr.mxu0 0.0
  %937 = vmatpush1.msra.mxu0 0.0
  %938 = vmatprep.subr.mxu0 0.0
  %939 = vmatpush1.msra.mxu0 0.0
  %940 = vmatprep.subr.mxu0 0.0
  %941 = vmatpush1.msra.mxu0 0.0
  %942 = vmatprep.subr.mxu0 0.0
  %943 = vmatpush1.msra.mxu0 0.0
  %944 = vmatprep.subr.mxu0 0.0
  %945 = vmatpush1.msra.mxu0 0.0
  %946 = vmatprep.subr.mxu0 0.0
  %947 = vmatpush1.msra.mxu0 0.0
  %948 = vmatprep.subr.mxu0 0.0
  %949 = vmatpush1.msra.mxu0 0.0
  %950 = vmatprep.subr.mxu0 0.0
  %951 = vmatpush1.msra.mxu0 0.0
  %952 = vmatprep.subr.mxu0 0.0
  %953 = vmatpush1.msra.mxu0 0.0
  %954 = vmatprep.subr.mxu0 0.0
  %955 = vmatpush1.msra.mxu0 0.0
  %956 = vmatprep.subr.mxu0 0.0
  %957 = vmatpush1.msra.mxu0 0.0
  %958 = vmatprep.subr.mxu0 0.0
  %959 = vmatpush1.msra.mxu0 0.0
  %960 = vmatprep.mubr.f32.mxu0 0.0
  %961 = vmatmul.mubr.f32.gmra.mrb[0].mxu0 %v14
  %v962 = vpop.f32.mrb[0].mxu0
  %v963 = vadd.f32 %v368, %v962
  %v964 = vpop.f32.mrb[0].mxu0
  %v965 = vadd.f32 %v372, %v964
  %966 = vdwg.mxu0
  %967 = vmatprep.subr.mxu0 %v32
  %968 = vmatpush1.msra.mxu0 %v31
  %969 = vmatprep.subr.mxu0 %v50
  %970 = vmatpush1.msra.mxu0 %v49
  %971 = vmatprep.subr.mxu0 %v68
  %972 = vmatpush1.msra.mxu0 %v67
  %973 = vmatprep.subr.mxu0 %v86
  %974 = vmatpush1.msra.mxu0 %v85
  %975 = vmatprep.subr.mxu0 %v104
  %976 = vmatpush1.msra.mxu0 %v103
  %977 = vmatprep.subr.mxu0 %v122
  %978 = vmatpush1.msra.mxu0 %v121
  %979 = vmatprep.subr.mxu0 %v140
  %980 = vmatpush1.msra.mxu0 %v139
  %981 = vmatprep.subr.mxu0 %v158
  %982 = vmatpush1.msra.mxu0 %v157
  %983 = vmatprep.subr.mxu0 %v176
  %984 = vmatpush1.msra.mxu0 %v175
  %985 = vmatprep.subr.mxu0 %v194
  %986 = vmatpush1.msra.mxu0 %v193
  %987 = vmatprep.subr.mxu0 %v212
  %988 = vmatpush1.msra.mxu0 %v211
  %989 = vmatprep.subr.mxu0 %v230
  %990 = vmatpush1.msra.mxu0 %v229
  %991 = vmatprep.subr.mxu0 %v248
  %992 = vmatpush1.msra.mxu0 %v247
  %993 = vmatprep.subr.mxu0 %v266
  %994 = vmatpush1.msra.mxu0 %v265
  %995 = vmatprep.subr.mxu0 %v284
  %996 = vmatpush1.msra.mxu0 %v283
  %997 = vmatprep.subr.mxu0 %v302
  %998 = vmatpush1.msra.mxu0 %v301
  %999 = vmatprep.subr.mxu0 0.0
  %1000 = vmatpush1.msra.mxu0 0.0
  %1001 = vmatprep.subr.mxu0 0.0
  %1002 = vmatpush1.msra.mxu0 0.0
  %1003 = vmatprep.subr.mxu0 0.0
  %1004 = vmatpush1.msra.mxu0 0.0
  %1005 = vmatprep.subr.mxu0 0.0
  %1006 = vmatpush1.msra.mxu0 0.0
  %1007 = vmatprep.subr.mxu0 0.0
  %1008 = vmatpush1.msra.mxu0 0.0
  %1009 = vmatprep.subr.mxu0 0.0
  %1010 = vmatpush1.msra.mxu0 0.0
  %1011 = vmatprep.subr.mxu0 0.0
  %1012 = vmatpush1.msra.mxu0 0.0
  %1013 = vmatprep.subr.mxu0 0.0
  %1014 = vmatpush1.msra.mxu0 0.0
  %1015 = vmatprep.subr.mxu0 0.0
  %1016 = vmatpush1.msra.mxu0 0.0
  %1017 = vmatprep.subr.mxu0 0.0
  %1018 = vmatpush1.msra.mxu0 0.0
  %1019 = vmatprep.subr.mxu0 0.0
  %1020 = vmatpush1.msra.mxu0 0.0
  %1021 = vmatprep.subr.mxu0 0.0
  %1022 = vmatpush1.msra.mxu0 0.0
  %1023 = vmatprep.subr.mxu0 0.0
  %1024 = vmatpush1.msra.mxu0 0.0
  %1025 = vmatprep.subr.mxu0 0.0
  %1026 = vmatpush1.msra.mxu0 0.0
  %1027 = vmatprep.subr.mxu0 0.0
  %1028 = vmatpush1.msra.mxu0 0.0
  %1029 = vmatprep.subr.mxu0 0.0
  %1030 = vmatpush1.msra.mxu0 0.0
  %1031 = vmatprep.mubr.f32.mxu0 0.0
  %1032 = vmatmul.mubr.f32.gmra.mrb[0].mxu0 %v14
  %v1033 = vpop.f32.mrb[0].mxu0
  %v1034 = vadd.f32 %v376, %v1033
  %v1035 = vpop.f32.mrb[0].mxu0
  %v1036 = vadd.f32 %v380, %v1035
  %1037 = vdwg.mxu0
  %1038 = vst [vmem:[%s3] sm:$0xff] %v466
  %1039 = vst [vmem:[%s3 + $0x8] sm:$0xff] %v468
  %1040 = vst [vmem:[%s3 + $0x10] sm:$0xff] %v537
  %1041 = vst [vmem:[%s3 + $0x18] sm:$0xff] %v539
  %1042 = vst [vmem:[%s3 + $0x20] sm:$0xff] %v608
  %1043 = vst [vmem:[%s3 + $0x28] sm:$0xff] %v610
  %1044 = vst [vmem:[%s3 + $0x30] sm:$0xff] %v679
  %1045 = vst [vmem:[%s3 + $0x38] sm:$0xff] %v681
  %1046 = vst [vmem:[%s3 + $0x40] sm:$0xff] %v750
  %1047 = vst [vmem:[%s3 + $0x48] sm:$0xff] %v752
  %1048 = vst [vmem:[%s3 + $0x50] sm:$0xff] %v821
  %1049 = vst [vmem:[%s3 + $0x58] sm:$0xff] %v823
  %1050 = vst [vmem:[%s3 + $0x60] sm:$0xff] %v892
  %1051 = vst [vmem:[%s3 + $0x68] sm:$0xff] %v894
  %1052 = vst [vmem:[%s3 + $0x70] sm:$0xff] %v963
  %1053 = vst [vmem:[%s3 + $0x78] sm:$0xff] %v965
  %1054 = vst [vmem:[%s3 + $0x80] sm:$0xff] %v1034
  %1055 = vst [vmem:[%s3 + $0x88] sm:$0xff] %v1036
  // Predicated region
  $region14: #{model_forward.22} parent=0 // pred_check
    _
  $region15: #{model_forward.22} parent=0 // pred_check_branch
    %1057 = sbr.rel (0) target = $region17
  $region16: #{model_forward.22} parent=0 // pred_region
    _
  $region17: #{model_forward.22} parent=0 // pred_fallthru
    _
  // Predicated region
  $region18: #{model_forward.22} parent=0 // pred_check
    _
  $region19: #{model_forward.22} parent=0 // pred_check_branch
    %1059 = sbr.rel (0) target = $region21
  $region20: #{model_forward.22} parent=0 // pred_region
    _
  $region21: #{model_forward.22} parent=0 // pred_fallthru
    _

// kernel: model_forward.23
$region0: #{model_forward.23}
  #allocation0 [shape = 'u32[]', space=smem, size = 0x4, offset = 0x4, fixed_abs, tag = 'smem constant byte address 0x4 - core index']
  #allocation1 [shape = 'u32[144,128]{1,0:T(1,128)}', space=vmem, size = 0x12000, scoped, tag = 'internal scratch']
  %s0 = inlined_call_operand.vmem [shape: f32[200,128], index: 0, kind: input, shape index: {}]
  %s1 = inlined_call_operand.vmem [shape: f32[128,220], index: 1, kind: input, shape index: {}]
  %s2 = inlined_call_operand.vmem [shape: f32[1,220], index: 2, kind: input, shape index: {}]
  %s3 = inlined_call_operand.vmem [shape: f32[200,220], index: 3, kind: output, shape index: {}]
  %s4 = sld [smem:[#allocation0]]
  $region22: #{model_forward.23} parent=0
    _
  %s6 = ssub.s32 1, %s4
  %s7 = scalar_select 0, %s6, %s4
  // Predicated region
  $region2: #{model_forward.23} parent=0 // pred_check
    _
  $region3: #{model_forward.23} parent=0 // pred_check_branch
    %9 = sbr.rel (0) target = $region5
  $region4: #{model_forward.23} parent=0 // pred_region
    _
  $region5: #{model_forward.23} parent=0 // pred_fallthru
    _
  // Predicated region
  $region6: #{model_forward.23} parent=0 // pred_check
    _
  $region7: #{model_forward.23} parent=0 // pred_check_branch
    %11 = sbr.rel (0) target = $region9
  $region8: #{model_forward.23} parent=0 // pred_region
    _
  $region9: #{model_forward.23} parent=0 // pred_fallthru
    _
  // Predicated region
  $region10: #{model_forward.23} parent=0 // pred_check
    _
  $region11: #{model_forward.23} parent=0 // pred_check_branch
    %13 = sbr.rel (0) target = $region13
  $region12: #{model_forward.23} parent=0 // pred_region
    _
  $region13: #{model_forward.23} parent=0 // pred_fallthru
    _
  %v14 = vld [vmem:[%s0] sm:$0xff]
  %v15 = vld [vmem:[%s0 + $0x8] sm:$0xff]
  %v16 = vld [vmem:[%s0 + $0x10] sm:$0xff]
  %v17 = vld [vmem:[%s0 + $0x18] sm:$0xff]
  %v18 = vld [vmem:[%s0 + $0x20] sm:$0xff]
  %v19 = vld [vmem:[%s0 + $0x28] sm:$0xff]
  %v20 = vld [vmem:[%s0 + $0x30] sm:$0xff]
  %v21 = vld [vmem:[%s0 + $0x38] sm:$0xff]
  %v22 = vld [vmem:[%s0 + $0x40] sm:$0xff]
  %v23 = vld [vmem:[%s0 + $0x48] sm:$0xff]
  %v24 = vld [vmem:[%s0 + $0x50] sm:$0xff]
  %v25 = vld [vmem:[%s0 + $0x58] sm:$0xff]
  %v26 = vld [vmem:[%s0 + $0x60] sm:$0xff]
  %v27 = vld [vmem:[%s0 + $0x68] sm:$0xff]
  %v28 = vld [vmem:[%s0 + $0x70] sm:$0xff]
  %v29 = vld [vmem:[%s0 + $0x78] sm:$0xff]
  %v30 = vld [vmem:[%s0 + $0x80] sm:$0xff]
  %v31 = vld [vmem:[%s0 + $0x88] sm:$0xff]
  %v32 = vld [vmem:[%s0 + $0x90] sm:$0xff]
  %v33 = vld [vmem:[%s0 + $0x98] sm:$0xff]
  %v34 = vld [vmem:[%s0 + $0xa0] sm:$0xff]
  %v35 = vld [vmem:[%s0 + $0xa8] sm:$0xff]
  %v36 = vld [vmem:[%s0 + $0xb0] sm:$0xff]
  %v37 = vld [vmem:[%s0 + $0xb8] sm:$0xff]
  %v38 = vld [vmem:[%s0 + $0xc0] sm:$0xff]
  %v39 = vld [vmem:[%s1] sm:$0xff]
  %v40 = vld [vmem:[%s1 + $0x8] sm:$0xff]
  %v41 = vld [vmem:[%s1 + $0x10] sm:$0xff]
  %v42 = vld [vmem:[%s1 + $0x18] sm:$0xff]
  %v43 = vld [vmem:[%s1 + $0x20] sm:$0xff]
  %v44 = vld [vmem:[%s1 + $0x28] sm:$0xff]
  %v45 = vld [vmem:[%s1 + $0x30] sm:$0xff]
  %v46 = vld [vmem:[%s1 + $0x38] sm:$0xff]
  %v47 = vld [vmem:[%s1 + $0x40] sm:$0xff]
  %v48 = vld [vmem:[%s1 + $0x48] sm:$0xff]
  %v49 = vld [vmem:[%s1 + $0x50] sm:$0xff]
  %v50 = vld [vmem:[%s1 + $0x58] sm:$0xff]
  %v51 = vld [vmem:[%s1 + $0x60] sm:$0xff]
  %v52 = vld [vmem:[%s1 + $0x68] sm:$0xff]
  %v53 = vld [vmem:[%s1 + $0x70] sm:$0xff]
  %v54 = vld [vmem:[%s1 + $0x78] sm:$0xff]
  %v55 = vld [vmem:[%s1 + $0x80] sm:$0xff]
  %v56 = vld [vmem:[%s1 + $0x88] sm:$0xff]
  %v57 = vld [vmem:[%s1 + $0x90] sm:$0xff]
  %v58 = vld [vmem:[%s1 + $0x98] sm:$0xff]
  %v59 = vld [vmem:[%s1 + $0xa0] sm:$0xff]
  %v60 = vld [vmem:[%s1 + $0xa8] sm:$0xff]
  %v61 = vld [vmem:[%s1 + $0xb0] sm:$0xff]
  %v62 = vld [vmem:[%s1 + $0xb8] sm:$0xff]
  %v63 = vld [vmem:[%s1 + $0xc0] sm:$0xff]
  %v64 = vld [vmem:[%s1 + $0xc8] sm:$0xff]
  %v65 = vld [vmem:[%s1 + $0xd0] sm:$0xff]
  %v66 = vld [vmem:[%s1 + $0xd8] sm:$0xff]
  %v67 = vld [vmem:[%s1 + $0xe0] sm:$0xff]
  %v68 = vld [vmem:[%s1 + $0xe8] sm:$0xff]
  %v69 = vld [vmem:[%s1 + $0xf0] sm:$0xff]
  %v70 = vld [vmem:[%s1 + $0xf8] sm:$0xff]
  %v71 = vld [vmem:[%s2] sm:$0x3]
  %v73 = vlaneseq
  %v74 = vshrl.u32 %v73, 7
  %v75 = vsub.s32 0, %v74
  %v76 = vrot.slane %v71, %v75
  %v77 = vlaneseq
  %v78 = vshrl.u32 %v77, 7
  %v79 = vsub.s32 1, %v78
  %v80 = vrot.slane %v71, %v79
  %83 = vmatprep.subr.mxu0 %v40
  %84 = vmatpush1.msra.mxu0 %v39
  %85 = vmatprep.subr.mxu0 %v42
  %86 = vmatpush1.msra.mxu0 %v41
  %87 = vmatprep.subr.mxu0 %v44
  %88 = vmatpush1.msra.mxu0 %v43
  %89 = vmatprep.subr.mxu0 %v46
  %90 = vmatpush1.msra.mxu0 %v45
  %91 = vmatprep.subr.mxu0 %v48
  %92 = vmatpush1.msra.mxu0 %v47
  %93 = vmatprep.subr.mxu0 %v50
  %94 = vmatpush1.msra.mxu0 %v49
  %95 = vmatprep.subr.mxu0 %v52
  %96 = vmatpush1.msra.mxu0 %v51
  %97 = vmatprep.subr.mxu0 %v54
  %98 = vmatpush1.msra.mxu0 %v53
  %99 = vmatprep.subr.mxu0 %v56
  %100 = vmatpush1.msra.mxu0 %v55
  %101 = vmatprep.subr.mxu0 %v58
  %102 = vmatpush1.msra.mxu0 %v57
  %103 = vmatprep.subr.mxu0 %v60
  %104 = vmatpush1.msra.mxu0 %v59
  %105 = vmatprep.subr.mxu0 %v62
  %106 = vmatpush1.msra.mxu0 %v61
  %107 = vmatprep.subr.mxu0 %v64
  %108 = vmatpush1.msra.mxu0 %v63
  %109 = vmatprep.subr.mxu0 %v66
  %110 = vmatpush1.msra.mxu0 %v65
  %111 = vmatprep.subr.mxu0 %v68
  %112 = vmatpush1.msra.mxu0 %v67
  %113 = vmatprep.subr.mxu0 %v70
  %114 = vmatpush1.msra.mxu0 %v69
  %115 = vmatprep.subr.mxu0 0.0
  %116 = vmatpush1.msra.mxu0 0.0
  %117 = vmatprep.subr.mxu0 0.0
  %118 = vmatpush1.msra.mxu0 0.0
  %119 = vmatprep.subr.mxu0 0.0
  %120 = vmatpush1.msra.mxu0 0.0
  %121 = vmatprep.subr.mxu0 0.0
  %122 = vmatpush1.msra.mxu0 0.0
  %123 = vmatprep.subr.mxu0 0.0
  %124 = vmatpush1.msra.mxu0 0.0
  %125 = vmatprep.subr.mxu0 0.0
  %126 = vmatpush1.msra.mxu0 0.0
  %127 = vmatprep.subr.mxu0 0.0
  %128 = vmatpush1.msra.mxu0 0.0
  %129 = vmatprep.subr.mxu0 0.0
  %130 = vmatpush1.msra.mxu0 0.0
  %131 = vmatprep.subr.mxu0 0.0
  %132 = vmatpush1.msra.mxu0 0.0
  %133 = vmatprep.subr.mxu0 0.0
  %134 = vmatpush1.msra.mxu0 0.0
  %135 = vmatprep.subr.mxu0 0.0
  %136 = vmatpush1.msra.mxu0 0.0
  %137 = vmatprep.subr.mxu0 0.0
  %138 = vmatpush1.msra.mxu0 0.0
  %139 = vmatprep.subr.mxu0 0.0
  %140 = vmatpush1.msra.mxu0 0.0
  %141 = vmatprep.subr.mxu0 0.0
  %142 = vmatpush1.msra.mxu0 0.0
  %143 = vmatprep.subr.mxu0 0.0
  %144 = vmatpush1.msra.mxu0 0.0
  %145 = vmatprep.subr.mxu0 0.0
  %146 = vmatpush1.msra.mxu0 0.0
  %147 = vmatprep.mubr.f32.mxu0 0.0
  %148 = vmatmul.mubr.f32.gmra.mrb[0].mxu0 %v14
  %v149 = vpop.f32.mrb[0].mxu0
  %v150 = vadd.f32 %v76, %v149
  %v151 = vpop.f32.mrb[0].mxu0
  %v152 = vadd.f32 %v80, %v151
  %153 = vmatprep.mubr.f32.mxu0 0.0
  %154 = vmatmul.mubr.f32.gmra.mrb[0].mxu0 %v15
  %v155 = vpop.f32.mrb[0].mxu0
  %v156 = vadd.f32 %v76, %v155
  %v157 = vpop.f32.mrb[0].mxu0
  %v158 = vadd.f32 %v80, %v157
  %159 = vmatprep.mubr.f32.mxu0 0.0
  %160 = vmatmul.mubr.f32.gmra.mrb[0].mxu0 %v16
  %v161 = vpop.f32.mrb[0].mxu0
  %v162 = vadd.f32 %v76, %v161
  %v163 = vpop.f32.mrb[0].mxu0
  %v164 = vadd.f32 %v80, %v163
  %165 = vmatprep.mubr.f32.mxu0 0.0
  %166 = vmatmul.mubr.f32.gmra.mrb[0].mxu0 %v17
  %v167 = vpop.f32.mrb[0].mxu0
  %v168 = vadd.f32 %v76, %v167
  %v169 = vpop.f32.mrb[0].mxu0
  %v170 = vadd.f32 %v80, %v169
  %171 = vmatprep.mubr.f32.mxu0 0.0
  %172 = vmatmul.mubr.f32.gmra.mrb[0].mxu0 %v18
  %v173 = vpop.f32.mrb[0].mxu0
  %v174 = vadd.f32 %v76, %v173
  %v175 = vpop.f32.mrb[0].mxu0
  %v176 = vadd.f32 %v80, %v175
  %177 = vmatprep.mubr.f32.mxu0 0.0
  %178 = vmatmul.mubr.f32.gmra.mrb[0].mxu0 %v19
  %v179 = vpop.f32.mrb[0].mxu0
  %v180 = vadd.f32 %v76, %v179
  %v181 = vpop.f32.mrb[0].mxu0
  %v182 = vadd.f32 %v80, %v181
  %183 = vmatprep.mubr.f32.mxu0 0.0
  %184 = vmatmul.mubr.f32.gmra.mrb[0].mxu0 %v20
  %v185 = vpop.f32.mrb[0].mxu0
  %v186 = vadd.f32 %v76, %v185
  %v187 = vpop.f32.mrb[0].mxu0
  %v188 = vadd.f32 %v80, %v187
  %189 = vmatprep.mubr.f32.mxu0 0.0
  %190 = vmatmul.mubr.f32.gmra.mrb[0].mxu0 %v21
  %v191 = vpop.f32.mrb[0].mxu0
  %v192 = vadd.f32 %v76, %v191
  %v193 = vpop.f32.mrb[0].mxu0
  %v194 = vadd.f32 %v80, %v193
  %195 = vmatprep.mubr.f32.mxu0 0.0
  %196 = vmatmul.mubr.f32.gmra.mrb[0].mxu0 %v22
  %v197 = vpop.f32.mrb[0].mxu0
  %v198 = vadd.f32 %v76, %v197
  %v199 = vpop.f32.mrb[0].mxu0
  %v200 = vadd.f32 %v80, %v199
  %201 = vmatprep.mubr.f32.mxu0 0.0
  %202 = vmatmul.mubr.f32.gmra.mrb[0].mxu0 %v23
  %v203 = vpop.f32.mrb[0].mxu0
  %v204 = vadd.f32 %v76, %v203
  %v205 = vpop.f32.mrb[0].mxu0
  %v206 = vadd.f32 %v80, %v205
  %207 = vmatprep.mubr.f32.mxu0 0.0
  %208 = vmatmul.mubr.f32.gmra.mrb[0].mxu0 %v24
  %v209 = vpop.f32.mrb[0].mxu0
  %v210 = vadd.f32 %v76, %v209
  %v211 = vpop.f32.mrb[0].mxu0
  %v212 = vadd.f32 %v80, %v211
  %213 = vmatprep.mubr.f32.mxu0 0.0
  %214 = vmatmul.mubr.f32.gmra.mrb[0].mxu0 %v25
  %v215 = vpop.f32.mrb[0].mxu0
  %v216 = vadd.f32 %v76, %v215
  %v217 = vpop.f32.mrb[0].mxu0
  %v218 = vadd.f32 %v80, %v217
  %219 = vmatprep.mubr.f32.mxu0 0.0
  %220 = vmatmul.mubr.f32.gmra.mrb[0].mxu0 %v26
  %v221 = vpop.f32.mrb[0].mxu0
  %v222 = vadd.f32 %v76, %v221
  %v223 = vpop.f32.mrb[0].mxu0
  %v224 = vadd.f32 %v80, %v223
  %225 = vmatprep.mubr.f32.mxu0 0.0
  %226 = vmatmul.mubr.f32.gmra.mrb[0].mxu0 %v27
  %v227 = vpop.f32.mrb[0].mxu0
  %v228 = vadd.f32 %v76, %v227
  %v229 = vpop.f32.mrb[0].mxu0
  %v230 = vadd.f32 %v80, %v229
  %231 = vmatprep.mubr.f32.mxu0 0.0
  %232 = vmatmul.mubr.f32.gmra.mrb[0].mxu0 %v28
  %v233 = vpop.f32.mrb[0].mxu0
  %v234 = vadd.f32 %v76, %v233
  %v235 = vpop.f32.mrb[0].mxu0
  %v236 = vadd.f32 %v80, %v235
  %237 = vmatprep.mubr.f32.mxu0 0.0
  %238 = vmatmul.mubr.f32.gmra.mrb[0].mxu0 %v29
  %v239 = vpop.f32.mrb[0].mxu0
  %v240 = vadd.f32 %v76, %v239
  %v241 = vpop.f32.mrb[0].mxu0
  %v242 = vadd.f32 %v80, %v241
  %243 = vmatprep.mubr.f32.mxu0 0.0
  %244 = vmatmul.mubr.f32.gmra.mrb[0].mxu0 %v30
  %v245 = vpop.f32.mrb[0].mxu0
  %v246 = vadd.f32 %v76, %v245
  %v247 = vpop.f32.mrb[0].mxu0
  %v248 = vadd.f32 %v80, %v247
  %249 = vmatprep.mubr.f32.mxu0 0.0
  %250 = vmatmul.mubr.f32.gmra.mrb[0].mxu0 %v31
  %v251 = vpop.f32.mrb[0].mxu0
  %v252 = vadd.f32 %v76, %v251
  %v253 = vpop.f32.mrb[0].mxu0
  %v254 = vadd.f32 %v80, %v253
  %255 = vmatprep.mubr.f32.mxu0 0.0
  %256 = vmatmul.mubr.f32.gmra.mrb[0].mxu0 %v32
  %v257 = vpop.f32.mrb[0].mxu0
  %v258 = vadd.f32 %v76, %v257
  %v259 = vpop.f32.mrb[0].mxu0
  %v260 = vadd.f32 %v80, %v259
  %261 = vmatprep.mubr.f32.mxu0 0.0
  %262 = vmatmul.mubr.f32.gmra.mrb[0].mxu0 %v33
  %v263 = vpop.f32.mrb[0].mxu0
  %v264 = vadd.f32 %v76, %v263
  %v265 = vpop.f32.mrb[0].mxu0
  %v266 = vadd.f32 %v80, %v265
  %267 = vmatprep.mubr.f32.mxu0 0.0
  %268 = vmatmul.mubr.f32.gmra.mrb[0].mxu0 %v34
  %v269 = vpop.f32.mrb[0].mxu0
  %v270 = vadd.f32 %v76, %v269
  %v271 = vpop.f32.mrb[0].mxu0
  %v272 = vadd.f32 %v80, %v271
  %273 = vmatprep.mubr.f32.mxu0 0.0
  %274 = vmatmul.mubr.f32.gmra.mrb[0].mxu0 %v35
  %v275 = vpop.f32.mrb[0].mxu0
  %v276 = vadd.f32 %v76, %v275
  %v277 = vpop.f32.mrb[0].mxu0
  %v278 = vadd.f32 %v80, %v277
  %279 = vmatprep.mubr.f32.mxu0 0.0
  %280 = vmatmul.mubr.f32.gmra.mrb[0].mxu0 %v36
  %v281 = vpop.f32.mrb[0].mxu0
  %v282 = vadd.f32 %v76, %v281
  %v283 = vpop.f32.mrb[0].mxu0
  %v284 = vadd.f32 %v80, %v283
  %285 = vmatprep.mubr.f32.mxu0 0.0
  %286 = vmatmul.mubr.f32.gmra.mrb[0].mxu0 %v37
  %v287 = vpop.f32.mrb[0].mxu0
  %v288 = vadd.f32 %v76, %v287
  %v289 = vpop.f32.mrb[0].mxu0
  %v290 = vadd.f32 %v80, %v289
  %291 = vmatprep.mubr.f32.mxu0 0.0
  %292 = vmatmul.mubr.f32.gmra.mrb[0].mxu0 %v38
  %v293 = vpop.f32.mrb[0].mxu0
  %v294 = vadd.f32 %v76, %v293
  %v295 = vpop.f32.mrb[0].mxu0
  %v296 = vadd.f32 %v80, %v295
  %297 = vdwg.mxu0
  %298 = vst [vmem:[%s3] sm:$0xff] %v150
  %vm299 = vcmask 752640
  %300 = vst.msk [vmem:[%s3 + $0x8] sm:$0xff] %vm299, %v152
  %301 = vst [vmem:[%s3 + $0x10] sm:$0xff] %v156
  %302 = vst.msk [vmem:[%s3 + $0x18] sm:$0xff] %vm299, %v158
  %303 = vst [vmem:[%s3 + $0x20] sm:$0xff] %v162
  %304 = vst.msk [vmem:[%s3 + $0x28] sm:$0xff] %vm299, %v164
  %305 = vst [vmem:[%s3 + $0x30] sm:$0xff] %v168
  %306 = vst.msk [vmem:[%s3 + $0x38] sm:$0xff] %vm299, %v170
  %307 = vst [vmem:[%s3 + $0x40] sm:$0xff] %v174
  %308 = vst.msk [vmem:[%s3 + $0x48] sm:$0xff] %vm299, %v176
  %309 = vst [vmem:[%s3 + $0x50] sm:$0xff] %v180
  %310 = vst.msk [vmem:[%s3 + $0x58] sm:$0xff] %vm299, %v182
  %311 = vst [vmem:[%s3 + $0x60] sm:$0xff] %v186
  %312 = vst.msk [vmem:[%s3 + $0x68] sm:$0xff] %vm299, %v188
  %313 = vst [vmem:[%s3 + $0x70] sm:$0xff] %v192
  %314 = vst.msk [vmem:[%s3 + $0x78] sm:$0xff] %vm299, %v194
  %315 = vst [vmem:[%s3 + $0x80] sm:$0xff] %v198
  %316 = vst.msk [vmem:[%s3 + $0x88] sm:$0xff] %vm299, %v200
  %317 = vst [vmem:[%s3 + $0x90] sm:$0xff] %v204
  %318 = vst.msk [vmem:[%s3 + $0x98] sm:$0xff] %vm299, %v206
  %319 = vst [vmem:[%s3 + $0xa0] sm:$0xff] %v210
  %320 = vst.msk [vmem:[%s3 + $0xa8] sm:$0xff] %vm299, %v212
  %321 = vst [vmem:[%s3 + $0xb0] sm:$0xff] %v216
  %322 = vst.msk [vmem:[%s3 + $0xb8] sm:$0xff] %vm299, %v218
  %323 = vst [vmem:[%s3 + $0xc0] sm:$0xff] %v222
  %324 = vst.msk [vmem:[%s3 + $0xc8] sm:$0xff] %vm299, %v224
  %325 = vst [vmem:[%s3 + $0xd0] sm:$0xff] %v228
  %326 = vst.msk [vmem:[%s3 + $0xd8] sm:$0xff] %vm299, %v230
  %327 = vst [vmem:[%s3 + $0xe0] sm:$0xff] %v234
  %328 = vst.msk [vmem:[%s3 + $0xe8] sm:$0xff] %vm299, %v236
  %329 = vst [vmem:[%s3 + $0xf0] sm:$0xff] %v240
  %330 = vst.msk [vmem:[%s3 + $0xf8] sm:$0xff] %vm299, %v242
  %331 = vst [vmem:[%s3 + $0x100] sm:$0xff] %v246
  %332 = vst.msk [vmem:[%s3 + $0x108] sm:$0xff] %vm299, %v248
  %333 = vst [vmem:[%s3 + $0x110] sm:$0xff] %v252
  %334 = vst.msk [vmem:[%s3 + $0x118] sm:$0xff] %vm299, %v254
  %335 = vst [vmem:[%s3 + $0x120] sm:$0xff] %v258
  %336 = vst.msk [vmem:[%s3 + $0x128] sm:$0xff] %vm299, %v260
  %337 = vst [vmem:[%s3 + $0x130] sm:$0xff] %v264
  %338 = vst.msk [vmem:[%s3 + $0x138] sm:$0xff] %vm299, %v266
  %339 = vst [vmem:[%s3 + $0x140] sm:$0xff] %v270
  %340 = vst.msk [vmem:[%s3 + $0x148] sm:$0xff] %vm299, %v272
  %341 = vst [vmem:[%s3 + $0x150] sm:$0xff] %v276
  %342 = vst.msk [vmem:[%s3 + $0x158] sm:$0xff] %vm299, %v278
  %343 = vst [vmem:[%s3 + $0x160] sm:$0xff] %v282
  %344 = vst.msk [vmem:[%s3 + $0x168] sm:$0xff] %vm299, %v284
  %345 = vst [vmem:[%s3 + $0x170] sm:$0xff] %v288
  %346 = vst.msk [vmem:[%s3 + $0x178] sm:$0xff] %vm299, %v290
  %347 = vst [vmem:[%s3 + $0x180] sm:$0xff] %v294
  %348 = vst.msk [vmem:[%s3 + $0x188] sm:$0xff] %vm299, %v296
  // Predicated region
  $region14: #{model_forward.23} parent=0 // pred_check
    _
  $region15: #{model_forward.23} parent=0 // pred_check_branch
    %350 = sbr.rel (0) target = $region17
  $region16: #{model_forward.23} parent=0 // pred_region
    _
  $region17: #{model_forward.23} parent=0 // pred_fallthru
    _
  // Predicated region
  $region18: #{model_forward.23} parent=0 // pred_check
    _
  $region19: #{model_forward.23} parent=0 // pred_check_branch
    %352 = sbr.rel (0) target = $region21
  $region20: #{model_forward.23} parent=0 // pred_region
    _
  $region21: #{model_forward.23} parent=0 // pred_fallthru
    _

</llo_original>
